<compile_context>
chip_gen: v7x
topology: tpu7x:2x2x1
jax: 0.10.0
libtpu: 0.0.40
codegen_flags: <defaults>
</compile_context>

<pallas_src>
import math

import jax
import jax.numpy as jnp
import numpy as np
from jax.experimental import pallas as pl
from jax.experimental.pallas import tpu as pltpu


# --------------------------- fused model kernel ------------------------------
def make_fused_kernel(num_layers, B, T, H):
    """Builds the fused LSTM-stack + FC kernel.

    Ref order: x, (w_ih_t, w_hh_t, b) * num_layers, fc_w_t, fc_b, out, h_seq_scratch * L
    """

    def kernel(*refs):
        x_ref = refs[0]
        layer_refs = refs[1:1 + 3 * num_layers]
        fc_w_ref = refs[1 + 3 * num_layers]
        fc_b_ref = refs[2 + 3 * num_layers]
        out_ref = refs[3 + 3 * num_layers]
        h_seq_refs = refs[4 + 3 * num_layers:]

        d_in = x_ref.shape[-1]
        # Current layer input for the hoisted projection, batch-major rows (b*T + t).
        cur2d = x_ref[...].reshape(B * T, d_in)

        for l in range(num_layers):
            w_ih = layer_refs[3 * l][...]      # (D_in, 4H)
            w_hh = layer_refs[3 * l + 1][...]  # (H,    4H)
            b = layer_refs[3 * l + 2][...]     # (1,    4H) = b_ih + b_hh
            h_seq = h_seq_refs[l]              # VMEM scratch (B, T, H)

            # Hoisted input projection for ALL timesteps: one (B*T, D) @ (D, 4H) matmul.
            xp = jnp.dot(cur2d, w_ih, preferred_element_type=jnp.float32) + b
            xp = xp.reshape(B, T, 4 * H)       # [:, t, :] -> gates from x at time t

            h = jnp.zeros((B, H), jnp.float32)  # h0 = 0 (matches PyTorch forward)
            c = jnp.zeros((B, H), jnp.float32)  # c0 = 0

            # Recurrence is inherently serial; T is small so fully unroll (static loop,
            # all slice indices are compile-time constants -> good LLO visibility).
            for t in range(T):
                gates = xp[:, t, :] + jnp.dot(
                    h, w_hh, preferred_element_type=jnp.float32)  # (B, 4H), order i,f,g,o

                sig = jax.nn.sigmoid(gates)          # one full-width EUP pass for i,f,o
                i_g = sig[:, 0:H]
                f_g = sig[:, H:2 * H]
                o_g = sig[:, 3 * H:4 * H]
                g_g = jnp.tanh(gates[:, 2 * H:3 * H])

                c = f_g * c + i_g * g_g
                h = o_g * jnp.tanh(c)
                h_seq[:, t, :] = h                   # VMEM scratch write (no HBM traffic)

            cur2d = h_seq[...].reshape(B * T, H)

        # FC head: one (B*T, H) @ (H, O) matmul, single store of the full output block.
        out = jnp.dot(cur2d, fc_w_ref[...], preferred_element_type=jnp.float32) + fc_b_ref[...]
        out_ref[...] = out.reshape(B, T, out_ref.shape[-1])

    return kernel


# ------------------------------ model wrapper --------------------------------
def init_params(key, input_size, hidden_size, num_layers, output_size):
    """Deterministic init mimicking PyTorch default uniform(-1/sqrt(H), 1/sqrt(H))."""
    stdv = 1.0 / math.sqrt(hidden_size)
    layers = []
    for l in range(num_layers):
        d_in = input_size if l == 0 else hidden_size
        key, k1, k2, k3, k4 = jax.random.split(key, 5)
        w_ih = jax.random.uniform(k1, (4 * hidden_size, d_in), jnp.float32, -stdv, stdv)
        w_hh = jax.random.uniform(k2, (4 * hidden_size, hidden_size), jnp.float32, -stdv, stdv)
        b_ih = jax.random.uniform(k3, (4 * hidden_size,), jnp.float32, -stdv, stdv)
        b_hh = jax.random.uniform(k4, (4 * hidden_size,), jnp.float32, -stdv, stdv)
        layers.append(dict(
            w_ih_t=jnp.transpose(w_ih),                       # (D_in, 4H)
            w_hh_t=jnp.transpose(w_hh),                       # (H, 4H)
            b=(b_ih + b_hh).reshape(1, 4 * hidden_size),      # (1, 4H)
        ))
    key, k1, k2 = jax.random.split(key, 3)
    fstdv = 1.0 / math.sqrt(hidden_size)
    fc_w = jax.random.uniform(k1, (output_size, hidden_size), jnp.float32, -fstdv, fstdv)
    fc_b = jax.random.uniform(k2, (output_size,), jnp.float32, -fstdv, fstdv)
    return dict(lstm=layers,
                fc_w_t=jnp.transpose(fc_w),                   # (H, O)
                fc_b=fc_b.reshape(1, output_size))            # (1, O)


def motion_retargeting_forward(x, params):
    """x: (B, T, input_size) batch-first (PyTorch convention). Returns (B, T, output_size)."""
    B, T, D = x.shape
    L = len(params["lstm"])
    H = params["lstm"][0]["w_hh_t"].shape[0]
    O = params["fc_b"].shape[-1]

    kernel = make_fused_kernel(L, B, T, H)

    in_arrays = [x]
    in_specs = [pl.BlockSpec((B, T, D), lambda i: (0, 0, 0))]
    for layer in params["lstm"]:
        d_in = layer["w_ih_t"].shape[0]
        in_arrays += [layer["w_ih_t"], layer["w_hh_t"], layer["b"]]
        in_specs += [
            pl.BlockSpec((d_in, 4 * H), lambda i: (0, 0)),
            pl.BlockSpec((H, 4 * H), lambda i: (0, 0)),
            pl.BlockSpec((1, 4 * H), lambda i: (0, 0)),
        ]
    in_arrays += [params["fc_w_t"], params["fc_b"]]
    in_specs += [
        pl.BlockSpec((H, O), lambda i: (0, 0)),
        pl.BlockSpec((1, O), lambda i: (0, 0)),
    ]

    # NOTE: for real workloads with many sequences, grow B (ideally >=8, up to 128+)
    # instead of looping over sequences; the kernel is written for arbitrary B.
    return pl.pallas_call(
        kernel,
        out_shape=jax.ShapeDtypeStruct((B, T, O), jnp.float32),
        grid_spec=pltpu.PrefetchScalarGridSpec(
            num_scalar_prefetch=0,
            grid=(1,),
            in_specs=in_specs,
            out_specs=pl.BlockSpec((B, T, O), lambda i: (0, 0, 0)),
            scratch_shapes=[pltpu.VMEM((B, T, H), jnp.float32) for _ in range(L)],
        ),
        compiler_params=pltpu.CompilerParams(
            dimension_semantics=("arbitrary",),
        ),
    )(*in_arrays)


# ------------------------------ pure-JAX reference ----------------------------
def reference_forward(x, params, hidden_size):
    B = x.shape[0]
    H = hidden_size
    h_seq = jnp.transpose(x, (1, 0, 2))  # (T, B, D)
    for layer in params["lstm"]:
        w_ih_t, w_hh_t, b = layer["w_ih_t"], layer["w_hh_t"], layer["b"]

        def step(carry, x_t):
            h, c = carry
            g = x_t @ w_ih_t + h @ w_hh_t + b[0]
            i = jax.nn.sigmoid(g[:, 0:H])
            f = jax.nn.sigmoid(g[:, H:2 * H])
            gg = jnp.tanh(g[:, 2 * H:3 * H])
            o = jax.nn.sigmoid(g[:, 3 * H:4 * H])
            c = f * c + i * gg
            h = o * jnp.tanh(c)
            return (h, c), h

        init = (jnp.zeros((B, H), jnp.float32), jnp.zeros((B, H), jnp.float32))
        _, ys = jax.lax.scan(step, init, h_seq)
        h_seq = ys
    out = h_seq @ params["fc_w_t"] + params["fc_b"]  # (T, B, O)
    return jnp.transpose(out, (1, 0, 2))


# ----------------------------------- main -------------------------------------
if __name__ == "__main__":
    # Small shapes consistent with the module: batch=2, seq=8, input=16, hidden=32, out=16.
    B, T = 2, 8
    input_size, hidden_size, num_layers, output_size = 16, 32, 2, 16

    key = jax.random.PRNGKey(0)
    key, kx, kp = jax.random.split(key, 3)
    x = jax.random.normal(kx, (B, T, input_size), dtype=jnp.float32)
    params = init_params(kp, input_size, hidden_size, num_layers, output_size)

    out = motion_retargeting_forward(x, params)
    out = jax.block_until_ready(out)

    assert out.shape == (B, T, output_size), out.shape

    ref = jax.block_until_ready(reference_forward(x, params, hidden_size))
    np.testing.assert_allclose(np.asarray(out), np.asarray(ref), rtol=1e-2, atol=1e-2)

    print("KERNEL_OK")
</pallas_src>

<mosaic_0001>
module attributes {stable_mosaic.version = 11 : i64} {
  func.func @kernel(%arg0: i32, %arg1: memref<2x8x16xf32, #tpu.memory_space<vmem>>, %arg2: memref<16x128xf32, #tpu.memory_space<vmem>>, %arg3: memref<32x128xf32, #tpu.memory_space<vmem>>, %arg4: memref<1x128xf32, #tpu.memory_space<vmem>>, %arg5: memref<32x128xf32, #tpu.memory_space<vmem>>, %arg6: memref<32x128xf32, #tpu.memory_space<vmem>>, %arg7: memref<1x128xf32, #tpu.memory_space<vmem>>, %arg8: memref<32x16xf32, #tpu.memory_space<vmem>>, %arg9: memref<1x16xf32, #tpu.memory_space<vmem>>, %arg10: memref<2x8x16xf32, #tpu.memory_space<vmem>>, %arg11: memref<2x8x32xf32, #tpu.memory_space<vmem>>, %arg12: memref<2x8x32xf32, #tpu.memory_space<vmem>>) attributes {dimension_semantics = [#tpu.dimension_semantics<arbitrary>], iteration_bounds = array<i64: 1>, scalar_prefetch = 0 : i64, scratch_operands = 2 : i64, tpu.core_type = #tpu.core_type<tc>, window_params = [{pipeline_mode = #tpu.pipeline_mode<synchronous>, transform_indices = @transform_0, window_bounds = array<i64: 2, 8, 16>}, {pipeline_mode = #tpu.pipeline_mode<synchronous>, transform_indices = @transform_1, window_bounds = array<i64: 16, 128>}, {pipeline_mode = #tpu.pipeline_mode<synchronous>, transform_indices = @transform_2, window_bounds = array<i64: 32, 128>}, {pipeline_mode = #tpu.pipeline_mode<synchronous>, transform_indices = @transform_3, window_bounds = array<i64: 1, 128>}, {pipeline_mode = #tpu.pipeline_mode<synchronous>, transform_indices = @transform_4, window_bounds = array<i64: 32, 128>}, {pipeline_mode = #tpu.pipeline_mode<synchronous>, transform_indices = @transform_5, window_bounds = array<i64: 32, 128>}, {pipeline_mode = #tpu.pipeline_mode<synchronous>, transform_indices = @transform_6, window_bounds = array<i64: 1, 128>}, {pipeline_mode = #tpu.pipeline_mode<synchronous>, transform_indices = @transform_7, window_bounds = array<i64: 32, 16>}, {pipeline_mode = #tpu.pipeline_mode<synchronous>, transform_indices = @transform_8, window_bounds = array<i64: 1, 16>}, {pipeline_mode = #tpu.pipeline_mode<synchronous>, transform_indices = @transform_9, window_bounds = array<i64: 2, 8, 16>}]} {
    %c0 = arith.constant 0 : index
    %c0_0 = arith.constant 0 : index
    %c0_1 = arith.constant 0 : index
    %0 = vector.load %arg1[%c0, %c0_0, %c0_1] : memref<2x8x16xf32, #tpu.memory_space<vmem>>, vector<2x8x16xf32>
    %1 = vector.shape_cast %0 : vector<2x8x16xf32> to vector<16x16xf32>
    %c0_2 = arith.constant 0 : index
    %c0_3 = arith.constant 0 : index
    %2 = vector.load %arg2[%c0_2, %c0_3] : memref<16x128xf32, #tpu.memory_space<vmem>>, vector<16x128xf32>
    %c0_4 = arith.constant 0 : index
    %c0_5 = arith.constant 0 : index
    %3 = vector.load %arg3[%c0_4, %c0_5] : memref<32x128xf32, #tpu.memory_space<vmem>>, vector<32x128xf32>
    %c0_6 = arith.constant 0 : index
    %c0_7 = arith.constant 0 : index
    %4 = vector.load %arg4[%c0_6, %c0_7] : memref<1x128xf32, #tpu.memory_space<vmem>>, vector<1x128xf32>
    %cst = arith.constant dense<0.000000e+00> : vector<16x128xf32>
    %5 = tpu.matmul %1, %2, %cst {dimension_numbers = #tpu.dot_dimension_numbers<[1], [0], [0], [1], [0, 0, 1, 1], [], []>} : vector<16x16xf32>, vector<16x128xf32>, vector<16x128xf32> -> vector<16x128xf32>
    %6 = vector.broadcast %4 : vector<1x128xf32> to vector<16x128xf32>
    %7 = arith.addf %5, %6 : vector<16x128xf32>
    %8 = vector.shape_cast %7 : vector<16x128xf32> to vector<2x8x128xf32>
    %cst_8 = arith.constant 0.000000e+00 : f32
    %9 = vector.broadcast %cst_8 : f32 to vector<2x32xf32>
    %cst_9 = arith.constant 0.000000e+00 : f32
    %10 = vector.broadcast %cst_9 : f32 to vector<2x32xf32>
    %11 = vector.extract_strided_slice %8 {offsets = [0, 0, 0], sizes = [2, 1, 128], strides = [1, 1, 1]} : vector<2x8x128xf32> to vector<2x1x128xf32>
    %12 = vector.shape_cast %11 : vector<2x1x128xf32> to vector<2x128xf32>
    %cst_10 = arith.constant dense<0.000000e+00> : vector<2x128xf32>
    %13 = tpu.matmul %9, %3, %cst_10 {dimension_numbers = #tpu.dot_dimension_numbers<[1], [0], [0], [1], [0, 0, 1, 1], [], []>} : vector<2x32xf32>, vector<32x128xf32>, vector<2x128xf32> -> vector<2x128xf32>
    %14 = arith.addf %12, %13 : vector<2x128xf32>
    %15 = arith.negf %14 : vector<2x128xf32>
    %16 = math.exp %15 : vector<2x128xf32>
    %cst_11 = arith.constant 1.000000e+00 : f32
    %17 = vector.broadcast %cst_11 : f32 to vector<2x128xf32>
    %18 = arith.addf %17, %16 : vector<2x128xf32>
    %19 = arith.divf %17, %18 : vector<2x128xf32>
    %20 = vector.extract_strided_slice %19 {offsets = [0, 0], sizes = [2, 32], strides = [1, 1]} : vector<2x128xf32> to vector<2x32xf32>
    %21 = vector.extract_strided_slice %19 {offsets = [0, 32], sizes = [2, 32], strides = [1, 1]} : vector<2x128xf32> to vector<2x32xf32>
    %22 = vector.extract_strided_slice %19 {offsets = [0, 96], sizes = [2, 32], strides = [1, 1]} : vector<2x128xf32> to vector<2x32xf32>
    %23 = vector.extract_strided_slice %14 {offsets = [0, 64], sizes = [2, 32], strides = [1, 1]} : vector<2x128xf32> to vector<2x32xf32>
    %24 = math.tanh %23 : vector<2x32xf32>
    %25 = arith.mulf %21, %10 : vector<2x32xf32>
    %26 = arith.mulf %20, %24 : vector<2x32xf32>
    %27 = arith.addf %25, %26 : vector<2x32xf32>
    %28 = math.tanh %27 : vector<2x32xf32>
    %29 = arith.mulf %22, %28 : vector<2x32xf32>
    %c0_12 = arith.constant 0 : index
    %c0_13 = arith.constant 0 : index
    %c0_14 = arith.constant 0 : index
    %30 = vector.load %arg11[%c0_12, %c0_13, %c0_14] : memref<2x8x32xf32, #tpu.memory_space<vmem>>, vector<2x1x32xf32>
    %31 = vector.shape_cast %30 : vector<2x1x32xf32> to vector<2x32xf32>
    %32 = vector.shape_cast %29 : vector<2x32xf32> to vector<2x1x32xf32>
    tpu.vector_store %arg11[%c0_12, %c0_13, %c0_14], %32 {strides = array<i32>} : memref<2x8x32xf32, #tpu.memory_space<vmem>>, vector<2x1x32xf32>,
    %33 = vector.extract_strided_slice %8 {offsets = [0, 1, 0], sizes = [2, 1, 128], strides = [1, 1, 1]} : vector<2x8x128xf32> to vector<2x1x128xf32>
    %34 = vector.shape_cast %33 : vector<2x1x128xf32> to vector<2x128xf32>
    %cst_15 = arith.constant dense<0.000000e+00> : vector<2x128xf32>
    %35 = tpu.matmul %29, %3, %cst_15 {dimension_numbers = #tpu.dot_dimension_numbers<[1], [0], [0], [1], [0, 0, 1, 1], [], []>} : vector<2x32xf32>, vector<32x128xf32>, vector<2x128xf32> -> vector<2x128xf32>
    %36 = arith.addf %34, %35 : vector<2x128xf32>
    %37 = arith.negf %36 : vector<2x128xf32>
    %38 = math.exp %37 : vector<2x128xf32>
    %cst_16 = arith.constant 1.000000e+00 : f32
    %39 = vector.broadcast %cst_16 : f32 to vector<2x128xf32>
    %40 = arith.addf %39, %38 : vector<2x128xf32>
    %41 = arith.divf %39, %40 : vector<2x128xf32>
    %42 = vector.extract_strided_slice %41 {offsets = [0, 0], sizes = [2, 32], strides = [1, 1]} : vector<2x128xf32> to vector<2x32xf32>
    %43 = vector.extract_strided_slice %41 {offsets = [0, 32], sizes = [2, 32], strides = [1, 1]} : vector<2x128xf32> to vector<2x32xf32>
    %44 = vector.extract_strided_slice %41 {offsets = [0, 96], sizes = [2, 32], strides = [1, 1]} : vector<2x128xf32> to vector<2x32xf32>
    %45 = vector.extract_strided_slice %36 {offsets = [0, 64], sizes = [2, 32], strides = [1, 1]} : vector<2x128xf32> to vector<2x32xf32>
    %46 = math.tanh %45 : vector<2x32xf32>
    %47 = arith.mulf %43, %27 : vector<2x32xf32>
    %48 = arith.mulf %42, %46 : vector<2x32xf32>
    %49 = arith.addf %47, %48 : vector<2x32xf32>
    %50 = math.tanh %49 : vector<2x32xf32>
    %51 = arith.mulf %44, %50 : vector<2x32xf32>
    %c0_17 = arith.constant 0 : index
    %c1 = arith.constant 1 : index
    %c0_18 = arith.constant 0 : index
    %52 = vector.load %arg11[%c0_17, %c1, %c0_18] : memref<2x8x32xf32, #tpu.memory_space<vmem>>, vector<2x1x32xf32>
    %53 = vector.shape_cast %52 : vector<2x1x32xf32> to vector<2x32xf32>
    %54 = vector.shape_cast %51 : vector<2x32xf32> to vector<2x1x32xf32>
    tpu.vector_store %arg11[%c0_17, %c1, %c0_18], %54 {strides = array<i32>} : memref<2x8x32xf32, #tpu.memory_space<vmem>>, vector<2x1x32xf32>,
    %55 = vector.extract_strided_slice %8 {offsets = [0, 2, 0], sizes = [2, 1, 128], strides = [1, 1, 1]} : vector<2x8x128xf32> to vector<2x1x128xf32>
    %56 = vector.shape_cast %55 : vector<2x1x128xf32> to vector<2x128xf32>
    %cst_19 = arith.constant dense<0.000000e+00> : vector<2x128xf32>
    %57 = tpu.matmul %51, %3, %cst_19 {dimension_numbers = #tpu.dot_dimension_numbers<[1], [0], [0], [1], [0, 0, 1, 1], [], []>} : vector<2x32xf32>, vector<32x128xf32>, vector<2x128xf32> -> vector<2x128xf32>
    %58 = arith.addf %56, %57 : vector<2x128xf32>
    %59 = arith.negf %58 : vector<2x128xf32>
    %60 = math.exp %59 : vector<2x128xf32>
    %cst_20 = arith.constant 1.000000e+00 : f32
    %61 = vector.broadcast %cst_20 : f32 to vector<2x128xf32>
    %62 = arith.addf %61, %60 : vector<2x128xf32>
    %63 = arith.divf %61, %62 : vector<2x128xf32>
    %64 = vector.extract_strided_slice %63 {offsets = [0, 0], sizes = [2, 32], strides = [1, 1]} : vector<2x128xf32> to vector<2x32xf32>
    %65 = vector.extract_strided_slice %63 {offsets = [0, 32], sizes = [2, 32], strides = [1, 1]} : vector<2x128xf32> to vector<2x32xf32>
    %66 = vector.extract_strided_slice %63 {offsets = [0, 96], sizes = [2, 32], strides = [1, 1]} : vector<2x128xf32> to vector<2x32xf32>
    %67 = vector.extract_strided_slice %58 {offsets = [0, 64], sizes = [2, 32], strides = [1, 1]} : vector<2x128xf32> to vector<2x32xf32>
    %68 = math.tanh %67 : vector<2x32xf32>
    %69 = arith.mulf %65, %49 : vector<2x32xf32>
    %70 = arith.mulf %64, %68 : vector<2x32xf32>
    %71 = arith.addf %69, %70 : vector<2x32xf32>
    %72 = math.tanh %71 : vector<2x32xf32>
    %73 = arith.mulf %66, %72 : vector<2x32xf32>
    %c0_21 = arith.constant 0 : index
    %c2 = arith.constant 2 : index
    %c0_22 = arith.constant 0 : index
    %74 = vector.load %arg11[%c0_21, %c2, %c0_22] : memref<2x8x32xf32, #tpu.memory_space<vmem>>, vector<2x1x32xf32>
    %75 = vector.shape_cast %74 : vector<2x1x32xf32> to vector<2x32xf32>
    %76 = vector.shape_cast %73 : vector<2x32xf32> to vector<2x1x32xf32>
    tpu.vector_store %arg11[%c0_21, %c2, %c0_22], %76 {strides = array<i32>} : memref<2x8x32xf32, #tpu.memory_space<vmem>>, vector<2x1x32xf32>,
    %77 = vector.extract_strided_slice %8 {offsets = [0, 3, 0], sizes = [2, 1, 128], strides = [1, 1, 1]} : vector<2x8x128xf32> to vector<2x1x128xf32>
    %78 = vector.shape_cast %77 : vector<2x1x128xf32> to vector<2x128xf32>
    %cst_23 = arith.constant dense<0.000000e+00> : vector<2x128xf32>
    %79 = tpu.matmul %73, %3, %cst_23 {dimension_numbers = #tpu.dot_dimension_numbers<[1], [0], [0], [1], [0, 0, 1, 1], [], []>} : vector<2x32xf32>, vector<32x128xf32>, vector<2x128xf32> -> vector<2x128xf32>
    %80 = arith.addf %78, %79 : vector<2x128xf32>
    %81 = arith.negf %80 : vector<2x128xf32>
    %82 = math.exp %81 : vector<2x128xf32>
    %cst_24 = arith.constant 1.000000e+00 : f32
    %83 = vector.broadcast %cst_24 : f32 to vector<2x128xf32>
    %84 = arith.addf %83, %82 : vector<2x128xf32>
    %85 = arith.divf %83, %84 : vector<2x128xf32>
    %86 = vector.extract_strided_slice %85 {offsets = [0, 0], sizes = [2, 32], strides = [1, 1]} : vector<2x128xf32> to vector<2x32xf32>
    %87 = vector.extract_strided_slice %85 {offsets = [0, 32], sizes = [2, 32], strides = [1, 1]} : vector<2x128xf32> to vector<2x32xf32>
    %88 = vector.extract_strided_slice %85 {offsets = [0, 96], sizes = [2, 32], strides = [1, 1]} : vector<2x128xf32> to vector<2x32xf32>
    %89 = vector.extract_strided_slice %80 {offsets = [0, 64], sizes = [2, 32], strides = [1, 1]} : vector<2x128xf32> to vector<2x32xf32>
    %90 = math.tanh %89 : vector<2x32xf32>
    %91 = arith.mulf %87, %71 : vector<2x32xf32>
    %92 = arith.mulf %86, %90 : vector<2x32xf32>
    %93 = arith.addf %91, %92 : vector<2x32xf32>
    %94 = math.tanh %93 : vector<2x32xf32>
    %95 = arith.mulf %88, %94 : vector<2x32xf32>
    %c0_25 = arith.constant 0 : index
    %c3 = arith.constant 3 : index
    %c0_26 = arith.constant 0 : index
    %96 = vector.load %arg11[%c0_25, %c3, %c0_26] : memref<2x8x32xf32, #tpu.memory_space<vmem>>, vector<2x1x32xf32>
    %97 = vector.shape_cast %96 : vector<2x1x32xf32> to vector<2x32xf32>
    %98 = vector.shape_cast %95 : vector<2x32xf32> to vector<2x1x32xf32>
    tpu.vector_store %arg11[%c0_25, %c3, %c0_26], %98 {strides = array<i32>} : memref<2x8x32xf32, #tpu.memory_space<vmem>>, vector<2x1x32xf32>,
    %99 = vector.extract_strided_slice %8 {offsets = [0, 4, 0], sizes = [2, 1, 128], strides = [1, 1, 1]} : vector<2x8x128xf32> to vector<2x1x128xf32>
    %100 = vector.shape_cast %99 : vector<2x1x128xf32> to vector<2x128xf32>
    %cst_27 = arith.constant dense<0.000000e+00> : vector<2x128xf32>
    %101 = tpu.matmul %95, %3, %cst_27 {dimension_numbers = #tpu.dot_dimension_numbers<[1], [0], [0], [1], [0, 0, 1, 1], [], []>} : vector<2x32xf32>, vector<32x128xf32>, vector<2x128xf32> -> vector<2x128xf32>
    %102 = arith.addf %100, %101 : vector<2x128xf32>
    %103 = arith.negf %102 : vector<2x128xf32>
    %104 = math.exp %103 : vector<2x128xf32>
    %cst_28 = arith.constant 1.000000e+00 : f32
    %105 = vector.broadcast %cst_28 : f32 to vector<2x128xf32>
    %106 = arith.addf %105, %104 : vector<2x128xf32>
    %107 = arith.divf %105, %106 : vector<2x128xf32>
    %108 = vector.extract_strided_slice %107 {offsets = [0, 0], sizes = [2, 32], strides = [1, 1]} : vector<2x128xf32> to vector<2x32xf32>
    %109 = vector.extract_strided_slice %107 {offsets = [0, 32], sizes = [2, 32], strides = [1, 1]} : vector<2x128xf32> to vector<2x32xf32>
    %110 = vector.extract_strided_slice %107 {offsets = [0, 96], sizes = [2, 32], strides = [1, 1]} : vector<2x128xf32> to vector<2x32xf32>
    %111 = vector.extract_strided_slice %102 {offsets = [0, 64], sizes = [2, 32], strides = [1, 1]} : vector<2x128xf32> to vector<2x32xf32>
    %112 = math.tanh %111 : vector<2x32xf32>
    %113 = arith.mulf %109, %93 : vector<2x32xf32>
    %114 = arith.mulf %108, %112 : vector<2x32xf32>
    %115 = arith.addf %113, %114 : vector<2x32xf32>
    %116 = math.tanh %115 : vector<2x32xf32>
    %117 = arith.mulf %110, %116 : vector<2x32xf32>
    %c0_29 = arith.constant 0 : index
    %c4 = arith.constant 4 : index
    %c0_30 = arith.constant 0 : index
    %118 = vector.load %arg11[%c0_29, %c4, %c0_30] : memref<2x8x32xf32, #tpu.memory_space<vmem>>, vector<2x1x32xf32>
    %119 = vector.shape_cast %118 : vector<2x1x32xf32> to vector<2x32xf32>
    %120 = vector.shape_cast %117 : vector<2x32xf32> to vector<2x1x32xf32>
    tpu.vector_store %arg11[%c0_29, %c4, %c0_30], %120 {strides = array<i32>} : memref<2x8x32xf32, #tpu.memory_space<vmem>>, vector<2x1x32xf32>,
    %121 = vector.extract_strided_slice %8 {offsets = [0, 5, 0], sizes = [2, 1, 128], strides = [1, 1, 1]} : vector<2x8x128xf32> to vector<2x1x128xf32>
    %122 = vector.shape_cast %121 : vector<2x1x128xf32> to vector<2x128xf32>
    %cst_31 = arith.constant dense<0.000000e+00> : vector<2x128xf32>
    %123 = tpu.matmul %117, %3, %cst_31 {dimension_numbers = #tpu.dot_dimension_numbers<[1], [0], [0], [1], [0, 0, 1, 1], [], []>} : vector<2x32xf32>, vector<32x128xf32>, vector<2x128xf32> -> vector<2x128xf32>
    %124 = arith.addf %122, %123 : vector<2x128xf32>
    %125 = arith.negf %124 : vector<2x128xf32>
    %126 = math.exp %125 : vector<2x128xf32>
    %cst_32 = arith.constant 1.000000e+00 : f32
    %127 = vector.broadcast %cst_32 : f32 to vector<2x128xf32>
    %128 = arith.addf %127, %126 : vector<2x128xf32>
    %129 = arith.divf %127, %128 : vector<2x128xf32>
    %130 = vector.extract_strided_slice %129 {offsets = [0, 0], sizes = [2, 32], strides = [1, 1]} : vector<2x128xf32> to vector<2x32xf32>
    %131 = vector.extract_strided_slice %129 {offsets = [0, 32], sizes = [2, 32], strides = [1, 1]} : vector<2x128xf32> to vector<2x32xf32>
    %132 = vector.extract_strided_slice %129 {offsets = [0, 96], sizes = [2, 32], strides = [1, 1]} : vector<2x128xf32> to vector<2x32xf32>
    %133 = vector.extract_strided_slice %124 {offsets = [0, 64], sizes = [2, 32], strides = [1, 1]} : vector<2x128xf32> to vector<2x32xf32>
    %134 = math.tanh %133 : vector<2x32xf32>
    %135 = arith.mulf %131, %115 : vector<2x32xf32>
    %136 = arith.mulf %130, %134 : vector<2x32xf32>
    %137 = arith.addf %135, %136 : vector<2x32xf32>
    %138 = math.tanh %137 : vector<2x32xf32>
    %139 = arith.mulf %132, %138 : vector<2x32xf32>
    %c0_33 = arith.constant 0 : index
    %c5 = arith.constant 5 : index
    %c0_34 = arith.constant 0 : index
    %140 = vector.load %arg11[%c0_33, %c5, %c0_34] : memref<2x8x32xf32, #tpu.memory_space<vmem>>, vector<2x1x32xf32>
    %141 = vector.shape_cast %140 : vector<2x1x32xf32> to vector<2x32xf32>
    %142 = vector.shape_cast %139 : vector<2x32xf32> to vector<2x1x32xf32>
    tpu.vector_store %arg11[%c0_33, %c5, %c0_34], %142 {strides = array<i32>} : memref<2x8x32xf32, #tpu.memory_space<vmem>>, vector<2x1x32xf32>,
    %143 = vector.extract_strided_slice %8 {offsets = [0, 6, 0], sizes = [2, 1, 128], strides = [1, 1, 1]} : vector<2x8x128xf32> to vector<2x1x128xf32>
    %144 = vector.shape_cast %143 : vector<2x1x128xf32> to vector<2x128xf32>
    %cst_35 = arith.constant dense<0.000000e+00> : vector<2x128xf32>
    %145 = tpu.matmul %139, %3, %cst_35 {dimension_numbers = #tpu.dot_dimension_numbers<[1], [0], [0], [1], [0, 0, 1, 1], [], []>} : vector<2x32xf32>, vector<32x128xf32>, vector<2x128xf32> -> vector<2x128xf32>
    %146 = arith.addf %144, %145 : vector<2x128xf32>
    %147 = arith.negf %146 : vector<2x128xf32>
    %148 = math.exp %147 : vector<2x128xf32>
    %cst_36 = arith.constant 1.000000e+00 : f32
    %149 = vector.broadcast %cst_36 : f32 to vector<2x128xf32>
    %150 = arith.addf %149, %148 : vector<2x128xf32>
    %151 = arith.divf %149, %150 : vector<2x128xf32>
    %152 = vector.extract_strided_slice %151 {offsets = [0, 0], sizes = [2, 32], strides = [1, 1]} : vector<2x128xf32> to vector<2x32xf32>
    %153 = vector.extract_strided_slice %151 {offsets = [0, 32], sizes = [2, 32], strides = [1, 1]} : vector<2x128xf32> to vector<2x32xf32>
    %154 = vector.extract_strided_slice %151 {offsets = [0, 96], sizes = [2, 32], strides = [1, 1]} : vector<2x128xf32> to vector<2x32xf32>
    %155 = vector.extract_strided_slice %146 {offsets = [0, 64], sizes = [2, 32], strides = [1, 1]} : vector<2x128xf32> to vector<2x32xf32>
    %156 = math.tanh %155 : vector<2x32xf32>
    %157 = arith.mulf %153, %137 : vector<2x32xf32>
    %158 = arith.mulf %152, %156 : vector<2x32xf32>
    %159 = arith.addf %157, %158 : vector<2x32xf32>
    %160 = math.tanh %159 : vector<2x32xf32>
    %161 = arith.mulf %154, %160 : vector<2x32xf32>
    %c0_37 = arith.constant 0 : index
    %c6 = arith.constant 6 : index
    %c0_38 = arith.constant 0 : index
    %162 = vector.load %arg11[%c0_37, %c6, %c0_38] : memref<2x8x32xf32, #tpu.memory_space<vmem>>, vector<2x1x32xf32>
    %163 = vector.shape_cast %162 : vector<2x1x32xf32> to vector<2x32xf32>
    %164 = vector.shape_cast %161 : vector<2x32xf32> to vector<2x1x32xf32>
    tpu.vector_store %arg11[%c0_37, %c6, %c0_38], %164 {strides = array<i32>} : memref<2x8x32xf32, #tpu.memory_space<vmem>>, vector<2x1x32xf32>,
    %165 = vector.extract_strided_slice %8 {offsets = [0, 7, 0], sizes = [2, 1, 128], strides = [1, 1, 1]} : vector<2x8x128xf32> to vector<2x1x128xf32>
    %166 = vector.shape_cast %165 : vector<2x1x128xf32> to vector<2x128xf32>
    %cst_39 = arith.constant dense<0.000000e+00> : vector<2x128xf32>
    %167 = tpu.matmul %161, %3, %cst_39 {dimension_numbers = #tpu.dot_dimension_numbers<[1], [0], [0], [1], [0, 0, 1, 1], [], []>} : vector<2x32xf32>, vector<32x128xf32>, vector<2x128xf32> -> vector<2x128xf32>
    %168 = arith.addf %166, %167 : vector<2x128xf32>
    %169 = arith.negf %168 : vector<2x128xf32>
    %170 = math.exp %169 : vector<2x128xf32>
    %cst_40 = arith.constant 1.000000e+00 : f32
    %171 = vector.broadcast %cst_40 : f32 to vector<2x128xf32>
    %172 = arith.addf %171, %170 : vector<2x128xf32>
    %173 = arith.divf %171, %172 : vector<2x128xf32>
    %174 = vector.extract_strided_slice %173 {offsets = [0, 0], sizes = [2, 32], strides = [1, 1]} : vector<2x128xf32> to vector<2x32xf32>
    %175 = vector.extract_strided_slice %173 {offsets = [0, 32], sizes = [2, 32], strides = [1, 1]} : vector<2x128xf32> to vector<2x32xf32>
    %176 = vector.extract_strided_slice %173 {offsets = [0, 96], sizes = [2, 32], strides = [1, 1]} : vector<2x128xf32> to vector<2x32xf32>
    %177 = vector.extract_strided_slice %168 {offsets = [0, 64], sizes = [2, 32], strides = [1, 1]} : vector<2x128xf32> to vector<2x32xf32>
    %178 = math.tanh %177 : vector<2x32xf32>
    %179 = arith.mulf %175, %159 : vector<2x32xf32>
    %180 = arith.mulf %174, %178 : vector<2x32xf32>
    %181 = arith.addf %179, %180 : vector<2x32xf32>
    %182 = math.tanh %181 : vector<2x32xf32>
    %183 = arith.mulf %176, %182 : vector<2x32xf32>
    %c0_41 = arith.constant 0 : index
    %c7 = arith.constant 7 : index
    %c0_42 = arith.constant 0 : index
    %184 = vector.load %arg11[%c0_41, %c7, %c0_42] : memref<2x8x32xf32, #tpu.memory_space<vmem>>, vector<2x1x32xf32>
    %185 = vector.shape_cast %184 : vector<2x1x32xf32> to vector<2x32xf32>
    %186 = vector.shape_cast %183 : vector<2x32xf32> to vector<2x1x32xf32>
    tpu.vector_store %arg11[%c0_41, %c7, %c0_42], %186 {strides = array<i32>} : memref<2x8x32xf32, #tpu.memory_space<vmem>>, vector<2x1x32xf32>,
    %c0_43 = arith.constant 0 : index
    %c0_44 = arith.constant 0 : index
    %c0_45 = arith.constant 0 : index
    %187 = vector.load %arg11[%c0_43, %c0_44, %c0_45] : memref<2x8x32xf32, #tpu.memory_space<vmem>>, vector<2x8x32xf32>
    %188 = vector.shape_cast %187 : vector<2x8x32xf32> to vector<16x32xf32>
    %c0_46 = arith.constant 0 : index
    %c0_47 = arith.constant 0 : index
    %189 = vector.load %arg5[%c0_46, %c0_47] : memref<32x128xf32, #tpu.memory_space<vmem>>, vector<32x128xf32>
    %c0_48 = arith.constant 0 : index
    %c0_49 = arith.constant 0 : index
    %190 = vector.load %arg6[%c0_48, %c0_49] : memref<32x128xf32, #tpu.memory_space<vmem>>, vector<32x128xf32>
    %c0_50 = arith.constant 0 : index
    %c0_51 = arith.constant 0 : index
    %191 = vector.load %arg7[%c0_50, %c0_51] : memref<1x128xf32, #tpu.memory_space<vmem>>, vector<1x128xf32>
    %cst_52 = arith.constant dense<0.000000e+00> : vector<16x128xf32>
    %192 = tpu.matmul %188, %189, %cst_52 {dimension_numbers = #tpu.dot_dimension_numbers<[1], [0], [0], [1], [0, 0, 1, 1], [], []>} : vector<16x32xf32>, vector<32x128xf32>, vector<16x128xf32> -> vector<16x128xf32>
    %193 = vector.broadcast %191 : vector<1x128xf32> to vector<16x128xf32>
    %194 = arith.addf %192, %193 : vector<16x128xf32>
    %195 = vector.shape_cast %194 : vector<16x128xf32> to vector<2x8x128xf32>
    %cst_53 = arith.constant 0.000000e+00 : f32
    %196 = vector.broadcast %cst_53 : f32 to vector<2x32xf32>
    %cst_54 = arith.constant 0.000000e+00 : f32
    %197 = vector.broadcast %cst_54 : f32 to vector<2x32xf32>
    %198 = vector.extract_strided_slice %195 {offsets = [0, 0, 0], sizes = [2, 1, 128], strides = [1, 1, 1]} : vector<2x8x128xf32> to vector<2x1x128xf32>
    %199 = vector.shape_cast %198 : vector<2x1x128xf32> to vector<2x128xf32>
    %cst_55 = arith.constant dense<0.000000e+00> : vector<2x128xf32>
    %200 = tpu.matmul %196, %190, %cst_55 {dimension_numbers = #tpu.dot_dimension_numbers<[1], [0], [0], [1], [0, 0, 1, 1], [], []>} : vector<2x32xf32>, vector<32x128xf32>, vector<2x128xf32> -> vector<2x128xf32>
    %201 = arith.addf %199, %200 : vector<2x128xf32>
    %202 = arith.negf %201 : vector<2x128xf32>
    %203 = math.exp %202 : vector<2x128xf32>
    %cst_56 = arith.constant 1.000000e+00 : f32
    %204 = vector.broadcast %cst_56 : f32 to vector<2x128xf32>
    %205 = arith.addf %204, %203 : vector<2x128xf32>
    %206 = arith.divf %204, %205 : vector<2x128xf32>
    %207 = vector.extract_strided_slice %206 {offsets = [0, 0], sizes = [2, 32], strides = [1, 1]} : vector<2x128xf32> to vector<2x32xf32>
    %208 = vector.extract_strided_slice %206 {offsets = [0, 32], sizes = [2, 32], strides = [1, 1]} : vector<2x128xf32> to vector<2x32xf32>
    %209 = vector.extract_strided_slice %206 {offsets = [0, 96], sizes = [2, 32], strides = [1, 1]} : vector<2x128xf32> to vector<2x32xf32>
    %210 = vector.extract_strided_slice %201 {offsets = [0, 64], sizes = [2, 32], strides = [1, 1]} : vector<2x128xf32> to vector<2x32xf32>
    %211 = math.tanh %210 : vector<2x32xf32>
    %212 = arith.mulf %208, %197 : vector<2x32xf32>
    %213 = arith.mulf %207, %211 : vector<2x32xf32>
    %214 = arith.addf %212, %213 : vector<2x32xf32>
    %215 = math.tanh %214 : vector<2x32xf32>
    %216 = arith.mulf %209, %215 : vector<2x32xf32>
    %c0_57 = arith.constant 0 : index
    %c0_58 = arith.constant 0 : index
    %c0_59 = arith.constant 0 : index
    %217 = vector.load %arg12[%c0_57, %c0_58, %c0_59] : memref<2x8x32xf32, #tpu.memory_space<vmem>>, vector<2x1x32xf32>
    %218 = vector.shape_cast %217 : vector<2x1x32xf32> to vector<2x32xf32>
    %219 = vector.shape_cast %216 : vector<2x32xf32> to vector<2x1x32xf32>
    tpu.vector_store %arg12[%c0_57, %c0_58, %c0_59], %219 {strides = array<i32>} : memref<2x8x32xf32, #tpu.memory_space<vmem>>, vector<2x1x32xf32>,
    %220 = vector.extract_strided_slice %195 {offsets = [0, 1, 0], sizes = [2, 1, 128], strides = [1, 1, 1]} : vector<2x8x128xf32> to vector<2x1x128xf32>
    %221 = vector.shape_cast %220 : vector<2x1x128xf32> to vector<2x128xf32>
    %cst_60 = arith.constant dense<0.000000e+00> : vector<2x128xf32>
    %222 = tpu.matmul %216, %190, %cst_60 {dimension_numbers = #tpu.dot_dimension_numbers<[1], [0], [0], [1], [0, 0, 1, 1], [], []>} : vector<2x32xf32>, vector<32x128xf32>, vector<2x128xf32> -> vector<2x128xf32>
    %223 = arith.addf %221, %222 : vector<2x128xf32>
    %224 = arith.negf %223 : vector<2x128xf32>
    %225 = math.exp %224 : vector<2x128xf32>
    %cst_61 = arith.constant 1.000000e+00 : f32
    %226 = vector.broadcast %cst_61 : f32 to vector<2x128xf32>
    %227 = arith.addf %226, %225 : vector<2x128xf32>
    %228 = arith.divf %226, %227 : vector<2x128xf32>
    %229 = vector.extract_strided_slice %228 {offsets = [0, 0], sizes = [2, 32], strides = [1, 1]} : vector<2x128xf32> to vector<2x32xf32>
    %230 = vector.extract_strided_slice %228 {offsets = [0, 32], sizes = [2, 32], strides = [1, 1]} : vector<2x128xf32> to vector<2x32xf32>
    %231 = vector.extract_strided_slice %228 {offsets = [0, 96], sizes = [2, 32], strides = [1, 1]} : vector<2x128xf32> to vector<2x32xf32>
    %232 = vector.extract_strided_slice %223 {offsets = [0, 64], sizes = [2, 32], strides = [1, 1]} : vector<2x128xf32> to vector<2x32xf32>
    %233 = math.tanh %232 : vector<2x32xf32>
    %234 = arith.mulf %230, %214 : vector<2x32xf32>
    %235 = arith.mulf %229, %233 : vector<2x32xf32>
    %236 = arith.addf %234, %235 : vector<2x32xf32>
    %237 = math.tanh %236 : vector<2x32xf32>
    %238 = arith.mulf %231, %237 : vector<2x32xf32>
    %c0_62 = arith.constant 0 : index
    %c1_63 = arith.constant 1 : index
    %c0_64 = arith.constant 0 : index
    %239 = vector.load %arg12[%c0_62, %c1_63, %c0_64] : memref<2x8x32xf32, #tpu.memory_space<vmem>>, vector<2x1x32xf32>
    %240 = vector.shape_cast %239 : vector<2x1x32xf32> to vector<2x32xf32>
    %241 = vector.shape_cast %238 : vector<2x32xf32> to vector<2x1x32xf32>
    tpu.vector_store %arg12[%c0_62, %c1_63, %c0_64], %241 {strides = array<i32>} : memref<2x8x32xf32, #tpu.memory_space<vmem>>, vector<2x1x32xf32>,
    %242 = vector.extract_strided_slice %195 {offsets = [0, 2, 0], sizes = [2, 1, 128], strides = [1, 1, 1]} : vector<2x8x128xf32> to vector<2x1x128xf32>
    %243 = vector.shape_cast %242 : vector<2x1x128xf32> to vector<2x128xf32>
    %cst_65 = arith.constant dense<0.000000e+00> : vector<2x128xf32>
    %244 = tpu.matmul %238, %190, %cst_65 {dimension_numbers = #tpu.dot_dimension_numbers<[1], [0], [0], [1], [0, 0, 1, 1], [], []>} : vector<2x32xf32>, vector<32x128xf32>, vector<2x128xf32> -> vector<2x128xf32>
    %245 = arith.addf %243, %244 : vector<2x128xf32>
    %246 = arith.negf %245 : vector<2x128xf32>
    %247 = math.exp %246 : vector<2x128xf32>
    %cst_66 = arith.constant 1.000000e+00 : f32
    %248 = vector.broadcast %cst_66 : f32 to vector<2x128xf32>
    %249 = arith.addf %248, %247 : vector<2x128xf32>
    %250 = arith.divf %248, %249 : vector<2x128xf32>
    %251 = vector.extract_strided_slice %250 {offsets = [0, 0], sizes = [2, 32], strides = [1, 1]} : vector<2x128xf32> to vector<2x32xf32>
    %252 = vector.extract_strided_slice %250 {offsets = [0, 32], sizes = [2, 32], strides = [1, 1]} : vector<2x128xf32> to vector<2x32xf32>
    %253 = vector.extract_strided_slice %250 {offsets = [0, 96], sizes = [2, 32], strides = [1, 1]} : vector<2x128xf32> to vector<2x32xf32>
    %254 = vector.extract_strided_slice %245 {offsets = [0, 64], sizes = [2, 32], strides = [1, 1]} : vector<2x128xf32> to vector<2x32xf32>
    %255 = math.tanh %254 : vector<2x32xf32>
    %256 = arith.mulf %252, %236 : vector<2x32xf32>
    %257 = arith.mulf %251, %255 : vector<2x32xf32>
    %258 = arith.addf %256, %257 : vector<2x32xf32>
    %259 = math.tanh %258 : vector<2x32xf32>
    %260 = arith.mulf %253, %259 : vector<2x32xf32>
    %c0_67 = arith.constant 0 : index
    %c2_68 = arith.constant 2 : index
    %c0_69 = arith.constant 0 : index
    %261 = vector.load %arg12[%c0_67, %c2_68, %c0_69] : memref<2x8x32xf32, #tpu.memory_space<vmem>>, vector<2x1x32xf32>
    %262 = vector.shape_cast %261 : vector<2x1x32xf32> to vector<2x32xf32>
    %263 = vector.shape_cast %260 : vector<2x32xf32> to vector<2x1x32xf32>
    tpu.vector_store %arg12[%c0_67, %c2_68, %c0_69], %263 {strides = array<i32>} : memref<2x8x32xf32, #tpu.memory_space<vmem>>, vector<2x1x32xf32>,
    %264 = vector.extract_strided_slice %195 {offsets = [0, 3, 0], sizes = [2, 1, 128], strides = [1, 1, 1]} : vector<2x8x128xf32> to vector<2x1x128xf32>
    %265 = vector.shape_cast %264 : vector<2x1x128xf32> to vector<2x128xf32>
    %cst_70 = arith.constant dense<0.000000e+00> : vector<2x128xf32>
    %266 = tpu.matmul %260, %190, %cst_70 {dimension_numbers = #tpu.dot_dimension_numbers<[1], [0], [0], [1], [0, 0, 1, 1], [], []>} : vector<2x32xf32>, vector<32x128xf32>, vector<2x128xf32> -> vector<2x128xf32>
    %267 = arith.addf %265, %266 : vector<2x128xf32>
    %268 = arith.negf %267 : vector<2x128xf32>
    %269 = math.exp %268 : vector<2x128xf32>
    %cst_71 = arith.constant 1.000000e+00 : f32
    %270 = vector.broadcast %cst_71 : f32 to vector<2x128xf32>
    %271 = arith.addf %270, %269 : vector<2x128xf32>
    %272 = arith.divf %270, %271 : vector<2x128xf32>
    %273 = vector.extract_strided_slice %272 {offsets = [0, 0], sizes = [2, 32], strides = [1, 1]} : vector<2x128xf32> to vector<2x32xf32>
    %274 = vector.extract_strided_slice %272 {offsets = [0, 32], sizes = [2, 32], strides = [1, 1]} : vector<2x128xf32> to vector<2x32xf32>
    %275 = vector.extract_strided_slice %272 {offsets = [0, 96], sizes = [2, 32], strides = [1, 1]} : vector<2x128xf32> to vector<2x32xf32>
    %276 = vector.extract_strided_slice %267 {offsets = [0, 64], sizes = [2, 32], strides = [1, 1]} : vector<2x128xf32> to vector<2x32xf32>
    %277 = math.tanh %276 : vector<2x32xf32>
    %278 = arith.mulf %274, %258 : vector<2x32xf32>
    %279 = arith.mulf %273, %277 : vector<2x32xf32>
    %280 = arith.addf %278, %279 : vector<2x32xf32>
    %281 = math.tanh %280 : vector<2x32xf32>
    %282 = arith.mulf %275, %281 : vector<2x32xf32>
    %c0_72 = arith.constant 0 : index
    %c3_73 = arith.constant 3 : index
    %c0_74 = arith.constant 0 : index
    %283 = vector.load %arg12[%c0_72, %c3_73, %c0_74] : memref<2x8x32xf32, #tpu.memory_space<vmem>>, vector<2x1x32xf32>
    %284 = vector.shape_cast %283 : vector<2x1x32xf32> to vector<2x32xf32>
    %285 = vector.shape_cast %282 : vector<2x32xf32> to vector<2x1x32xf32>
    tpu.vector_store %arg12[%c0_72, %c3_73, %c0_74], %285 {strides = array<i32>} : memref<2x8x32xf32, #tpu.memory_space<vmem>>, vector<2x1x32xf32>,
    %286 = vector.extract_strided_slice %195 {offsets = [0, 4, 0], sizes = [2, 1, 128], strides = [1, 1, 1]} : vector<2x8x128xf32> to vector<2x1x128xf32>
    %287 = vector.shape_cast %286 : vector<2x1x128xf32> to vector<2x128xf32>
    %cst_75 = arith.constant dense<0.000000e+00> : vector<2x128xf32>
    %288 = tpu.matmul %282, %190, %cst_75 {dimension_numbers = #tpu.dot_dimension_numbers<[1], [0], [0], [1], [0, 0, 1, 1], [], []>} : vector<2x32xf32>, vector<32x128xf32>, vector<2x128xf32> -> vector<2x128xf32>
    %289 = arith.addf %287, %288 : vector<2x128xf32>
    %290 = arith.negf %289 : vector<2x128xf32>
    %291 = math.exp %290 : vector<2x128xf32>
    %cst_76 = arith.constant 1.000000e+00 : f32
    %292 = vector.broadcast %cst_76 : f32 to vector<2x128xf32>
    %293 = arith.addf %292, %291 : vector<2x128xf32>
    %294 = arith.divf %292, %293 : vector<2x128xf32>
    %295 = vector.extract_strided_slice %294 {offsets = [0, 0], sizes = [2, 32], strides = [1, 1]} : vector<2x128xf32> to vector<2x32xf32>
    %296 = vector.extract_strided_slice %294 {offsets = [0, 32], sizes = [2, 32], strides = [1, 1]} : vector<2x128xf32> to vector<2x32xf32>
    %297 = vector.extract_strided_slice %294 {offsets = [0, 96], sizes = [2, 32], strides = [1, 1]} : vector<2x128xf32> to vector<2x32xf32>
    %298 = vector.extract_strided_slice %289 {offsets = [0, 64], sizes = [2, 32], strides = [1, 1]} : vector<2x128xf32> to vector<2x32xf32>
    %299 = math.tanh %298 : vector<2x32xf32>
    %300 = arith.mulf %296, %280 : vector<2x32xf32>
    %301 = arith.mulf %295, %299 : vector<2x32xf32>
    %302 = arith.addf %300, %301 : vector<2x32xf32>
    %303 = math.tanh %302 : vector<2x32xf32>
    %304 = arith.mulf %297, %303 : vector<2x32xf32>
    %c0_77 = arith.constant 0 : index
    %c4_78 = arith.constant 4 : index
    %c0_79 = arith.constant 0 : index
    %305 = vector.load %arg12[%c0_77, %c4_78, %c0_79] : memref<2x8x32xf32, #tpu.memory_space<vmem>>, vector<2x1x32xf32>
    %306 = vector.shape_cast %305 : vector<2x1x32xf32> to vector<2x32xf32>
    %307 = vector.shape_cast %304 : vector<2x32xf32> to vector<2x1x32xf32>
    tpu.vector_store %arg12[%c0_77, %c4_78, %c0_79], %307 {strides = array<i32>} : memref<2x8x32xf32, #tpu.memory_space<vmem>>, vector<2x1x32xf32>,
    %308 = vector.extract_strided_slice %195 {offsets = [0, 5, 0], sizes = [2, 1, 128], strides = [1, 1, 1]} : vector<2x8x128xf32> to vector<2x1x128xf32>
    %309 = vector.shape_cast %308 : vector<2x1x128xf32> to vector<2x128xf32>
    %cst_80 = arith.constant dense<0.000000e+00> : vector<2x128xf32>
    %310 = tpu.matmul %304, %190, %cst_80 {dimension_numbers = #tpu.dot_dimension_numbers<[1], [0], [0], [1], [0, 0, 1, 1], [], []>} : vector<2x32xf32>, vector<32x128xf32>, vector<2x128xf32> -> vector<2x128xf32>
    %311 = arith.addf %309, %310 : vector<2x128xf32>
    %312 = arith.negf %311 : vector<2x128xf32>
    %313 = math.exp %312 : vector<2x128xf32>
    %cst_81 = arith.constant 1.000000e+00 : f32
    %314 = vector.broadcast %cst_81 : f32 to vector<2x128xf32>
    %315 = arith.addf %314, %313 : vector<2x128xf32>
    %316 = arith.divf %314, %315 : vector<2x128xf32>
    %317 = vector.extract_strided_slice %316 {offsets = [0, 0], sizes = [2, 32], strides = [1, 1]} : vector<2x128xf32> to vector<2x32xf32>
    %318 = vector.extract_strided_slice %316 {offsets = [0, 32], sizes = [2, 32], strides = [1, 1]} : vector<2x128xf32> to vector<2x32xf32>
    %319 = vector.extract_strided_slice %316 {offsets = [0, 96], sizes = [2, 32], strides = [1, 1]} : vector<2x128xf32> to vector<2x32xf32>
    %320 = vector.extract_strided_slice %311 {offsets = [0, 64], sizes = [2, 32], strides = [1, 1]} : vector<2x128xf32> to vector<2x32xf32>
    %321 = math.tanh %320 : vector<2x32xf32>
    %322 = arith.mulf %318, %302 : vector<2x32xf32>
    %323 = arith.mulf %317, %321 : vector<2x32xf32>
    %324 = arith.addf %322, %323 : vector<2x32xf32>
    %325 = math.tanh %324 : vector<2x32xf32>
    %326 = arith.mulf %319, %325 : vector<2x32xf32>
    %c0_82 = arith.constant 0 : index
    %c5_83 = arith.constant 5 : index
    %c0_84 = arith.constant 0 : index
    %327 = vector.load %arg12[%c0_82, %c5_83, %c0_84] : memref<2x8x32xf32, #tpu.memory_space<vmem>>, vector<2x1x32xf32>
    %328 = vector.shape_cast %327 : vector<2x1x32xf32> to vector<2x32xf32>
    %329 = vector.shape_cast %326 : vector<2x32xf32> to vector<2x1x32xf32>
    tpu.vector_store %arg12[%c0_82, %c5_83, %c0_84], %329 {strides = array<i32>} : memref<2x8x32xf32, #tpu.memory_space<vmem>>, vector<2x1x32xf32>,
    %330 = vector.extract_strided_slice %195 {offsets = [0, 6, 0], sizes = [2, 1, 128], strides = [1, 1, 1]} : vector<2x8x128xf32> to vector<2x1x128xf32>
    %331 = vector.shape_cast %330 : vector<2x1x128xf32> to vector<2x128xf32>
    %cst_85 = arith.constant dense<0.000000e+00> : vector<2x128xf32>
    %332 = tpu.matmul %326, %190, %cst_85 {dimension_numbers = #tpu.dot_dimension_numbers<[1], [0], [0], [1], [0, 0, 1, 1], [], []>} : vector<2x32xf32>, vector<32x128xf32>, vector<2x128xf32> -> vector<2x128xf32>
    %333 = arith.addf %331, %332 : vector<2x128xf32>
    %334 = arith.negf %333 : vector<2x128xf32>
    %335 = math.exp %334 : vector<2x128xf32>
    %cst_86 = arith.constant 1.000000e+00 : f32
    %336 = vector.broadcast %cst_86 : f32 to vector<2x128xf32>
    %337 = arith.addf %336, %335 : vector<2x128xf32>
    %338 = arith.divf %336, %337 : vector<2x128xf32>
    %339 = vector.extract_strided_slice %338 {offsets = [0, 0], sizes = [2, 32], strides = [1, 1]} : vector<2x128xf32> to vector<2x32xf32>
    %340 = vector.extract_strided_slice %338 {offsets = [0, 32], sizes = [2, 32], strides = [1, 1]} : vector<2x128xf32> to vector<2x32xf32>
    %341 = vector.extract_strided_slice %338 {offsets = [0, 96], sizes = [2, 32], strides = [1, 1]} : vector<2x128xf32> to vector<2x32xf32>
    %342 = vector.extract_strided_slice %333 {offsets = [0, 64], sizes = [2, 32], strides = [1, 1]} : vector<2x128xf32> to vector<2x32xf32>
    %343 = math.tanh %342 : vector<2x32xf32>
    %344 = arith.mulf %340, %324 : vector<2x32xf32>
    %345 = arith.mulf %339, %343 : vector<2x32xf32>
    %346 = arith.addf %344, %345 : vector<2x32xf32>
    %347 = math.tanh %346 : vector<2x32xf32>
    %348 = arith.mulf %341, %347 : vector<2x32xf32>
    %c0_87 = arith.constant 0 : index
    %c6_88 = arith.constant 6 : index
    %c0_89 = arith.constant 0 : index
    %349 = vector.load %arg12[%c0_87, %c6_88, %c0_89] : memref<2x8x32xf32, #tpu.memory_space<vmem>>, vector<2x1x32xf32>
    %350 = vector.shape_cast %349 : vector<2x1x32xf32> to vector<2x32xf32>
    %351 = vector.shape_cast %348 : vector<2x32xf32> to vector<2x1x32xf32>
    tpu.vector_store %arg12[%c0_87, %c6_88, %c0_89], %351 {strides = array<i32>} : memref<2x8x32xf32, #tpu.memory_space<vmem>>, vector<2x1x32xf32>,
    %352 = vector.extract_strided_slice %195 {offsets = [0, 7, 0], sizes = [2, 1, 128], strides = [1, 1, 1]} : vector<2x8x128xf32> to vector<2x1x128xf32>
    %353 = vector.shape_cast %352 : vector<2x1x128xf32> to vector<2x128xf32>
    %cst_90 = arith.constant dense<0.000000e+00> : vector<2x128xf32>
    %354 = tpu.matmul %348, %190, %cst_90 {dimension_numbers = #tpu.dot_dimension_numbers<[1], [0], [0], [1], [0, 0, 1, 1], [], []>} : vector<2x32xf32>, vector<32x128xf32>, vector<2x128xf32> -> vector<2x128xf32>
    %355 = arith.addf %353, %354 : vector<2x128xf32>
    %356 = arith.negf %355 : vector<2x128xf32>
    %357 = math.exp %356 : vector<2x128xf32>
    %cst_91 = arith.constant 1.000000e+00 : f32
    %358 = vector.broadcast %cst_91 : f32 to vector<2x128xf32>
    %359 = arith.addf %358, %357 : vector<2x128xf32>
    %360 = arith.divf %358, %359 : vector<2x128xf32>
    %361 = vector.extract_strided_slice %360 {offsets = [0, 0], sizes = [2, 32], strides = [1, 1]} : vector<2x128xf32> to vector<2x32xf32>
    %362 = vector.extract_strided_slice %360 {offsets = [0, 32], sizes = [2, 32], strides = [1, 1]} : vector<2x128xf32> to vector<2x32xf32>
    %363 = vector.extract_strided_slice %360 {offsets = [0, 96], sizes = [2, 32], strides = [1, 1]} : vector<2x128xf32> to vector<2x32xf32>
    %364 = vector.extract_strided_slice %355 {offsets = [0, 64], sizes = [2, 32], strides = [1, 1]} : vector<2x128xf32> to vector<2x32xf32>
    %365 = math.tanh %364 : vector<2x32xf32>
    %366 = arith.mulf %362, %346 : vector<2x32xf32>
    %367 = arith.mulf %361, %365 : vector<2x32xf32>
    %368 = arith.addf %366, %367 : vector<2x32xf32>
    %369 = math.tanh %368 : vector<2x32xf32>
    %370 = arith.mulf %363, %369 : vector<2x32xf32>
    %c0_92 = arith.constant 0 : index
    %c7_93 = arith.constant 7 : index
    %c0_94 = arith.constant 0 : index
    %371 = vector.load %arg12[%c0_92, %c7_93, %c0_94] : memref<2x8x32xf32, #tpu.memory_space<vmem>>, vector<2x1x32xf32>
    %372 = vector.shape_cast %371 : vector<2x1x32xf32> to vector<2x32xf32>
    %373 = vector.shape_cast %370 : vector<2x32xf32> to vector<2x1x32xf32>
    tpu.vector_store %arg12[%c0_92, %c7_93, %c0_94], %373 {strides = array<i32>} : memref<2x8x32xf32, #tpu.memory_space<vmem>>, vector<2x1x32xf32>,
    %c0_95 = arith.constant 0 : index
    %c0_96 = arith.constant 0 : index
    %c0_97 = arith.constant 0 : index
    %374 = vector.load %arg12[%c0_95, %c0_96, %c0_97] : memref<2x8x32xf32, #tpu.memory_space<vmem>>, vector<2x8x32xf32>
    %375 = vector.shape_cast %374 : vector<2x8x32xf32> to vector<16x32xf32>
    %c0_98 = arith.constant 0 : index
    %c0_99 = arith.constant 0 : index
    %376 = vector.load %arg8[%c0_98, %c0_99] : memref<32x16xf32, #tpu.memory_space<vmem>>, vector<32x16xf32>
    %cst_100 = arith.constant dense<0.000000e+00> : vector<16x16xf32>
    %377 = tpu.matmul %375, %376, %cst_100 {dimension_numbers = #tpu.dot_dimension_numbers<[1], [0], [0], [1], [0, 0, 1, 1], [], []>} : vector<16x32xf32>, vector<32x16xf32>, vector<16x16xf32> -> vector<16x16xf32>
    %c0_101 = arith.constant 0 : index
    %c0_102 = arith.constant 0 : index
    %378 = vector.load %arg9[%c0_101, %c0_102] : memref<1x16xf32, #tpu.memory_space<vmem>>, vector<1x16xf32>
    %379 = vector.broadcast %378 : vector<1x16xf32> to vector<16x16xf32>
    %380 = arith.addf %377, %379 : vector<16x16xf32>
    %381 = vector.shape_cast %380 : vector<16x16xf32> to vector<2x8x16xf32>
    %c0_103 = arith.constant 0 : index
    %c0_104 = arith.constant 0 : index
    %c0_105 = arith.constant 0 : index
    %382 = vector.load %arg10[%c0_103, %c0_104, %c0_105] : memref<2x8x16xf32, #tpu.memory_space<vmem>>, vector<2x8x16xf32>
    tpu.vector_store %arg10[%c0_103, %c0_104, %c0_105], %381 {strides = array<i32>} : memref<2x8x16xf32, #tpu.memory_space<vmem>>, vector<2x8x16xf32>,
    return
  }
  func.func @transform_0(%arg0: i32) -> (i32, i32, i32) {
    %c0_i32 = arith.constant 0 : i32
    %c0_i32_0 = arith.constant 0 : i32
    %c0_i32_1 = arith.constant 0 : i32
    %c0_i32_2 = arith.constant 0 : i32
    return %c0_i32, %c0_i32_0, %c0_i32_1 : i32, i32, i32
  }
  func.func @transform_1(%arg0: i32) -> (i32, i32) {
    %c0_i32 = arith.constant 0 : i32
    %c0_i32_0 = arith.constant 0 : i32
    %c0_i32_1 = arith.constant 0 : i32
    return %c0_i32, %c0_i32_0 : i32, i32
  }
  func.func @transform_2(%arg0: i32) -> (i32, i32) {
    %c0_i32 = arith.constant 0 : i32
    %c0_i32_0 = arith.constant 0 : i32
    %c0_i32_1 = arith.constant 0 : i32
    return %c0_i32, %c0_i32_0 : i32, i32
  }
  func.func @transform_3(%arg0: i32) -> (i32, i32) {
    %c0_i32 = arith.constant 0 : i32
    %c0_i32_0 = arith.constant 0 : i32
    %c0_i32_1 = arith.constant 0 : i32
    return %c0_i32, %c0_i32_0 : i32, i32
  }
  func.func @transform_4(%arg0: i32) -> (i32, i32) {
    %c0_i32 = arith.constant 0 : i32
    %c0_i32_0 = arith.constant 0 : i32
    %c0_i32_1 = arith.constant 0 : i32
    return %c0_i32, %c0_i32_0 : i32, i32
  }
  func.func @transform_5(%arg0: i32) -> (i32, i32) {
    %c0_i32 = arith.constant 0 : i32
    %c0_i32_0 = arith.constant 0 : i32
    %c0_i32_1 = arith.constant 0 : i32
    return %c0_i32, %c0_i32_0 : i32, i32
  }
  func.func @transform_6(%arg0: i32) -> (i32, i32) {
    %c0_i32 = arith.constant 0 : i32
    %c0_i32_0 = arith.constant 0 : i32
    %c0_i32_1 = arith.constant 0 : i32
    return %c0_i32, %c0_i32_0 : i32, i32
  }
  func.func @transform_7(%arg0: i32) -> (i32, i32) {
    %c0_i32 = arith.constant 0 : i32
    %c0_i32_0 = arith.constant 0 : i32
    %c0_i32_1 = arith.constant 0 : i32
    return %c0_i32, %c0_i32_0 : i32, i32
  }
  func.func @transform_8(%arg0: i32) -> (i32, i32) {
    %c0_i32 = arith.constant 0 : i32
    %c0_i32_0 = arith.constant 0 : i32
    %c0_i32_1 = arith.constant 0 : i32
    return %c0_i32, %c0_i32_0 : i32, i32
  }
  func.func @transform_9(%arg0: i32) -> (i32, i32, i32) {
    %c0_i32 = arith.constant 0 : i32
    %c0_i32_0 = arith.constant 0 : i32
    %c0_i32_1 = arith.constant 0 : i32
    %c0_i32_2 = arith.constant 0 : i32
    return %c0_i32, %c0_i32_0, %c0_i32_1 : i32, i32, i32
  }
}

</mosaic_0001>

<llo_original>
// kernel: tpu_custom_call.1
$region0: #{tpu_custom_call.1}
  #allocation0 [shape = 'u32[]', space=smem, size = 0x4, offset = 0x4, fixed_abs, tag = 'smem constant byte address 0x4 - core index']
  #allocation1 [shape = 'u32[144,128]{1,0:T(1,128)}', space=vmem, size = 0x12000, scoped, tag = 'internal scratch']
  #allocation2 [shape = 'f32[2,8,32]{2,1,0:T(8,128)}', space=vmem, size = 0x2000, scoped, tag = 'scratch operand']
  #allocation3 [shape = 'f32[2,8,32]{2,1,0:T(8,128)}', space=vmem, size = 0x2000, scoped, tag = 'scratch operand']
  %s0 = inlined_call_operand.hbm [shape: f32[2,8,16], index: 0, kind: input, shape index: {}]
  %s1 = inlined_call_operand.hbm [shape: f32[16,128], index: 1, kind: input, shape index: {}]
  %s2 = inlined_call_operand.vmem [shape: f32[32,128], index: 2, kind: input, shape index: {}]
  %s3 = inlined_call_operand.vmem [shape: f32[1,128], index: 3, kind: input, shape index: {}]
  %s4 = inlined_call_operand.hbm [shape: f32[32,128], index: 4, kind: input, shape index: {}]
  %s5 = inlined_call_operand.vmem [shape: f32[32,128], index: 5, kind: input, shape index: {}]
  %s6 = inlined_call_operand.vmem [shape: f32[1,128], index: 6, kind: input, shape index: {}]
  %s7 = inlined_call_operand.vmem [shape: f32[32,16], index: 7, kind: input, shape index: {}]
  %s8 = inlined_call_operand.vmem [shape: f32[1,16], index: 8, kind: input, shape index: {}]
  %s9 = inlined_call_operand.hbm [shape: f32[2,8,16], index: 9, kind: output, shape index: {}]
  %s10 = sld [smem:[#allocation0]]
  $region58: #{tpu_custom_call.1} parent=0
    _
  %s12 = ssub.s32 1, %s10
  %s13 = scalar_select 0, %s12, %s10
  $region1: #{tpu_custom_call.1} parent=0
    #allocation4 [shape = 'u8[8192]{0}', space=vmem, size = 0x2000, scoped, tag = 'input window, operand 0, single buffered']
    #allocation5 [shape = 's32[1]{0}', space=sflag, size = 0x4, scoped, tag = 'scoped memory for tpu_custom_call.1']
    #allocation6 [shape = 's32[1]{0}', space=sflag, size = 0x4, scoped, tag = 'scoped memory for tpu_custom_call.1']
    #allocation7 [shape = 'u8[8192]{0}', space=vmem, size = 0x2000, scoped, tag = 'input window, operand 1, single buffered']
    #allocation8 [shape = 's32[1]{0}', space=sflag, size = 0x4, scoped, tag = 'scoped memory for tpu_custom_call.1']
    #allocation9 [shape = 'u8[16384]{0}', space=vmem, size = 0x4000, scoped, tag = 'input window, operand 4, single buffered']
    #allocation10 [shape = 'u8[8192]{0}', space=vmem, size = 0x2000, scoped, tag = 'output window, operand 0, single buffered']
    %14 = vsyncpa [#allocation5], 0
    %15 = vsyncpa [#allocation8], 0
    %16 = vsyncpa [#allocation6], 0
    // Predicated region
    $region2: #{tpu_custom_call.1} parent=1 // pred_check
      _
    $region3: #{tpu_custom_call.1} parent=1 // pred_check_branch
      %18 = sbr.rel (0) target = $region5
    $region4: #{tpu_custom_call.1} parent=1 // pred_region
      %s20 = ssub.s32 256, 256
      %21 = vsyncadd [#allocation5], %s20
      %s22 = sshll.u32 [#allocation4], 4
      %s23 = int_to_ptr.vmem [resolvable:$true] %s22
      %28 = dma.hbm_to_vmem [thread:$0]  %s0, 256, %s23, [#allocation5], 128, 128, 8
    $region5: #{tpu_custom_call.1} parent=1 // pred_fallthru
      _
    // Predicated region
    $region6: #{tpu_custom_call.1} parent=1 // pred_check
      _
    $region7: #{tpu_custom_call.1} parent=1 // pred_check_branch
      %30 = sbr.rel (0) target = $region9
    $region8: #{tpu_custom_call.1} parent=1 // pred_region
      %s32 = ssub.s32 256, 256
      %33 = vsyncadd [#allocation8], %s32
      %s34 = sshll.u32 [#allocation7], 4
      %s35 = int_to_ptr.vmem [resolvable:$true] %s34
      %40 = dma.hbm_to_vmem [thread:$0]  %s1, 256, %s35, [#allocation8], 128, 128, 8
    $region9: #{tpu_custom_call.1} parent=1 // pred_fallthru
      _
    // Predicated region
    $region10: #{tpu_custom_call.1} parent=1 // pred_check
      _
    $region11: #{tpu_custom_call.1} parent=1 // pred_check_branch
      %42 = sbr.rel (0) target = $region13
    $region12: #{tpu_custom_call.1} parent=1 // pred_region
      _
    $region13: #{tpu_custom_call.1} parent=1 // pred_fallthru
      _
    // Predicated region
    $region14: #{tpu_custom_call.1} parent=1 // pred_check
      _
    $region15: #{tpu_custom_call.1} parent=1 // pred_check_branch
      %44 = sbr.rel (0) target = $region17
    $region16: #{tpu_custom_call.1} parent=1 // pred_region
      _
    $region17: #{tpu_custom_call.1} parent=1 // pred_fallthru
      _
    // Predicated region
    $region18: #{tpu_custom_call.1} parent=1 // pred_check
      _
    $region19: #{tpu_custom_call.1} parent=1 // pred_check_branch
      %46 = sbr.rel (0) target = $region21
    $region20: #{tpu_custom_call.1} parent=1 // pred_region
      %s48 = ssub.s32 512, 512
      %49 = vsyncadd [#allocation8], %s48
      %s50 = sshll.u32 [#allocation9], 4
      %s51 = int_to_ptr.vmem [resolvable:$true] %s50
      %56 = dma.hbm_to_vmem [thread:$0]  %s4, 512, %s51, [#allocation8], 128, 128, 8
    $region21: #{tpu_custom_call.1} parent=1 // pred_fallthru
      _
    // Predicated region
    $region22: #{tpu_custom_call.1} parent=1 // pred_check
      _
    $region23: #{tpu_custom_call.1} parent=1 // pred_check_branch
      %58 = sbr.rel (0) target = $region25
    $region24: #{tpu_custom_call.1} parent=1 // pred_region
      _
    $region25: #{tpu_custom_call.1} parent=1 // pred_fallthru
      _
    // Predicated region
    $region26: #{tpu_custom_call.1} parent=1 // pred_check
      _
    $region27: #{tpu_custom_call.1} parent=1 // pred_check_branch
      %60 = sbr.rel (0) target = $region29
    $region28: #{tpu_custom_call.1} parent=1 // pred_region
      _
    $region29: #{tpu_custom_call.1} parent=1 // pred_fallthru
      _
    // Predicated region
    $region30: #{tpu_custom_call.1} parent=1 // pred_check
      _
    $region31: #{tpu_custom_call.1} parent=1 // pred_check_branch
      %62 = sbr.rel (0) target = $region33
    $region32: #{tpu_custom_call.1} parent=1 // pred_region
      _
    $region33: #{tpu_custom_call.1} parent=1 // pred_fallthru
      _
    // Predicated region
    $region34: #{tpu_custom_call.1} parent=1 // pred_check
      _
    $region35: #{tpu_custom_call.1} parent=1 // pred_check_branch
      %64 = sbr.rel (0) target = $region37
    $region36: #{tpu_custom_call.1} parent=1 // pred_region
      _
    $region37: #{tpu_custom_call.1} parent=1 // pred_fallthru
      _
    // Predicated region
    $region38: #{tpu_custom_call.1} parent=1 // pred_check
      _
    $region39: #{tpu_custom_call.1} parent=1 // pred_check_branch
      %66 = sbr.rel (0) target = $region41
    $region40: #{tpu_custom_call.1} parent=1 // pred_region
      %67 = dma.done [#allocation5], 256
    $region41: #{tpu_custom_call.1} parent=1 // pred_fallthru
      _
    // Predicated region
    $region42: #{tpu_custom_call.1} parent=1 // pred_check
      _
    $region43: #{tpu_custom_call.1} parent=1 // pred_check_branch
      %69 = sbr.rel (0) target = $region45
    $region44: #{tpu_custom_call.1} parent=1 // pred_region
      %70 = dma.done [#allocation8], 256
    $region45: #{tpu_custom_call.1} parent=1 // pred_fallthru
      _
    // Predicated region
    $region46: #{tpu_custom_call.1} parent=1 // pred_check
      _
    $region47: #{tpu_custom_call.1} parent=1 // pred_check_branch
      %72 = sbr.rel (0) target = $region49
    $region48: #{tpu_custom_call.1} parent=1 // pred_region
      %73 = dma.done [#allocation8], 512
    $region49: #{tpu_custom_call.1} parent=1 // pred_fallthru
      _
    %v74 = vld [vmem:[#allocation4] sm:$0xff]
    %v75 = vld [vmem:[#allocation4 + $0x8] sm:$0xff]
    %v76 = vld [vmem:[#allocation7] sm:$0xff]
    %v77 = vld [vmem:[#allocation7 + $0x8] sm:$0xff]
    %v78 = vld [vmem:[%s2] sm:$0xff]
    %v79 = vld [vmem:[%s2 + $0x8] sm:$0xff]
    %v80 = vld [vmem:[%s2 + $0x10] sm:$0xff]
    %v81 = vld [vmem:[%s2 + $0x18] sm:$0xff]
    %v82 = vld [vmem:[%s3] sm:$0x1]
    %v84 = vlaneseq
    %v85 = vshrl.u32 %v84, 7
    %v86 = vsub.s32 0, %v85
    %v87 = vrot.slane %v82, %v86
    %vm89 = vcmask 130048
    %v91 = vsel %vm89, %v74, 0
    %v94 = vsel %vm89, %v75, 0
    %96 = vmatprep.subr.mxu0 0.0
    %97 = vmatpush1.msra.mxu0 %v76
    %98 = vmatprep.subr.mxu0 0.0
    %99 = vmatpush1.msra.mxu0 %v77
    %100 = vmatprep.subr.mxu0 0.0
    %101 = vmatpush1.msra.mxu0 0.0
    %102 = vmatprep.subr.mxu0 0.0
    %103 = vmatpush1.msra.mxu0 0.0
    %104 = vmatprep.subr.mxu0 0.0
    %105 = vmatpush1.msra.mxu0 0.0
    %106 = vmatprep.subr.mxu0 0.0
    %107 = vmatpush1.msra.mxu0 0.0
    %108 = vmatprep.subr.mxu0 0.0
    %109 = vmatpush1.msra.mxu0 0.0
    %110 = vmatprep.subr.mxu0 0.0
    %111 = vmatpush1.msra.mxu0 0.0
    %112 = vmatprep.subr.mxu0 0.0
    %113 = vmatpush1.msra.mxu0 0.0
    %114 = vmatprep.subr.mxu0 0.0
    %115 = vmatpush1.msra.mxu0 0.0
    %116 = vmatprep.subr.mxu0 0.0
    %117 = vmatpush1.msra.mxu0 0.0
    %118 = vmatprep.subr.mxu0 0.0
    %119 = vmatpush1.msra.mxu0 0.0
    %120 = vmatprep.subr.mxu0 0.0
    %121 = vmatpush1.msra.mxu0 0.0
    %122 = vmatprep.subr.mxu0 0.0
    %123 = vmatpush1.msra.mxu0 0.0
    %124 = vmatprep.subr.mxu0 0.0
    %125 = vmatpush1.msra.mxu0 0.0
    %126 = vmatprep.subr.mxu0 0.0
    %127 = vmatpush1.msra.mxu0 0.0
    %128 = vmatprep.subr.mxu0 0.0
    %129 = vmatpush1.msra.mxu0 0.0
    %130 = vmatprep.subr.mxu0 0.0
    %131 = vmatpush1.msra.mxu0 0.0
    %132 = vmatprep.subr.mxu0 0.0
    %133 = vmatpush1.msra.mxu0 0.0
    %134 = vmatprep.subr.mxu0 0.0
    %135 = vmatpush1.msra.mxu0 0.0
    %136 = vmatprep.subr.mxu0 0.0
    %137 = vmatpush1.msra.mxu0 0.0
    %138 = vmatprep.subr.mxu0 0.0
    %139 = vmatpush1.msra.mxu0 0.0
    %140 = vmatprep.subr.mxu0 0.0
    %141 = vmatpush1.msra.mxu0 0.0
    %142 = vmatprep.subr.mxu0 0.0
    %143 = vmatpush1.msra.mxu0 0.0
    %144 = vmatprep.subr.mxu0 0.0
    %145 = vmatpush1.msra.mxu0 0.0
    %146 = vmatprep.subr.mxu0 0.0
    %147 = vmatpush1.msra.mxu0 0.0
    %148 = vmatprep.subr.mxu0 0.0
    %149 = vmatpush1.msra.mxu0 0.0
    %150 = vmatprep.subr.mxu0 0.0
    %151 = vmatpush1.msra.mxu0 0.0
    %152 = vmatprep.subr.mxu0 0.0
    %153 = vmatpush1.msra.mxu0 0.0
    %154 = vmatprep.subr.mxu0 0.0
    %155 = vmatpush1.msra.mxu0 0.0
    %156 = vmatprep.subr.mxu0 0.0
    %157 = vmatpush1.msra.mxu0 0.0
    %158 = vmatprep.subr.mxu0 0.0
    %159 = vmatpush1.msra.mxu0 0.0
    %160 = vmatprep.mubr.f32.mxu0 0.0
    %161 = vmatmul.mubr.f32.gmra.mrb[0].mxu0 %v91
    %v162 = vpop.f32.mrb[0].mxu0
    %v163 = vadd.f32 %v87, %v162
    %v164 = vpop.f32.mrb[0].mxu0
    %165 = vmatprep.mubr.f32.mxu0 0.0
    %166 = vmatmul.mubr.f32.gmra.mrb[0].mxu0 %v94
    %v167 = vpop.f32.mrb[0].mxu0
    %v168 = vadd.f32 %v87, %v167
    %v169 = vpop.f32.mrb[0].mxu0
    %170 = vdwg.mxu0
    %vm171 = vcmask 261120
    %v173 = vsel %vm171, 0.0, 0
    %175 = vmatprep.subr.mxu0 0.0
    %176 = vmatpush1.msra.mxu0 %v78
    %177 = vmatprep.subr.mxu0 0.0
    %178 = vmatpush1.msra.mxu0 %v79
    %179 = vmatprep.subr.mxu0 0.0
    %180 = vmatpush1.msra.mxu0 %v80
    %181 = vmatprep.subr.mxu0 0.0
    %182 = vmatpush1.msra.mxu0 %v81
    %183 = vmatprep.subr.mxu0 0.0
    %184 = vmatpush1.msra.mxu0 0.0
    %185 = vmatprep.subr.mxu0 0.0
    %186 = vmatpush1.msra.mxu0 0.0
    %187 = vmatprep.subr.mxu0 0.0
    %188 = vmatpush1.msra.mxu0 0.0
    %189 = vmatprep.subr.mxu0 0.0
    %190 = vmatpush1.msra.mxu0 0.0
    %191 = vmatprep.subr.mxu0 0.0
    %192 = vmatpush1.msra.mxu0 0.0
    %193 = vmatprep.subr.mxu0 0.0
    %194 = vmatpush1.msra.mxu0 0.0
    %195 = vmatprep.subr.mxu0 0.0
    %196 = vmatpush1.msra.mxu0 0.0
    %197 = vmatprep.subr.mxu0 0.0
    %198 = vmatpush1.msra.mxu0 0.0
    %199 = vmatprep.subr.mxu0 0.0
    %200 = vmatpush1.msra.mxu0 0.0
    %201 = vmatprep.subr.mxu0 0.0
    %202 = vmatpush1.msra.mxu0 0.0
    %203 = vmatprep.subr.mxu0 0.0
    %204 = vmatpush1.msra.mxu0 0.0
    %205 = vmatprep.subr.mxu0 0.0
    %206 = vmatpush1.msra.mxu0 0.0
    %207 = vmatprep.subr.mxu0 0.0
    %208 = vmatpush1.msra.mxu0 0.0
    %209 = vmatprep.subr.mxu0 0.0
    %210 = vmatpush1.msra.mxu0 0.0
    %211 = vmatprep.subr.mxu0 0.0
    %212 = vmatpush1.msra.mxu0 0.0
    %213 = vmatprep.subr.mxu0 0.0
    %214 = vmatpush1.msra.mxu0 0.0
    %215 = vmatprep.subr.mxu0 0.0
    %216 = vmatpush1.msra.mxu0 0.0
    %217 = vmatprep.subr.mxu0 0.0
    %218 = vmatpush1.msra.mxu0 0.0
    %219 = vmatprep.subr.mxu0 0.0
    %220 = vmatpush1.msra.mxu0 0.0
    %221 = vmatprep.subr.mxu0 0.0
    %222 = vmatpush1.msra.mxu0 0.0
    %223 = vmatprep.subr.mxu0 0.0
    %224 = vmatpush1.msra.mxu0 0.0
    %225 = vmatprep.subr.mxu0 0.0
    %226 = vmatpush1.msra.mxu0 0.0
    %227 = vmatprep.subr.mxu0 0.0
    %228 = vmatpush1.msra.mxu0 0.0
    %229 = vmatprep.subr.mxu0 0.0
    %230 = vmatpush1.msra.mxu0 0.0
    %231 = vmatprep.subr.mxu0 0.0
    %232 = vmatpush1.msra.mxu0 0.0
    %233 = vmatprep.subr.mxu0 0.0
    %234 = vmatpush1.msra.mxu0 0.0
    %235 = vmatprep.subr.mxu0 0.0
    %236 = vmatpush1.msra.mxu0 0.0
    %237 = vmatprep.subr.mxu0 0.0
    %238 = vmatpush1.msra.mxu0 0.0
    %239 = vmatprep.mubr.f32.mxu0 0.0
    %240 = vmatmul.mubr.f32.gmra.mrb[0].mxu0 %v173
    %v241 = vpop.f32.mrb[0].mxu0
    %v242 = vadd.f32 0.0, %v241
    %v243 = vpop.f32.mrb[0].mxu0
    %244 = vdwg.mxu0
    %v246 = vrot.slane %v242, 1
    %v249 = vadd.f32 %v163, %v242
    %v250 = vadd.f32 %v168, %v246
    %v251 = vxor.u32 %v249, 2147483648
    %v252 = vxor.u32 %v250, 2147483648
    %v253 = vmul.f32 %v251, 1.442695
    %v254 = vpow.pop %v253
    %v255 = vmul.f32 %v252, 1.442695
    %v256 = vpow.pop %v255
    %v257 = vadd.f32 %v254, 1.0
    %v258 = vadd.f32 %v256, 1.0
    %v259 = vrcp.pop %v257
    %v260 = vmul.f32 1.0, %v259
    %v261 = vrcp.pop %v258
    %v262 = vmul.f32 1.0, %v261
    %v263 = vtanh.pop %v249
    %v264 = vtanh.pop %v250
    %v265 = vmul.f32 %v260, 0.0
    %v266 = vmul.f32 %v262, 0.0
    %269 = vrot.lane.b32.xlu0 %v263, 64
    %v270 = vpop.permute.xlu0 %269
    %271 = vrot.lane.b32.xlu0 %v264, 64
    %v272 = vpop.permute.xlu0 %271
    %v275 = vmul.f32 %v260, %v270
    %v276 = vmul.f32 %v262, %v272
    %279 = vrot.lane.b32.xlu0 %v275, 32
    %v280 = vpop.permute.xlu0 %279
    %281 = vrot.lane.b32.xlu0 %v276, 32
    %v282 = vpop.permute.xlu0 %281
    %v285 = vadd.f32 %v265, %v280
    %v286 = vadd.f32 %v266, %v282
    %v287 = vtanh.pop %v285
    %v288 = vtanh.pop %v286
    %291 = vrot.lane.b32.xlu0 %v287, 64
    %v292 = vpop.permute.xlu0 %291
    %293 = vrot.lane.b32.xlu0 %v288, 64
    %v294 = vpop.permute.xlu0 %293
    %v297 = vmul.f32 %v260, %v292
    %v298 = vmul.f32 %v262, %v294
    %301 = vrot.lane.b32.xlu0 %v297, 32
    %v302 = vpop.permute.xlu0 %301
    %303 = vrot.lane.b32.xlu0 %v298, 32
    %v304 = vpop.permute.xlu0 %303
    %vm307 = vcmask 253952
    %308 = vst.msk [vmem:[#allocation2] sm:$0x1] %vm307, %v302
    %309 = vst.msk [vmem:[#allocation2 + $0x8] sm:$0x1] %vm307, %v304
    %v310 = vrot.slane %v298, 7
    %vm311 = vcmask 1041409
    %v312 = vsel %vm311, %v310, %v297
    %313 = vrot.lane.b32.xlu0 %v312, 32
    %v314 = vpop.permute.xlu0 %313
    %v315 = vsel %vm171, %v314, 0
    %317 = vmatprep.subr.mxu0 0.0
    %318 = vmatpush1.msra.mxu0 %v78
    %319 = vmatprep.subr.mxu0 0.0
    %320 = vmatpush1.msra.mxu0 %v79
    %321 = vmatprep.subr.mxu0 0.0
    %322 = vmatpush1.msra.mxu0 %v80
    %323 = vmatprep.subr.mxu0 0.0
    %324 = vmatpush1.msra.mxu0 %v81
    %325 = vmatprep.subr.mxu0 0.0
    %326 = vmatpush1.msra.mxu0 0.0
    %327 = vmatprep.subr.mxu0 0.0
    %328 = vmatpush1.msra.mxu0 0.0
    %329 = vmatprep.subr.mxu0 0.0
    %330 = vmatpush1.msra.mxu0 0.0
    %331 = vmatprep.subr.mxu0 0.0
    %332 = vmatpush1.msra.mxu0 0.0
    %333 = vmatprep.subr.mxu0 0.0
    %334 = vmatpush1.msra.mxu0 0.0
    %335 = vmatprep.subr.mxu0 0.0
    %336 = vmatpush1.msra.mxu0 0.0
    %337 = vmatprep.subr.mxu0 0.0
    %338 = vmatpush1.msra.mxu0 0.0
    %339 = vmatprep.subr.mxu0 0.0
    %340 = vmatpush1.msra.mxu0 0.0
    %341 = vmatprep.subr.mxu0 0.0
    %342 = vmatpush1.msra.mxu0 0.0
    %343 = vmatprep.subr.mxu0 0.0
    %344 = vmatpush1.msra.mxu0 0.0
    %345 = vmatprep.subr.mxu0 0.0
    %346 = vmatpush1.msra.mxu0 0.0
    %347 = vmatprep.subr.mxu0 0.0
    %348 = vmatpush1.msra.mxu0 0.0
    %349 = vmatprep.subr.mxu0 0.0
    %350 = vmatpush1.msra.mxu0 0.0
    %351 = vmatprep.subr.mxu0 0.0
    %352 = vmatpush1.msra.mxu0 0.0
    %353 = vmatprep.subr.mxu0 0.0
    %354 = vmatpush1.msra.mxu0 0.0
    %355 = vmatprep.subr.mxu0 0.0
    %356 = vmatpush1.msra.mxu0 0.0
    %357 = vmatprep.subr.mxu0 0.0
    %358 = vmatpush1.msra.mxu0 0.0
    %359 = vmatprep.subr.mxu0 0.0
    %360 = vmatpush1.msra.mxu0 0.0
    %361 = vmatprep.subr.mxu0 0.0
    %362 = vmatpush1.msra.mxu0 0.0
    %363 = vmatprep.subr.mxu0 0.0
    %364 = vmatpush1.msra.mxu0 0.0
    %365 = vmatprep.subr.mxu0 0.0
    %366 = vmatpush1.msra.mxu0 0.0
    %367 = vmatprep.subr.mxu0 0.0
    %368 = vmatpush1.msra.mxu0 0.0
    %369 = vmatprep.subr.mxu0 0.0
    %370 = vmatpush1.msra.mxu0 0.0
    %371 = vmatprep.subr.mxu0 0.0
    %372 = vmatpush1.msra.mxu0 0.0
    %373 = vmatprep.subr.mxu0 0.0
    %374 = vmatpush1.msra.mxu0 0.0
    %375 = vmatprep.subr.mxu0 0.0
    %376 = vmatpush1.msra.mxu0 0.0
    %377 = vmatprep.subr.mxu0 0.0
    %378 = vmatpush1.msra.mxu0 0.0
    %379 = vmatprep.subr.mxu0 0.0
    %380 = vmatpush1.msra.mxu0 0.0
    %381 = vmatprep.mubr.f32.mxu0 0.0
    %382 = vmatmul.mubr.f32.gmra.mrb[0].mxu0 %v315
    %v383 = vpop.f32.mrb[0].mxu0
    %v384 = vadd.f32 0.0, %v383
    %v385 = vpop.f32.mrb[0].mxu0
    %386 = vdwg.mxu0
    %v388 = vrot.slane %v384, 7
    %v391 = vadd.f32 %v163, %v388
    %v392 = vadd.f32 %v168, %v384
    %v393 = vxor.u32 %v391, 2147483648
    %v394 = vxor.u32 %v392, 2147483648
    %v395 = vmul.f32 %v393, 1.442695
    %v396 = vpow.pop %v395
    %v397 = vmul.f32 %v394, 1.442695
    %v398 = vpow.pop %v397
    %v399 = vadd.f32 %v396, 1.0
    %v400 = vadd.f32 %v398, 1.0
    %v401 = vrcp.pop %v399
    %v402 = vmul.f32 1.0, %v401
    %v403 = vrcp.pop %v400
    %v404 = vmul.f32 1.0, %v403
    %v405 = vtanh.pop %v391
    %v406 = vtanh.pop %v392
    %v409 = vrot.slane %v285, 7
    %v410 = vrot.slane %v286, 7
    %v413 = vmul.f32 %v402, %v409
    %v414 = vmul.f32 %v404, %v410
    %417 = vrot.lane.b32.xlu0 %v405, 64
    %v418 = vpop.permute.xlu0 %417
    %419 = vrot.lane.b32.xlu0 %v406, 64
    %v420 = vpop.permute.xlu0 %419
    %v423 = vmul.f32 %v402, %v418
    %v424 = vmul.f32 %v404, %v420
    %427 = vrot.lane.b32.xlu0 %v423, 32
    %v428 = vpop.permute.xlu0 %427
    %429 = vrot.lane.b32.xlu0 %v424, 32
    %v430 = vpop.permute.xlu0 %429
    %v433 = vadd.f32 %v413, %v428
    %v434 = vadd.f32 %v414, %v430
    %v435 = vtanh.pop %v433
    %v436 = vtanh.pop %v434
    %439 = vrot.lane.b32.xlu0 %v435, 64
    %v440 = vpop.permute.xlu0 %439
    %441 = vrot.lane.b32.xlu0 %v436, 64
    %v442 = vpop.permute.xlu0 %441
    %v445 = vmul.f32 %v402, %v440
    %v446 = vmul.f32 %v404, %v442
    %449 = vrot.lane.b32.xlu0 %v445, 32
    %v450 = vpop.permute.xlu0 %449
    %451 = vrot.lane.b32.xlu0 %v446, 32
    %v452 = vpop.permute.xlu0 %451
    %vm455 = vcmask 254977
    %456 = vst.msk [vmem:[#allocation2] sm:$0x2] %vm455, %v450
    %457 = vst.msk [vmem:[#allocation2 + $0x8] sm:$0x2] %vm455, %v452
    %v458 = vrot.slane %v445, 1
    %v459 = vsel %vm311, %v446, %v458
    %460 = vrot.lane.b32.xlu0 %v459, 32
    %v461 = vpop.permute.xlu0 %460
    %v462 = vsel %vm171, %v461, 0
    %464 = vmatprep.subr.mxu0 0.0
    %465 = vmatpush1.msra.mxu0 %v78
    %466 = vmatprep.subr.mxu0 0.0
    %467 = vmatpush1.msra.mxu0 %v79
    %468 = vmatprep.subr.mxu0 0.0
    %469 = vmatpush1.msra.mxu0 %v80
    %470 = vmatprep.subr.mxu0 0.0
    %471 = vmatpush1.msra.mxu0 %v81
    %472 = vmatprep.subr.mxu0 0.0
    %473 = vmatpush1.msra.mxu0 0.0
    %474 = vmatprep.subr.mxu0 0.0
    %475 = vmatpush1.msra.mxu0 0.0
    %476 = vmatprep.subr.mxu0 0.0
    %477 = vmatpush1.msra.mxu0 0.0
    %478 = vmatprep.subr.mxu0 0.0
    %479 = vmatpush1.msra.mxu0 0.0
    %480 = vmatprep.subr.mxu0 0.0
    %481 = vmatpush1.msra.mxu0 0.0
    %482 = vmatprep.subr.mxu0 0.0
    %483 = vmatpush1.msra.mxu0 0.0
    %484 = vmatprep.subr.mxu0 0.0
    %485 = vmatpush1.msra.mxu0 0.0
    %486 = vmatprep.subr.mxu0 0.0
    %487 = vmatpush1.msra.mxu0 0.0
    %488 = vmatprep.subr.mxu0 0.0
    %489 = vmatpush1.msra.mxu0 0.0
    %490 = vmatprep.subr.mxu0 0.0
    %491 = vmatpush1.msra.mxu0 0.0
    %492 = vmatprep.subr.mxu0 0.0
    %493 = vmatpush1.msra.mxu0 0.0
    %494 = vmatprep.subr.mxu0 0.0
    %495 = vmatpush1.msra.mxu0 0.0
    %496 = vmatprep.subr.mxu0 0.0
    %497 = vmatpush1.msra.mxu0 0.0
    %498 = vmatprep.subr.mxu0 0.0
    %499 = vmatpush1.msra.mxu0 0.0
    %500 = vmatprep.subr.mxu0 0.0
    %501 = vmatpush1.msra.mxu0 0.0
    %502 = vmatprep.subr.mxu0 0.0
    %503 = vmatpush1.msra.mxu0 0.0
    %504 = vmatprep.subr.mxu0 0.0
    %505 = vmatpush1.msra.mxu0 0.0
    %506 = vmatprep.subr.mxu0 0.0
    %507 = vmatpush1.msra.mxu0 0.0
    %508 = vmatprep.subr.mxu0 0.0
    %509 = vmatpush1.msra.mxu0 0.0
    %510 = vmatprep.subr.mxu0 0.0
    %511 = vmatpush1.msra.mxu0 0.0
    %512 = vmatprep.subr.mxu0 0.0
    %513 = vmatpush1.msra.mxu0 0.0
    %514 = vmatprep.subr.mxu0 0.0
    %515 = vmatpush1.msra.mxu0 0.0
    %516 = vmatprep.subr.mxu0 0.0
    %517 = vmatpush1.msra.mxu0 0.0
    %518 = vmatprep.subr.mxu0 0.0
    %519 = vmatpush1.msra.mxu0 0.0
    %520 = vmatprep.subr.mxu0 0.0
    %521 = vmatpush1.msra.mxu0 0.0
    %522 = vmatprep.subr.mxu0 0.0
    %523 = vmatpush1.msra.mxu0 0.0
    %524 = vmatprep.subr.mxu0 0.0
    %525 = vmatpush1.msra.mxu0 0.0
    %526 = vmatprep.subr.mxu0 0.0
    %527 = vmatpush1.msra.mxu0 0.0
    %528 = vmatprep.mubr.f32.mxu0 0.0
    %529 = vmatmul.mubr.f32.gmra.mrb[0].mxu0 %v462
    %v530 = vpop.f32.mrb[0].mxu0
    %v531 = vadd.f32 0.0, %v530
    %v532 = vpop.f32.mrb[0].mxu0
    %533 = vdwg.mxu0
    %v535 = vrot.slane %v531, 6
    %v536 = vrot.slane %v531, 7
    %v539 = vadd.f32 %v163, %v535
    %v540 = vadd.f32 %v168, %v536
    %v541 = vxor.u32 %v539, 2147483648
    %v542 = vxor.u32 %v540, 2147483648
    %v543 = vmul.f32 %v541, 1.442695
    %v544 = vpow.pop %v543
    %v545 = vmul.f32 %v542, 1.442695
    %v546 = vpow.pop %v545
    %v547 = vadd.f32 %v544, 1.0
    %v548 = vadd.f32 %v546, 1.0
    %v549 = vrcp.pop %v547
    %v550 = vmul.f32 1.0, %v549
    %v551 = vrcp.pop %v548
    %v552 = vmul.f32 1.0, %v551
    %v553 = vtanh.pop %v539
    %v554 = vtanh.pop %v540
    %v557 = vrot.slane %v433, 7
    %v558 = vrot.slane %v434, 7
    %v561 = vmul.f32 %v550, %v557
    %v562 = vmul.f32 %v552, %v558
    %565 = vrot.lane.b32.xlu0 %v553, 64
    %v566 = vpop.permute.xlu0 %565
    %567 = vrot.lane.b32.xlu0 %v554, 64
    %v568 = vpop.permute.xlu0 %567
    %v571 = vmul.f32 %v550, %v566
    %v572 = vmul.f32 %v552, %v568
    %575 = vrot.lane.b32.xlu0 %v571, 32
    %v576 = vpop.permute.xlu0 %575
    %577 = vrot.lane.b32.xlu0 %v572, 32
    %v578 = vpop.permute.xlu0 %577
    %v581 = vadd.f32 %v561, %v576
    %v582 = vadd.f32 %v562, %v578
    %v583 = vtanh.pop %v581
    %v584 = vtanh.pop %v582
    %587 = vrot.lane.b32.xlu0 %v583, 64
    %v588 = vpop.permute.xlu0 %587
    %589 = vrot.lane.b32.xlu0 %v584, 64
    %v590 = vpop.permute.xlu0 %589
    %v593 = vmul.f32 %v550, %v588
    %v594 = vmul.f32 %v552, %v590
    %597 = vrot.lane.b32.xlu0 %v593, 32
    %v598 = vpop.permute.xlu0 %597
    %599 = vrot.lane.b32.xlu0 %v594, 32
    %v600 = vpop.permute.xlu0 %599
    %vm603 = vcmask 256002
    %604 = vst.msk [vmem:[#allocation2] sm:$0x4] %vm603, %v598
    %605 = vst.msk [vmem:[#allocation2 + $0x8] sm:$0x4] %vm603, %v600
    %v606 = vrot.slane %v593, 2
    %v607 = vrot.slane %v594, 1
    %v608 = vsel %vm311, %v607, %v606
    %609 = vrot.lane.b32.xlu0 %v608, 32
    %v610 = vpop.permute.xlu0 %609
    %v611 = vsel %vm171, %v610, 0
    %613 = vmatprep.subr.mxu0 0.0
    %614 = vmatpush1.msra.mxu0 %v78
    %615 = vmatprep.subr.mxu0 0.0
    %616 = vmatpush1.msra.mxu0 %v79
    %617 = vmatprep.subr.mxu0 0.0
    %618 = vmatpush1.msra.mxu0 %v80
    %619 = vmatprep.subr.mxu0 0.0
    %620 = vmatpush1.msra.mxu0 %v81
    %621 = vmatprep.subr.mxu0 0.0
    %622 = vmatpush1.msra.mxu0 0.0
    %623 = vmatprep.subr.mxu0 0.0
    %624 = vmatpush1.msra.mxu0 0.0
    %625 = vmatprep.subr.mxu0 0.0
    %626 = vmatpush1.msra.mxu0 0.0
    %627 = vmatprep.subr.mxu0 0.0
    %628 = vmatpush1.msra.mxu0 0.0
    %629 = vmatprep.subr.mxu0 0.0
    %630 = vmatpush1.msra.mxu0 0.0
    %631 = vmatprep.subr.mxu0 0.0
    %632 = vmatpush1.msra.mxu0 0.0
    %633 = vmatprep.subr.mxu0 0.0
    %634 = vmatpush1.msra.mxu0 0.0
    %635 = vmatprep.subr.mxu0 0.0
    %636 = vmatpush1.msra.mxu0 0.0
    %637 = vmatprep.subr.mxu0 0.0
    %638 = vmatpush1.msra.mxu0 0.0
    %639 = vmatprep.subr.mxu0 0.0
    %640 = vmatpush1.msra.mxu0 0.0
    %641 = vmatprep.subr.mxu0 0.0
    %642 = vmatpush1.msra.mxu0 0.0
    %643 = vmatprep.subr.mxu0 0.0
    %644 = vmatpush1.msra.mxu0 0.0
    %645 = vmatprep.subr.mxu0 0.0
    %646 = vmatpush1.msra.mxu0 0.0
    %647 = vmatprep.subr.mxu0 0.0
    %648 = vmatpush1.msra.mxu0 0.0
    %649 = vmatprep.subr.mxu0 0.0
    %650 = vmatpush1.msra.mxu0 0.0
    %651 = vmatprep.subr.mxu0 0.0
    %652 = vmatpush1.msra.mxu0 0.0
    %653 = vmatprep.subr.mxu0 0.0
    %654 = vmatpush1.msra.mxu0 0.0
    %655 = vmatprep.subr.mxu0 0.0
    %656 = vmatpush1.msra.mxu0 0.0
    %657 = vmatprep.subr.mxu0 0.0
    %658 = vmatpush1.msra.mxu0 0.0
    %659 = vmatprep.subr.mxu0 0.0
    %660 = vmatpush1.msra.mxu0 0.0
    %661 = vmatprep.subr.mxu0 0.0
    %662 = vmatpush1.msra.mxu0 0.0
    %663 = vmatprep.subr.mxu0 0.0
    %664 = vmatpush1.msra.mxu0 0.0
    %665 = vmatprep.subr.mxu0 0.0
    %666 = vmatpush1.msra.mxu0 0.0
    %667 = vmatprep.subr.mxu0 0.0
    %668 = vmatpush1.msra.mxu0 0.0
    %669 = vmatprep.subr.mxu0 0.0
    %670 = vmatpush1.msra.mxu0 0.0
    %671 = vmatprep.subr.mxu0 0.0
    %672 = vmatpush1.msra.mxu0 0.0
    %673 = vmatprep.subr.mxu0 0.0
    %674 = vmatpush1.msra.mxu0 0.0
    %675 = vmatprep.subr.mxu0 0.0
    %676 = vmatpush1.msra.mxu0 0.0
    %677 = vmatprep.mubr.f32.mxu0 0.0
    %678 = vmatmul.mubr.f32.gmra.mrb[0].mxu0 %v611
    %v679 = vpop.f32.mrb[0].mxu0
    %v680 = vadd.f32 0.0, %v679
    %v681 = vpop.f32.mrb[0].mxu0
    %682 = vdwg.mxu0
    %v684 = vrot.slane %v680, 5
    %v685 = vrot.slane %v680, 6
    %v688 = vadd.f32 %v163, %v684
    %v689 = vadd.f32 %v168, %v685
    %v690 = vxor.u32 %v688, 2147483648
    %v691 = vxor.u32 %v689, 2147483648
    %v692 = vmul.f32 %v690, 1.442695
    %v693 = vpow.pop %v692
    %v694 = vmul.f32 %v691, 1.442695
    %v695 = vpow.pop %v694
    %v696 = vadd.f32 %v693, 1.0
    %v697 = vadd.f32 %v695, 1.0
    %v698 = vrcp.pop %v696
    %v699 = vmul.f32 1.0, %v698
    %v700 = vrcp.pop %v697
    %v701 = vmul.f32 1.0, %v700
    %v702 = vtanh.pop %v688
    %v703 = vtanh.pop %v689
    %v706 = vrot.slane %v581, 7
    %v707 = vrot.slane %v582, 7
    %v710 = vmul.f32 %v699, %v706
    %v711 = vmul.f32 %v701, %v707
    %714 = vrot.lane.b32.xlu0 %v702, 64
    %v715 = vpop.permute.xlu0 %714
    %716 = vrot.lane.b32.xlu0 %v703, 64
    %v717 = vpop.permute.xlu0 %716
    %v720 = vmul.f32 %v699, %v715
    %v721 = vmul.f32 %v701, %v717
    %724 = vrot.lane.b32.xlu0 %v720, 32
    %v725 = vpop.permute.xlu0 %724
    %726 = vrot.lane.b32.xlu0 %v721, 32
    %v727 = vpop.permute.xlu0 %726
    %v730 = vadd.f32 %v710, %v725
    %v731 = vadd.f32 %v711, %v727
    %v732 = vtanh.pop %v730
    %v733 = vtanh.pop %v731
    %736 = vrot.lane.b32.xlu0 %v732, 64
    %v737 = vpop.permute.xlu0 %736
    %738 = vrot.lane.b32.xlu0 %v733, 64
    %v739 = vpop.permute.xlu0 %738
    %v742 = vmul.f32 %v699, %v737
    %v743 = vmul.f32 %v701, %v739
    %746 = vrot.lane.b32.xlu0 %v742, 32
    %v747 = vpop.permute.xlu0 %746
    %748 = vrot.lane.b32.xlu0 %v743, 32
    %v749 = vpop.permute.xlu0 %748
    %vm752 = vcmask 257027
    %753 = vst.msk [vmem:[#allocation2] sm:$0x8] %vm752, %v747
    %754 = vst.msk [vmem:[#allocation2 + $0x8] sm:$0x8] %vm752, %v749
    %v755 = vrot.slane %v742, 3
    %v756 = vrot.slane %v743, 2
    %v757 = vsel %vm311, %v756, %v755
    %758 = vrot.lane.b32.xlu0 %v757, 32
    %v759 = vpop.permute.xlu0 %758
    %v760 = vsel %vm171, %v759, 0
    %762 = vmatprep.subr.mxu0 0.0
    %763 = vmatpush1.msra.mxu0 %v78
    %764 = vmatprep.subr.mxu0 0.0
    %765 = vmatpush1.msra.mxu0 %v79
    %766 = vmatprep.subr.mxu0 0.0
    %767 = vmatpush1.msra.mxu0 %v80
    %768 = vmatprep.subr.mxu0 0.0
    %769 = vmatpush1.msra.mxu0 %v81
    %770 = vmatprep.subr.mxu0 0.0
    %771 = vmatpush1.msra.mxu0 0.0
    %772 = vmatprep.subr.mxu0 0.0
    %773 = vmatpush1.msra.mxu0 0.0
    %774 = vmatprep.subr.mxu0 0.0
    %775 = vmatpush1.msra.mxu0 0.0
    %776 = vmatprep.subr.mxu0 0.0
    %777 = vmatpush1.msra.mxu0 0.0
    %778 = vmatprep.subr.mxu0 0.0
    %779 = vmatpush1.msra.mxu0 0.0
    %780 = vmatprep.subr.mxu0 0.0
    %781 = vmatpush1.msra.mxu0 0.0
    %782 = vmatprep.subr.mxu0 0.0
    %783 = vmatpush1.msra.mxu0 0.0
    %784 = vmatprep.subr.mxu0 0.0
    %785 = vmatpush1.msra.mxu0 0.0
    %786 = vmatprep.subr.mxu0 0.0
    %787 = vmatpush1.msra.mxu0 0.0
    %788 = vmatprep.subr.mxu0 0.0
    %789 = vmatpush1.msra.mxu0 0.0
    %790 = vmatprep.subr.mxu0 0.0
    %791 = vmatpush1.msra.mxu0 0.0
    %792 = vmatprep.subr.mxu0 0.0
    %793 = vmatpush1.msra.mxu0 0.0
    %794 = vmatprep.subr.mxu0 0.0
    %795 = vmatpush1.msra.mxu0 0.0
    %796 = vmatprep.subr.mxu0 0.0
    %797 = vmatpush1.msra.mxu0 0.0
    %798 = vmatprep.subr.mxu0 0.0
    %799 = vmatpush1.msra.mxu0 0.0
    %800 = vmatprep.subr.mxu0 0.0
    %801 = vmatpush1.msra.mxu0 0.0
    %802 = vmatprep.subr.mxu0 0.0
    %803 = vmatpush1.msra.mxu0 0.0
    %804 = vmatprep.subr.mxu0 0.0
    %805 = vmatpush1.msra.mxu0 0.0
    %806 = vmatprep.subr.mxu0 0.0
    %807 = vmatpush1.msra.mxu0 0.0
    %808 = vmatprep.subr.mxu0 0.0
    %809 = vmatpush1.msra.mxu0 0.0
    %810 = vmatprep.subr.mxu0 0.0
    %811 = vmatpush1.msra.mxu0 0.0
    %812 = vmatprep.subr.mxu0 0.0
    %813 = vmatpush1.msra.mxu0 0.0
    %814 = vmatprep.subr.mxu0 0.0
    %815 = vmatpush1.msra.mxu0 0.0
    %816 = vmatprep.subr.mxu0 0.0
    %817 = vmatpush1.msra.mxu0 0.0
    %818 = vmatprep.subr.mxu0 0.0
    %819 = vmatpush1.msra.mxu0 0.0
    %820 = vmatprep.subr.mxu0 0.0
    %821 = vmatpush1.msra.mxu0 0.0
    %822 = vmatprep.subr.mxu0 0.0
    %823 = vmatpush1.msra.mxu0 0.0
    %824 = vmatprep.subr.mxu0 0.0
    %825 = vmatpush1.msra.mxu0 0.0
    %826 = vmatprep.mubr.f32.mxu0 0.0
    %827 = vmatmul.mubr.f32.gmra.mrb[0].mxu0 %v760
    %v828 = vpop.f32.mrb[0].mxu0
    %v829 = vadd.f32 0.0, %v828
    %v830 = vpop.f32.mrb[0].mxu0
    %831 = vdwg.mxu0
    %v833 = vrot.slane %v829, 4
    %v834 = vrot.slane %v829, 5
    %v837 = vadd.f32 %v163, %v833
    %v838 = vadd.f32 %v168, %v834
    %v839 = vxor.u32 %v837, 2147483648
    %v840 = vxor.u32 %v838, 2147483648
    %v841 = vmul.f32 %v839, 1.442695
    %v842 = vpow.pop %v841
    %v843 = vmul.f32 %v840, 1.442695
    %v844 = vpow.pop %v843
    %v845 = vadd.f32 %v842, 1.0
    %v846 = vadd.f32 %v844, 1.0
    %v847 = vrcp.pop %v845
    %v848 = vmul.f32 1.0, %v847
    %v849 = vrcp.pop %v846
    %v850 = vmul.f32 1.0, %v849
    %v851 = vtanh.pop %v837
    %v852 = vtanh.pop %v838
    %v855 = vrot.slane %v730, 7
    %v856 = vrot.slane %v731, 7
    %v859 = vmul.f32 %v848, %v855
    %v860 = vmul.f32 %v850, %v856
    %863 = vrot.lane.b32.xlu0 %v851, 64
    %v864 = vpop.permute.xlu0 %863
    %865 = vrot.lane.b32.xlu0 %v852, 64
    %v866 = vpop.permute.xlu0 %865
    %v869 = vmul.f32 %v848, %v864
    %v870 = vmul.f32 %v850, %v866
    %873 = vrot.lane.b32.xlu0 %v869, 32
    %v874 = vpop.permute.xlu0 %873
    %875 = vrot.lane.b32.xlu0 %v870, 32
    %v876 = vpop.permute.xlu0 %875
    %v879 = vadd.f32 %v859, %v874
    %v880 = vadd.f32 %v860, %v876
    %v881 = vtanh.pop %v879
    %v882 = vtanh.pop %v880
    %885 = vrot.lane.b32.xlu0 %v881, 64
    %v886 = vpop.permute.xlu0 %885
    %887 = vrot.lane.b32.xlu0 %v882, 64
    %v888 = vpop.permute.xlu0 %887
    %v891 = vmul.f32 %v848, %v886
    %v892 = vmul.f32 %v850, %v888
    %895 = vrot.lane.b32.xlu0 %v891, 32
    %v896 = vpop.permute.xlu0 %895
    %897 = vrot.lane.b32.xlu0 %v892, 32
    %v898 = vpop.permute.xlu0 %897
    %vm901 = vcmask 258052
    %902 = vst.msk [vmem:[#allocation2] sm:$0x10] %vm901, %v896
    %903 = vst.msk [vmem:[#allocation2 + $0x8] sm:$0x10] %vm901, %v898
    %v904 = vrot.slane %v891, 4
    %v905 = vrot.slane %v892, 3
    %v906 = vsel %vm311, %v905, %v904
    %907 = vrot.lane.b32.xlu0 %v906, 32
    %v908 = vpop.permute.xlu0 %907
    %v909 = vsel %vm171, %v908, 0
    %911 = vmatprep.subr.mxu0 0.0
    %912 = vmatpush1.msra.mxu0 %v78
    %913 = vmatprep.subr.mxu0 0.0
    %914 = vmatpush1.msra.mxu0 %v79
    %915 = vmatprep.subr.mxu0 0.0
    %916 = vmatpush1.msra.mxu0 %v80
    %917 = vmatprep.subr.mxu0 0.0
    %918 = vmatpush1.msra.mxu0 %v81
    %919 = vmatprep.subr.mxu0 0.0
    %920 = vmatpush1.msra.mxu0 0.0
    %921 = vmatprep.subr.mxu0 0.0
    %922 = vmatpush1.msra.mxu0 0.0
    %923 = vmatprep.subr.mxu0 0.0
    %924 = vmatpush1.msra.mxu0 0.0
    %925 = vmatprep.subr.mxu0 0.0
    %926 = vmatpush1.msra.mxu0 0.0
    %927 = vmatprep.subr.mxu0 0.0
    %928 = vmatpush1.msra.mxu0 0.0
    %929 = vmatprep.subr.mxu0 0.0
    %930 = vmatpush1.msra.mxu0 0.0
    %931 = vmatprep.subr.mxu0 0.0
    %932 = vmatpush1.msra.mxu0 0.0
    %933 = vmatprep.subr.mxu0 0.0
    %934 = vmatpush1.msra.mxu0 0.0
    %935 = vmatprep.subr.mxu0 0.0
    %936 = vmatpush1.msra.mxu0 0.0
    %937 = vmatprep.subr.mxu0 0.0
    %938 = vmatpush1.msra.mxu0 0.0
    %939 = vmatprep.subr.mxu0 0.0
    %940 = vmatpush1.msra.mxu0 0.0
    %941 = vmatprep.subr.mxu0 0.0
    %942 = vmatpush1.msra.mxu0 0.0
    %943 = vmatprep.subr.mxu0 0.0
    %944 = vmatpush1.msra.mxu0 0.0
    %945 = vmatprep.subr.mxu0 0.0
    %946 = vmatpush1.msra.mxu0 0.0
    %947 = vmatprep.subr.mxu0 0.0
    %948 = vmatpush1.msra.mxu0 0.0
    %949 = vmatprep.subr.mxu0 0.0
    %950 = vmatpush1.msra.mxu0 0.0
    %951 = vmatprep.subr.mxu0 0.0
    %952 = vmatpush1.msra.mxu0 0.0
    %953 = vmatprep.subr.mxu0 0.0
    %954 = vmatpush1.msra.mxu0 0.0
    %955 = vmatprep.subr.mxu0 0.0
    %956 = vmatpush1.msra.mxu0 0.0
    %957 = vmatprep.subr.mxu0 0.0
    %958 = vmatpush1.msra.mxu0 0.0
    %959 = vmatprep.subr.mxu0 0.0
    %960 = vmatpush1.msra.mxu0 0.0
    %961 = vmatprep.subr.mxu0 0.0
    %962 = vmatpush1.msra.mxu0 0.0
    %963 = vmatprep.subr.mxu0 0.0
    %964 = vmatpush1.msra.mxu0 0.0
    %965 = vmatprep.subr.mxu0 0.0
    %966 = vmatpush1.msra.mxu0 0.0
    %967 = vmatprep.subr.mxu0 0.0
    %968 = vmatpush1.msra.mxu0 0.0
    %969 = vmatprep.subr.mxu0 0.0
    %970 = vmatpush1.msra.mxu0 0.0
    %971 = vmatprep.subr.mxu0 0.0
    %972 = vmatpush1.msra.mxu0 0.0
    %973 = vmatprep.subr.mxu0 0.0
    %974 = vmatpush1.msra.mxu0 0.0
    %975 = vmatprep.mubr.f32.mxu0 0.0
    %976 = vmatmul.mubr.f32.gmra.mrb[0].mxu0 %v909
    %v977 = vpop.f32.mrb[0].mxu0
    %v978 = vadd.f32 0.0, %v977
    %v979 = vpop.f32.mrb[0].mxu0
    %980 = vdwg.mxu0
    %v982 = vrot.slane %v978, 3
    %v983 = vrot.slane %v978, 4
    %v986 = vadd.f32 %v163, %v982
    %v987 = vadd.f32 %v168, %v983
    %v988 = vxor.u32 %v986, 2147483648
    %v989 = vxor.u32 %v987, 2147483648
    %v990 = vmul.f32 %v988, 1.442695
    %v991 = vpow.pop %v990
    %v992 = vmul.f32 %v989, 1.442695
    %v993 = vpow.pop %v992
    %v994 = vadd.f32 %v991, 1.0
    %v995 = vadd.f32 %v993, 1.0
    %v996 = vrcp.pop %v994
    %v997 = vmul.f32 1.0, %v996
    %v998 = vrcp.pop %v995
    %v999 = vmul.f32 1.0, %v998
    %v1000 = vtanh.pop %v986
    %v1001 = vtanh.pop %v987
    %v1004 = vrot.slane %v879, 7
    %v1005 = vrot.slane %v880, 7
    %v1008 = vmul.f32 %v997, %v1004
    %v1009 = vmul.f32 %v999, %v1005
    %1012 = vrot.lane.b32.xlu0 %v1000, 64
    %v1013 = vpop.permute.xlu0 %1012
    %1014 = vrot.lane.b32.xlu0 %v1001, 64
    %v1015 = vpop.permute.xlu0 %1014
    %v1018 = vmul.f32 %v997, %v1013
    %v1019 = vmul.f32 %v999, %v1015
    %1022 = vrot.lane.b32.xlu0 %v1018, 32
    %v1023 = vpop.permute.xlu0 %1022
    %1024 = vrot.lane.b32.xlu0 %v1019, 32
    %v1025 = vpop.permute.xlu0 %1024
    %v1028 = vadd.f32 %v1008, %v1023
    %v1029 = vadd.f32 %v1009, %v1025
    %v1030 = vtanh.pop %v1028
    %v1031 = vtanh.pop %v1029
    %1034 = vrot.lane.b32.xlu0 %v1030, 64
    %v1035 = vpop.permute.xlu0 %1034
    %1036 = vrot.lane.b32.xlu0 %v1031, 64
    %v1037 = vpop.permute.xlu0 %1036
    %v1040 = vmul.f32 %v997, %v1035
    %v1041 = vmul.f32 %v999, %v1037
    %1044 = vrot.lane.b32.xlu0 %v1040, 32
    %v1045 = vpop.permute.xlu0 %1044
    %1046 = vrot.lane.b32.xlu0 %v1041, 32
    %v1047 = vpop.permute.xlu0 %1046
    %vm1050 = vcmask 259077
    %1051 = vst.msk [vmem:[#allocation2] sm:$0x20] %vm1050, %v1045
    %1052 = vst.msk [vmem:[#allocation2 + $0x8] sm:$0x20] %vm1050, %v1047
    %v1053 = vrot.slane %v1040, 5
    %v1054 = vrot.slane %v1041, 4
    %v1055 = vsel %vm311, %v1054, %v1053
    %1056 = vrot.lane.b32.xlu0 %v1055, 32
    %v1057 = vpop.permute.xlu0 %1056
    %v1058 = vsel %vm171, %v1057, 0
    %1060 = vmatprep.subr.mxu0 0.0
    %1061 = vmatpush1.msra.mxu0 %v78
    %1062 = vmatprep.subr.mxu0 0.0
    %1063 = vmatpush1.msra.mxu0 %v79
    %1064 = vmatprep.subr.mxu0 0.0
    %1065 = vmatpush1.msra.mxu0 %v80
    %1066 = vmatprep.subr.mxu0 0.0
    %1067 = vmatpush1.msra.mxu0 %v81
    %1068 = vmatprep.subr.mxu0 0.0
    %1069 = vmatpush1.msra.mxu0 0.0
    %1070 = vmatprep.subr.mxu0 0.0
    %1071 = vmatpush1.msra.mxu0 0.0
    %1072 = vmatprep.subr.mxu0 0.0
    %1073 = vmatpush1.msra.mxu0 0.0
    %1074 = vmatprep.subr.mxu0 0.0
    %1075 = vmatpush1.msra.mxu0 0.0
    %1076 = vmatprep.subr.mxu0 0.0
    %1077 = vmatpush1.msra.mxu0 0.0
    %1078 = vmatprep.subr.mxu0 0.0
    %1079 = vmatpush1.msra.mxu0 0.0
    %1080 = vmatprep.subr.mxu0 0.0
    %1081 = vmatpush1.msra.mxu0 0.0
    %1082 = vmatprep.subr.mxu0 0.0
    %1083 = vmatpush1.msra.mxu0 0.0
    %1084 = vmatprep.subr.mxu0 0.0
    %1085 = vmatpush1.msra.mxu0 0.0
    %1086 = vmatprep.subr.mxu0 0.0
    %1087 = vmatpush1.msra.mxu0 0.0
    %1088 = vmatprep.subr.mxu0 0.0
    %1089 = vmatpush1.msra.mxu0 0.0
    %1090 = vmatprep.subr.mxu0 0.0
    %1091 = vmatpush1.msra.mxu0 0.0
    %1092 = vmatprep.subr.mxu0 0.0
    %1093 = vmatpush1.msra.mxu0 0.0
    %1094 = vmatprep.subr.mxu0 0.0
    %1095 = vmatpush1.msra.mxu0 0.0
    %1096 = vmatprep.subr.mxu0 0.0
    %1097 = vmatpush1.msra.mxu0 0.0
    %1098 = vmatprep.subr.mxu0 0.0
    %1099 = vmatpush1.msra.mxu0 0.0
    %1100 = vmatprep.subr.mxu0 0.0
    %1101 = vmatpush1.msra.mxu0 0.0
    %1102 = vmatprep.subr.mxu0 0.0
    %1103 = vmatpush1.msra.mxu0 0.0
    %1104 = vmatprep.subr.mxu0 0.0
    %1105 = vmatpush1.msra.mxu0 0.0
    %1106 = vmatprep.subr.mxu0 0.0
    %1107 = vmatpush1.msra.mxu0 0.0
    %1108 = vmatprep.subr.mxu0 0.0
    %1109 = vmatpush1.msra.mxu0 0.0
    %1110 = vmatprep.subr.mxu0 0.0
    %1111 = vmatpush1.msra.mxu0 0.0
    %1112 = vmatprep.subr.mxu0 0.0
    %1113 = vmatpush1.msra.mxu0 0.0
    %1114 = vmatprep.subr.mxu0 0.0
    %1115 = vmatpush1.msra.mxu0 0.0
    %1116 = vmatprep.subr.mxu0 0.0
    %1117 = vmatpush1.msra.mxu0 0.0
    %1118 = vmatprep.subr.mxu0 0.0
    %1119 = vmatpush1.msra.mxu0 0.0
    %1120 = vmatprep.subr.mxu0 0.0
    %1121 = vmatpush1.msra.mxu0 0.0
    %1122 = vmatprep.subr.mxu0 0.0
    %1123 = vmatpush1.msra.mxu0 0.0
    %1124 = vmatprep.mubr.f32.mxu0 0.0
    %1125 = vmatmul.mubr.f32.gmra.mrb[0].mxu0 %v1058
    %v1126 = vpop.f32.mrb[0].mxu0
    %v1127 = vadd.f32 0.0, %v1126
    %v1128 = vpop.f32.mrb[0].mxu0
    %1129 = vdwg.mxu0
    %v1131 = vrot.slane %v1127, 2
    %v1132 = vrot.slane %v1127, 3
    %v1135 = vadd.f32 %v163, %v1131
    %v1136 = vadd.f32 %v168, %v1132
    %v1137 = vxor.u32 %v1135, 2147483648
    %v1138 = vxor.u32 %v1136, 2147483648
    %v1139 = vmul.f32 %v1137, 1.442695
    %v1140 = vpow.pop %v1139
    %v1141 = vmul.f32 %v1138, 1.442695
    %v1142 = vpow.pop %v1141
    %v1143 = vadd.f32 %v1140, 1.0
    %v1144 = vadd.f32 %v1142, 1.0
    %v1145 = vrcp.pop %v1143
    %v1146 = vmul.f32 1.0, %v1145
    %v1147 = vrcp.pop %v1144
    %v1148 = vmul.f32 1.0, %v1147
    %v1149 = vtanh.pop %v1135
    %v1150 = vtanh.pop %v1136
    %v1153 = vrot.slane %v1028, 7
    %v1154 = vrot.slane %v1029, 7
    %v1157 = vmul.f32 %v1146, %v1153
    %v1158 = vmul.f32 %v1148, %v1154
    %1161 = vrot.lane.b32.xlu0 %v1149, 64
    %v1162 = vpop.permute.xlu0 %1161
    %1163 = vrot.lane.b32.xlu0 %v1150, 64
    %v1164 = vpop.permute.xlu0 %1163
    %v1167 = vmul.f32 %v1146, %v1162
    %v1168 = vmul.f32 %v1148, %v1164
    %1171 = vrot.lane.b32.xlu0 %v1167, 32
    %v1172 = vpop.permute.xlu0 %1171
    %1173 = vrot.lane.b32.xlu0 %v1168, 32
    %v1174 = vpop.permute.xlu0 %1173
    %v1177 = vadd.f32 %v1157, %v1172
    %v1178 = vadd.f32 %v1158, %v1174
    %v1179 = vtanh.pop %v1177
    %v1180 = vtanh.pop %v1178
    %1183 = vrot.lane.b32.xlu0 %v1179, 64
    %v1184 = vpop.permute.xlu0 %1183
    %1185 = vrot.lane.b32.xlu0 %v1180, 64
    %v1186 = vpop.permute.xlu0 %1185
    %v1189 = vmul.f32 %v1146, %v1184
    %v1190 = vmul.f32 %v1148, %v1186
    %1193 = vrot.lane.b32.xlu0 %v1189, 32
    %v1194 = vpop.permute.xlu0 %1193
    %1195 = vrot.lane.b32.xlu0 %v1190, 32
    %v1196 = vpop.permute.xlu0 %1195
    %vm1199 = vcmask 260102
    %1200 = vst.msk [vmem:[#allocation2] sm:$0x40] %vm1199, %v1194
    %1201 = vst.msk [vmem:[#allocation2 + $0x8] sm:$0x40] %vm1199, %v1196
    %v1202 = vrot.slane %v1189, 6
    %v1203 = vrot.slane %v1190, 5
    %v1204 = vsel %vm311, %v1203, %v1202
    %1205 = vrot.lane.b32.xlu0 %v1204, 32
    %v1206 = vpop.permute.xlu0 %1205
    %v1207 = vsel %vm171, %v1206, 0
    %1209 = vmatprep.subr.mxu0 0.0
    %1210 = vmatpush1.msra.mxu0 %v78
    %1211 = vmatprep.subr.mxu0 0.0
    %1212 = vmatpush1.msra.mxu0 %v79
    %1213 = vmatprep.subr.mxu0 0.0
    %1214 = vmatpush1.msra.mxu0 %v80
    %1215 = vmatprep.subr.mxu0 0.0
    %1216 = vmatpush1.msra.mxu0 %v81
    %1217 = vmatprep.subr.mxu0 0.0
    %1218 = vmatpush1.msra.mxu0 0.0
    %1219 = vmatprep.subr.mxu0 0.0
    %1220 = vmatpush1.msra.mxu0 0.0
    %1221 = vmatprep.subr.mxu0 0.0
    %1222 = vmatpush1.msra.mxu0 0.0
    %1223 = vmatprep.subr.mxu0 0.0
    %1224 = vmatpush1.msra.mxu0 0.0
    %1225 = vmatprep.subr.mxu0 0.0
    %1226 = vmatpush1.msra.mxu0 0.0
    %1227 = vmatprep.subr.mxu0 0.0
    %1228 = vmatpush1.msra.mxu0 0.0
    %1229 = vmatprep.subr.mxu0 0.0
    %1230 = vmatpush1.msra.mxu0 0.0
    %1231 = vmatprep.subr.mxu0 0.0
    %1232 = vmatpush1.msra.mxu0 0.0
    %1233 = vmatprep.subr.mxu0 0.0
    %1234 = vmatpush1.msra.mxu0 0.0
    %1235 = vmatprep.subr.mxu0 0.0
    %1236 = vmatpush1.msra.mxu0 0.0
    %1237 = vmatprep.subr.mxu0 0.0
    %1238 = vmatpush1.msra.mxu0 0.0
    %1239 = vmatprep.subr.mxu0 0.0
    %1240 = vmatpush1.msra.mxu0 0.0
    %1241 = vmatprep.subr.mxu0 0.0
    %1242 = vmatpush1.msra.mxu0 0.0
    %1243 = vmatprep.subr.mxu0 0.0
    %1244 = vmatpush1.msra.mxu0 0.0
    %1245 = vmatprep.subr.mxu0 0.0
    %1246 = vmatpush1.msra.mxu0 0.0
    %1247 = vmatprep.subr.mxu0 0.0
    %1248 = vmatpush1.msra.mxu0 0.0
    %1249 = vmatprep.subr.mxu0 0.0
    %1250 = vmatpush1.msra.mxu0 0.0
    %1251 = vmatprep.subr.mxu0 0.0
    %1252 = vmatpush1.msra.mxu0 0.0
    %1253 = vmatprep.subr.mxu0 0.0
    %1254 = vmatpush1.msra.mxu0 0.0
    %1255 = vmatprep.subr.mxu0 0.0
    %1256 = vmatpush1.msra.mxu0 0.0
    %1257 = vmatprep.subr.mxu0 0.0
    %1258 = vmatpush1.msra.mxu0 0.0
    %1259 = vmatprep.subr.mxu0 0.0
    %1260 = vmatpush1.msra.mxu0 0.0
    %1261 = vmatprep.subr.mxu0 0.0
    %1262 = vmatpush1.msra.mxu0 0.0
    %1263 = vmatprep.subr.mxu0 0.0
    %1264 = vmatpush1.msra.mxu0 0.0
    %1265 = vmatprep.subr.mxu0 0.0
    %1266 = vmatpush1.msra.mxu0 0.0
    %1267 = vmatprep.subr.mxu0 0.0
    %1268 = vmatpush1.msra.mxu0 0.0
    %1269 = vmatprep.subr.mxu0 0.0
    %1270 = vmatpush1.msra.mxu0 0.0
    %1271 = vmatprep.subr.mxu0 0.0
    %1272 = vmatpush1.msra.mxu0 0.0
    %1273 = vmatprep.mubr.f32.mxu0 0.0
    %1274 = vmatmul.mubr.f32.gmra.mrb[0].mxu0 %v1207
    %v1275 = vpop.f32.mrb[0].mxu0
    %v1276 = vadd.f32 0.0, %v1275
    %v1277 = vpop.f32.mrb[0].mxu0
    %1278 = vdwg.mxu0
    %v1280 = vrot.slane %v1276, 1
    %v1281 = vrot.slane %v1276, 2
    %v1284 = vadd.f32 %v163, %v1280
    %v1285 = vadd.f32 %v168, %v1281
    %v1286 = vxor.u32 %v1284, 2147483648
    %v1287 = vxor.u32 %v1285, 2147483648
    %v1288 = vmul.f32 %v1286, 1.442695
    %v1289 = vpow.pop %v1288
    %v1290 = vmul.f32 %v1287, 1.442695
    %v1291 = vpow.pop %v1290
    %v1292 = vadd.f32 %v1289, 1.0
    %v1293 = vadd.f32 %v1291, 1.0
    %v1294 = vrcp.pop %v1292
    %v1295 = vmul.f32 1.0, %v1294
    %v1296 = vrcp.pop %v1293
    %v1297 = vmul.f32 1.0, %v1296
    %v1298 = vtanh.pop %v1284
    %v1299 = vtanh.pop %v1285
    %v1302 = vrot.slane %v1177, 7
    %v1303 = vrot.slane %v1178, 7
    %v1306 = vmul.f32 %v1295, %v1302
    %v1307 = vmul.f32 %v1297, %v1303
    %1310 = vrot.lane.b32.xlu0 %v1298, 64
    %v1311 = vpop.permute.xlu0 %1310
    %1312 = vrot.lane.b32.xlu0 %v1299, 64
    %v1313 = vpop.permute.xlu0 %1312
    %v1316 = vmul.f32 %v1295, %v1311
    %v1317 = vmul.f32 %v1297, %v1313
    %1320 = vrot.lane.b32.xlu0 %v1316, 32
    %v1321 = vpop.permute.xlu0 %1320
    %1322 = vrot.lane.b32.xlu0 %v1317, 32
    %v1323 = vpop.permute.xlu0 %1322
    %v1326 = vadd.f32 %v1306, %v1321
    %v1327 = vadd.f32 %v1307, %v1323
    %v1328 = vtanh.pop %v1326
    %v1329 = vtanh.pop %v1327
    %1332 = vrot.lane.b32.xlu0 %v1328, 64
    %v1333 = vpop.permute.xlu0 %1332
    %1334 = vrot.lane.b32.xlu0 %v1329, 64
    %v1335 = vpop.permute.xlu0 %1334
    %v1338 = vmul.f32 %v1295, %v1333
    %v1339 = vmul.f32 %v1297, %v1335
    %1342 = vrot.lane.b32.xlu0 %v1338, 32
    %v1343 = vpop.permute.xlu0 %1342
    %1344 = vrot.lane.b32.xlu0 %v1339, 32
    %v1345 = vpop.permute.xlu0 %1344
    %vm1348 = vcmask 261127
    %1349 = vst.msk [vmem:[#allocation2] sm:$0x80] %vm1348, %v1343
    %1350 = vst.msk [vmem:[#allocation2 + $0x8] sm:$0x80] %vm1348, %v1345
    %v1351 = vld [vmem:[#allocation2] sm:$0xff]
    %v1352 = vld [vmem:[#allocation2 + $0x8] sm:$0xff]
    %v1353 = vld [vmem:[#allocation9] sm:$0xff]
    %v1354 = vld [vmem:[#allocation9 + $0x8] sm:$0xff]
    %v1355 = vld [vmem:[#allocation9 + $0x10] sm:$0xff]
    %v1356 = vld [vmem:[#allocation9 + $0x18] sm:$0xff]
    %v1357 = vld [vmem:[%s5] sm:$0xff]
    %v1358 = vld [vmem:[%s5 + $0x8] sm:$0xff]
    %v1359 = vld [vmem:[%s5 + $0x10] sm:$0xff]
    %v1360 = vld [vmem:[%s5 + $0x18] sm:$0xff]
    %v1361 = vld [vmem:[%s6] sm:$0x1]
    %v1363 = vlaneseq
    %v1364 = vshrl.u32 %v1363, 7
    %v1365 = vsub.s32 0, %v1364
    %v1366 = vrot.slane %v1361, %v1365
    %v1369 = vsel %vm171, %v1351, 0
    %v1372 = vsel %vm171, %v1352, 0
    %1374 = vmatprep.subr.mxu0 0.0
    %1375 = vmatpush1.msra.mxu0 %v1353
    %1376 = vmatprep.subr.mxu0 0.0
    %1377 = vmatpush1.msra.mxu0 %v1354
    %1378 = vmatprep.subr.mxu0 0.0
    %1379 = vmatpush1.msra.mxu0 %v1355
    %1380 = vmatprep.subr.mxu0 0.0
    %1381 = vmatpush1.msra.mxu0 %v1356
    %1382 = vmatprep.subr.mxu0 0.0
    %1383 = vmatpush1.msra.mxu0 0.0
    %1384 = vmatprep.subr.mxu0 0.0
    %1385 = vmatpush1.msra.mxu0 0.0
    %1386 = vmatprep.subr.mxu0 0.0
    %1387 = vmatpush1.msra.mxu0 0.0
    %1388 = vmatprep.subr.mxu0 0.0
    %1389 = vmatpush1.msra.mxu0 0.0
    %1390 = vmatprep.subr.mxu0 0.0
    %1391 = vmatpush1.msra.mxu0 0.0
    %1392 = vmatprep.subr.mxu0 0.0
    %1393 = vmatpush1.msra.mxu0 0.0
    %1394 = vmatprep.subr.mxu0 0.0
    %1395 = vmatpush1.msra.mxu0 0.0
    %1396 = vmatprep.subr.mxu0 0.0
    %1397 = vmatpush1.msra.mxu0 0.0
    %1398 = vmatprep.subr.mxu0 0.0
    %1399 = vmatpush1.msra.mxu0 0.0
    %1400 = vmatprep.subr.mxu0 0.0
    %1401 = vmatpush1.msra.mxu0 0.0
    %1402 = vmatprep.subr.mxu0 0.0
    %1403 = vmatpush1.msra.mxu0 0.0
    %1404 = vmatprep.subr.mxu0 0.0
    %1405 = vmatpush1.msra.mxu0 0.0
    %1406 = vmatprep.subr.mxu0 0.0
    %1407 = vmatpush1.msra.mxu0 0.0
    %1408 = vmatprep.subr.mxu0 0.0
    %1409 = vmatpush1.msra.mxu0 0.0
    %1410 = vmatprep.subr.mxu0 0.0
    %1411 = vmatpush1.msra.mxu0 0.0
    %1412 = vmatprep.subr.mxu0 0.0
    %1413 = vmatpush1.msra.mxu0 0.0
    %1414 = vmatprep.subr.mxu0 0.0
    %1415 = vmatpush1.msra.mxu0 0.0
    %1416 = vmatprep.subr.mxu0 0.0
    %1417 = vmatpush1.msra.mxu0 0.0
    %1418 = vmatprep.subr.mxu0 0.0
    %1419 = vmatpush1.msra.mxu0 0.0
    %1420 = vmatprep.subr.mxu0 0.0
    %1421 = vmatpush1.msra.mxu0 0.0
    %1422 = vmatprep.subr.mxu0 0.0
    %1423 = vmatpush1.msra.mxu0 0.0
    %1424 = vmatprep.subr.mxu0 0.0
    %1425 = vmatpush1.msra.mxu0 0.0
    %1426 = vmatprep.subr.mxu0 0.0
    %1427 = vmatpush1.msra.mxu0 0.0
    %1428 = vmatprep.subr.mxu0 0.0
    %1429 = vmatpush1.msra.mxu0 0.0
    %1430 = vmatprep.subr.mxu0 0.0
    %1431 = vmatpush1.msra.mxu0 0.0
    %1432 = vmatprep.subr.mxu0 0.0
    %1433 = vmatpush1.msra.mxu0 0.0
    %1434 = vmatprep.subr.mxu0 0.0
    %1435 = vmatpush1.msra.mxu0 0.0
    %1436 = vmatprep.subr.mxu0 0.0
    %1437 = vmatpush1.msra.mxu0 0.0
    %1438 = vmatprep.mubr.f32.mxu0 0.0
    %1439 = vmatmul.mubr.f32.gmra.mrb[0].mxu0 %v1369
    %v1440 = vpop.f32.mrb[0].mxu0
    %v1441 = vadd.f32 %v1366, %v1440
    %v1442 = vpop.f32.mrb[0].mxu0
    %1443 = vmatprep.mubr.f32.mxu0 0.0
    %1444 = vmatmul.mubr.f32.gmra.mrb[0].mxu0 %v1372
    %v1445 = vpop.f32.mrb[0].mxu0
    %v1446 = vadd.f32 %v1366, %v1445
    %v1447 = vpop.f32.mrb[0].mxu0
    %1448 = vdwg.mxu0
    %1449 = vmatprep.subr.mxu0 0.0
    %1450 = vmatpush1.msra.mxu0 %v1357
    %1451 = vmatprep.subr.mxu0 0.0
    %1452 = vmatpush1.msra.mxu0 %v1358
    %1453 = vmatprep.subr.mxu0 0.0
    %1454 = vmatpush1.msra.mxu0 %v1359
    %1455 = vmatprep.subr.mxu0 0.0
    %1456 = vmatpush1.msra.mxu0 %v1360
    %1457 = vmatprep.subr.mxu0 0.0
    %1458 = vmatpush1.msra.mxu0 0.0
    %1459 = vmatprep.subr.mxu0 0.0
    %1460 = vmatpush1.msra.mxu0 0.0
    %1461 = vmatprep.subr.mxu0 0.0
    %1462 = vmatpush1.msra.mxu0 0.0
    %1463 = vmatprep.subr.mxu0 0.0
    %1464 = vmatpush1.msra.mxu0 0.0
    %1465 = vmatprep.subr.mxu0 0.0
    %1466 = vmatpush1.msra.mxu0 0.0
    %1467 = vmatprep.subr.mxu0 0.0
    %1468 = vmatpush1.msra.mxu0 0.0
    %1469 = vmatprep.subr.mxu0 0.0
    %1470 = vmatpush1.msra.mxu0 0.0
    %1471 = vmatprep.subr.mxu0 0.0
    %1472 = vmatpush1.msra.mxu0 0.0
    %1473 = vmatprep.subr.mxu0 0.0
    %1474 = vmatpush1.msra.mxu0 0.0
    %1475 = vmatprep.subr.mxu0 0.0
    %1476 = vmatpush1.msra.mxu0 0.0
    %1477 = vmatprep.subr.mxu0 0.0
    %1478 = vmatpush1.msra.mxu0 0.0
    %1479 = vmatprep.subr.mxu0 0.0
    %1480 = vmatpush1.msra.mxu0 0.0
    %1481 = vmatprep.subr.mxu0 0.0
    %1482 = vmatpush1.msra.mxu0 0.0
    %1483 = vmatprep.subr.mxu0 0.0
    %1484 = vmatpush1.msra.mxu0 0.0
    %1485 = vmatprep.subr.mxu0 0.0
    %1486 = vmatpush1.msra.mxu0 0.0
    %1487 = vmatprep.subr.mxu0 0.0
    %1488 = vmatpush1.msra.mxu0 0.0
    %1489 = vmatprep.subr.mxu0 0.0
    %1490 = vmatpush1.msra.mxu0 0.0
    %1491 = vmatprep.subr.mxu0 0.0
    %1492 = vmatpush1.msra.mxu0 0.0
    %1493 = vmatprep.subr.mxu0 0.0
    %1494 = vmatpush1.msra.mxu0 0.0
    %1495 = vmatprep.subr.mxu0 0.0
    %1496 = vmatpush1.msra.mxu0 0.0
    %1497 = vmatprep.subr.mxu0 0.0
    %1498 = vmatpush1.msra.mxu0 0.0
    %1499 = vmatprep.subr.mxu0 0.0
    %1500 = vmatpush1.msra.mxu0 0.0
    %1501 = vmatprep.subr.mxu0 0.0
    %1502 = vmatpush1.msra.mxu0 0.0
    %1503 = vmatprep.subr.mxu0 0.0
    %1504 = vmatpush1.msra.mxu0 0.0
    %1505 = vmatprep.subr.mxu0 0.0
    %1506 = vmatpush1.msra.mxu0 0.0
    %1507 = vmatprep.subr.mxu0 0.0
    %1508 = vmatpush1.msra.mxu0 0.0
    %1509 = vmatprep.subr.mxu0 0.0
    %1510 = vmatpush1.msra.mxu0 0.0
    %1511 = vmatprep.subr.mxu0 0.0
    %1512 = vmatpush1.msra.mxu0 0.0
    %1513 = vmatprep.mubr.f32.mxu0 0.0
    %1514 = vmatmul.mubr.f32.gmra.mrb[0].mxu0 %v173
    %v1515 = vpop.f32.mrb[0].mxu0
    %v1516 = vadd.f32 0.0, %v1515
    %v1517 = vpop.f32.mrb[0].mxu0
    %1518 = vdwg.mxu0
    %v1520 = vrot.slane %v1516, 1
    %v1523 = vadd.f32 %v1441, %v1516
    %v1524 = vadd.f32 %v1446, %v1520
    %v1525 = vxor.u32 %v1523, 2147483648
    %v1526 = vxor.u32 %v1524, 2147483648
    %v1527 = vmul.f32 %v1525, 1.442695
    %v1528 = vpow.pop %v1527
    %v1529 = vmul.f32 %v1526, 1.442695
    %v1530 = vpow.pop %v1529
    %v1531 = vadd.f32 %v1528, 1.0
    %v1532 = vadd.f32 %v1530, 1.0
    %v1533 = vrcp.pop %v1531
    %v1534 = vmul.f32 1.0, %v1533
    %v1535 = vrcp.pop %v1532
    %v1536 = vmul.f32 1.0, %v1535
    %v1537 = vtanh.pop %v1523
    %v1538 = vtanh.pop %v1524
    %v1539 = vmul.f32 %v1534, 0.0
    %v1540 = vmul.f32 %v1536, 0.0
    %1543 = vrot.lane.b32.xlu0 %v1537, 64
    %v1544 = vpop.permute.xlu0 %1543
    %1545 = vrot.lane.b32.xlu0 %v1538, 64
    %v1546 = vpop.permute.xlu0 %1545
    %v1549 = vmul.f32 %v1534, %v1544
    %v1550 = vmul.f32 %v1536, %v1546
    %1553 = vrot.lane.b32.xlu0 %v1549, 32
    %v1554 = vpop.permute.xlu0 %1553
    %1555 = vrot.lane.b32.xlu0 %v1550, 32
    %v1556 = vpop.permute.xlu0 %1555
    %v1559 = vadd.f32 %v1539, %v1554
    %v1560 = vadd.f32 %v1540, %v1556
    %v1561 = vtanh.pop %v1559
    %v1562 = vtanh.pop %v1560
    %1565 = vrot.lane.b32.xlu0 %v1561, 64
    %v1566 = vpop.permute.xlu0 %1565
    %1567 = vrot.lane.b32.xlu0 %v1562, 64
    %v1568 = vpop.permute.xlu0 %1567
    %v1571 = vmul.f32 %v1534, %v1566
    %v1572 = vmul.f32 %v1536, %v1568
    %1575 = vrot.lane.b32.xlu0 %v1571, 32
    %v1576 = vpop.permute.xlu0 %1575
    %1577 = vrot.lane.b32.xlu0 %v1572, 32
    %v1578 = vpop.permute.xlu0 %1577
    %1581 = vst.msk [vmem:[#allocation3] sm:$0x1] %vm307, %v1576
    %1582 = vst.msk [vmem:[#allocation3 + $0x8] sm:$0x1] %vm307, %v1578
    %v1583 = vrot.slane %v1572, 7
    %v1584 = vsel %vm311, %v1583, %v1571
    %1585 = vrot.lane.b32.xlu0 %v1584, 32
    %v1586 = vpop.permute.xlu0 %1585
    %v1587 = vsel %vm171, %v1586, 0
    %1589 = vmatprep.subr.mxu0 0.0
    %1590 = vmatpush1.msra.mxu0 %v1357
    %1591 = vmatprep.subr.mxu0 0.0
    %1592 = vmatpush1.msra.mxu0 %v1358
    %1593 = vmatprep.subr.mxu0 0.0
    %1594 = vmatpush1.msra.mxu0 %v1359
    %1595 = vmatprep.subr.mxu0 0.0
    %1596 = vmatpush1.msra.mxu0 %v1360
    %1597 = vmatprep.subr.mxu0 0.0
    %1598 = vmatpush1.msra.mxu0 0.0
    %1599 = vmatprep.subr.mxu0 0.0
    %1600 = vmatpush1.msra.mxu0 0.0
    %1601 = vmatprep.subr.mxu0 0.0
    %1602 = vmatpush1.msra.mxu0 0.0
    %1603 = vmatprep.subr.mxu0 0.0
    %1604 = vmatpush1.msra.mxu0 0.0
    %1605 = vmatprep.subr.mxu0 0.0
    %1606 = vmatpush1.msra.mxu0 0.0
    %1607 = vmatprep.subr.mxu0 0.0
    %1608 = vmatpush1.msra.mxu0 0.0
    %1609 = vmatprep.subr.mxu0 0.0
    %1610 = vmatpush1.msra.mxu0 0.0
    %1611 = vmatprep.subr.mxu0 0.0
    %1612 = vmatpush1.msra.mxu0 0.0
    %1613 = vmatprep.subr.mxu0 0.0
    %1614 = vmatpush1.msra.mxu0 0.0
    %1615 = vmatprep.subr.mxu0 0.0
    %1616 = vmatpush1.msra.mxu0 0.0
    %1617 = vmatprep.subr.mxu0 0.0
    %1618 = vmatpush1.msra.mxu0 0.0
    %1619 = vmatprep.subr.mxu0 0.0
    %1620 = vmatpush1.msra.mxu0 0.0
    %1621 = vmatprep.subr.mxu0 0.0
    %1622 = vmatpush1.msra.mxu0 0.0
    %1623 = vmatprep.subr.mxu0 0.0
    %1624 = vmatpush1.msra.mxu0 0.0
    %1625 = vmatprep.subr.mxu0 0.0
    %1626 = vmatpush1.msra.mxu0 0.0
    %1627 = vmatprep.subr.mxu0 0.0
    %1628 = vmatpush1.msra.mxu0 0.0
    %1629 = vmatprep.subr.mxu0 0.0
    %1630 = vmatpush1.msra.mxu0 0.0
    %1631 = vmatprep.subr.mxu0 0.0
    %1632 = vmatpush1.msra.mxu0 0.0
    %1633 = vmatprep.subr.mxu0 0.0
    %1634 = vmatpush1.msra.mxu0 0.0
    %1635 = vmatprep.subr.mxu0 0.0
    %1636 = vmatpush1.msra.mxu0 0.0
    %1637 = vmatprep.subr.mxu0 0.0
    %1638 = vmatpush1.msra.mxu0 0.0
    %1639 = vmatprep.subr.mxu0 0.0
    %1640 = vmatpush1.msra.mxu0 0.0
    %1641 = vmatprep.subr.mxu0 0.0
    %1642 = vmatpush1.msra.mxu0 0.0
    %1643 = vmatprep.subr.mxu0 0.0
    %1644 = vmatpush1.msra.mxu0 0.0
    %1645 = vmatprep.subr.mxu0 0.0
    %1646 = vmatpush1.msra.mxu0 0.0
    %1647 = vmatprep.subr.mxu0 0.0
    %1648 = vmatpush1.msra.mxu0 0.0
    %1649 = vmatprep.subr.mxu0 0.0
    %1650 = vmatpush1.msra.mxu0 0.0
    %1651 = vmatprep.subr.mxu0 0.0
    %1652 = vmatpush1.msra.mxu0 0.0
    %1653 = vmatprep.mubr.f32.mxu0 0.0
    %1654 = vmatmul.mubr.f32.gmra.mrb[0].mxu0 %v1587
    %v1655 = vpop.f32.mrb[0].mxu0
    %v1656 = vadd.f32 0.0, %v1655
    %v1657 = vpop.f32.mrb[0].mxu0
    %1658 = vdwg.mxu0
    %v1660 = vrot.slane %v1656, 7
    %v1663 = vadd.f32 %v1441, %v1660
    %v1664 = vadd.f32 %v1446, %v1656
    %v1665 = vxor.u32 %v1663, 2147483648
    %v1666 = vxor.u32 %v1664, 2147483648
    %v1667 = vmul.f32 %v1665, 1.442695
    %v1668 = vpow.pop %v1667
    %v1669 = vmul.f32 %v1666, 1.442695
    %v1670 = vpow.pop %v1669
    %v1671 = vadd.f32 %v1668, 1.0
    %v1672 = vadd.f32 %v1670, 1.0
    %v1673 = vrcp.pop %v1671
    %v1674 = vmul.f32 1.0, %v1673
    %v1675 = vrcp.pop %v1672
    %v1676 = vmul.f32 1.0, %v1675
    %v1677 = vtanh.pop %v1663
    %v1678 = vtanh.pop %v1664
    %v1681 = vrot.slane %v1559, 7
    %v1682 = vrot.slane %v1560, 7
    %v1685 = vmul.f32 %v1674, %v1681
    %v1686 = vmul.f32 %v1676, %v1682
    %1689 = vrot.lane.b32.xlu0 %v1677, 64
    %v1690 = vpop.permute.xlu0 %1689
    %1691 = vrot.lane.b32.xlu0 %v1678, 64
    %v1692 = vpop.permute.xlu0 %1691
    %v1695 = vmul.f32 %v1674, %v1690
    %v1696 = vmul.f32 %v1676, %v1692
    %1699 = vrot.lane.b32.xlu0 %v1695, 32
    %v1700 = vpop.permute.xlu0 %1699
    %1701 = vrot.lane.b32.xlu0 %v1696, 32
    %v1702 = vpop.permute.xlu0 %1701
    %v1705 = vadd.f32 %v1685, %v1700
    %v1706 = vadd.f32 %v1686, %v1702
    %v1707 = vtanh.pop %v1705
    %v1708 = vtanh.pop %v1706
    %1711 = vrot.lane.b32.xlu0 %v1707, 64
    %v1712 = vpop.permute.xlu0 %1711
    %1713 = vrot.lane.b32.xlu0 %v1708, 64
    %v1714 = vpop.permute.xlu0 %1713
    %v1717 = vmul.f32 %v1674, %v1712
    %v1718 = vmul.f32 %v1676, %v1714
    %1721 = vrot.lane.b32.xlu0 %v1717, 32
    %v1722 = vpop.permute.xlu0 %1721
    %1723 = vrot.lane.b32.xlu0 %v1718, 32
    %v1724 = vpop.permute.xlu0 %1723
    %1727 = vst.msk [vmem:[#allocation3] sm:$0x2] %vm455, %v1722
    %1728 = vst.msk [vmem:[#allocation3 + $0x8] sm:$0x2] %vm455, %v1724
    %v1729 = vrot.slane %v1717, 1
    %v1730 = vsel %vm311, %v1718, %v1729
    %1731 = vrot.lane.b32.xlu0 %v1730, 32
    %v1732 = vpop.permute.xlu0 %1731
    %v1733 = vsel %vm171, %v1732, 0
    %1735 = vmatprep.subr.mxu0 0.0
    %1736 = vmatpush1.msra.mxu0 %v1357
    %1737 = vmatprep.subr.mxu0 0.0
    %1738 = vmatpush1.msra.mxu0 %v1358
    %1739 = vmatprep.subr.mxu0 0.0
    %1740 = vmatpush1.msra.mxu0 %v1359
    %1741 = vmatprep.subr.mxu0 0.0
    %1742 = vmatpush1.msra.mxu0 %v1360
    %1743 = vmatprep.subr.mxu0 0.0
    %1744 = vmatpush1.msra.mxu0 0.0
    %1745 = vmatprep.subr.mxu0 0.0
    %1746 = vmatpush1.msra.mxu0 0.0
    %1747 = vmatprep.subr.mxu0 0.0
    %1748 = vmatpush1.msra.mxu0 0.0
    %1749 = vmatprep.subr.mxu0 0.0
    %1750 = vmatpush1.msra.mxu0 0.0
    %1751 = vmatprep.subr.mxu0 0.0
    %1752 = vmatpush1.msra.mxu0 0.0
    %1753 = vmatprep.subr.mxu0 0.0
    %1754 = vmatpush1.msra.mxu0 0.0
    %1755 = vmatprep.subr.mxu0 0.0
    %1756 = vmatpush1.msra.mxu0 0.0
    %1757 = vmatprep.subr.mxu0 0.0
    %1758 = vmatpush1.msra.mxu0 0.0
    %1759 = vmatprep.subr.mxu0 0.0
    %1760 = vmatpush1.msra.mxu0 0.0
    %1761 = vmatprep.subr.mxu0 0.0
    %1762 = vmatpush1.msra.mxu0 0.0
    %1763 = vmatprep.subr.mxu0 0.0
    %1764 = vmatpush1.msra.mxu0 0.0
    %1765 = vmatprep.subr.mxu0 0.0
    %1766 = vmatpush1.msra.mxu0 0.0
    %1767 = vmatprep.subr.mxu0 0.0
    %1768 = vmatpush1.msra.mxu0 0.0
    %1769 = vmatprep.subr.mxu0 0.0
    %1770 = vmatpush1.msra.mxu0 0.0
    %1771 = vmatprep.subr.mxu0 0.0
    %1772 = vmatpush1.msra.mxu0 0.0
    %1773 = vmatprep.subr.mxu0 0.0
    %1774 = vmatpush1.msra.mxu0 0.0
    %1775 = vmatprep.subr.mxu0 0.0
    %1776 = vmatpush1.msra.mxu0 0.0
    %1777 = vmatprep.subr.mxu0 0.0
    %1778 = vmatpush1.msra.mxu0 0.0
    %1779 = vmatprep.subr.mxu0 0.0
    %1780 = vmatpush1.msra.mxu0 0.0
    %1781 = vmatprep.subr.mxu0 0.0
    %1782 = vmatpush1.msra.mxu0 0.0
    %1783 = vmatprep.subr.mxu0 0.0
    %1784 = vmatpush1.msra.mxu0 0.0
    %1785 = vmatprep.subr.mxu0 0.0
    %1786 = vmatpush1.msra.mxu0 0.0
    %1787 = vmatprep.subr.mxu0 0.0
    %1788 = vmatpush1.msra.mxu0 0.0
    %1789 = vmatprep.subr.mxu0 0.0
    %1790 = vmatpush1.msra.mxu0 0.0
    %1791 = vmatprep.subr.mxu0 0.0
    %1792 = vmatpush1.msra.mxu0 0.0
    %1793 = vmatprep.subr.mxu0 0.0
    %1794 = vmatpush1.msra.mxu0 0.0
    %1795 = vmatprep.subr.mxu0 0.0
    %1796 = vmatpush1.msra.mxu0 0.0
    %1797 = vmatprep.subr.mxu0 0.0
    %1798 = vmatpush1.msra.mxu0 0.0
    %1799 = vmatprep.mubr.f32.mxu0 0.0
    %1800 = vmatmul.mubr.f32.gmra.mrb[0].mxu0 %v1733
    %v1801 = vpop.f32.mrb[0].mxu0
    %v1802 = vadd.f32 0.0, %v1801
    %v1803 = vpop.f32.mrb[0].mxu0
    %1804 = vdwg.mxu0
    %v1806 = vrot.slane %v1802, 6
    %v1807 = vrot.slane %v1802, 7
    %v1810 = vadd.f32 %v1441, %v1806
    %v1811 = vadd.f32 %v1446, %v1807
    %v1812 = vxor.u32 %v1810, 2147483648
    %v1813 = vxor.u32 %v1811, 2147483648
    %v1814 = vmul.f32 %v1812, 1.442695
    %v1815 = vpow.pop %v1814
    %v1816 = vmul.f32 %v1813, 1.442695
    %v1817 = vpow.pop %v1816
    %v1818 = vadd.f32 %v1815, 1.0
    %v1819 = vadd.f32 %v1817, 1.0
    %v1820 = vrcp.pop %v1818
    %v1821 = vmul.f32 1.0, %v1820
    %v1822 = vrcp.pop %v1819
    %v1823 = vmul.f32 1.0, %v1822
    %v1824 = vtanh.pop %v1810
    %v1825 = vtanh.pop %v1811
    %v1828 = vrot.slane %v1705, 7
    %v1829 = vrot.slane %v1706, 7
    %v1832 = vmul.f32 %v1821, %v1828
    %v1833 = vmul.f32 %v1823, %v1829
    %1836 = vrot.lane.b32.xlu0 %v1824, 64
    %v1837 = vpop.permute.xlu0 %1836
    %1838 = vrot.lane.b32.xlu0 %v1825, 64
    %v1839 = vpop.permute.xlu0 %1838
    %v1842 = vmul.f32 %v1821, %v1837
    %v1843 = vmul.f32 %v1823, %v1839
    %1846 = vrot.lane.b32.xlu0 %v1842, 32
    %v1847 = vpop.permute.xlu0 %1846
    %1848 = vrot.lane.b32.xlu0 %v1843, 32
    %v1849 = vpop.permute.xlu0 %1848
    %v1852 = vadd.f32 %v1832, %v1847
    %v1853 = vadd.f32 %v1833, %v1849
    %v1854 = vtanh.pop %v1852
    %v1855 = vtanh.pop %v1853
    %1858 = vrot.lane.b32.xlu0 %v1854, 64
    %v1859 = vpop.permute.xlu0 %1858
    %1860 = vrot.lane.b32.xlu0 %v1855, 64
    %v1861 = vpop.permute.xlu0 %1860
    %v1864 = vmul.f32 %v1821, %v1859
    %v1865 = vmul.f32 %v1823, %v1861
    %1868 = vrot.lane.b32.xlu0 %v1864, 32
    %v1869 = vpop.permute.xlu0 %1868
    %1870 = vrot.lane.b32.xlu0 %v1865, 32
    %v1871 = vpop.permute.xlu0 %1870
    %1874 = vst.msk [vmem:[#allocation3] sm:$0x4] %vm603, %v1869
    %1875 = vst.msk [vmem:[#allocation3 + $0x8] sm:$0x4] %vm603, %v1871
    %v1876 = vrot.slane %v1864, 2
    %v1877 = vrot.slane %v1865, 1
    %v1878 = vsel %vm311, %v1877, %v1876
    %1879 = vrot.lane.b32.xlu0 %v1878, 32
    %v1880 = vpop.permute.xlu0 %1879
    %v1881 = vsel %vm171, %v1880, 0
    %1883 = vmatprep.subr.mxu0 0.0
    %1884 = vmatpush1.msra.mxu0 %v1357
    %1885 = vmatprep.subr.mxu0 0.0
    %1886 = vmatpush1.msra.mxu0 %v1358
    %1887 = vmatprep.subr.mxu0 0.0
    %1888 = vmatpush1.msra.mxu0 %v1359
    %1889 = vmatprep.subr.mxu0 0.0
    %1890 = vmatpush1.msra.mxu0 %v1360
    %1891 = vmatprep.subr.mxu0 0.0
    %1892 = vmatpush1.msra.mxu0 0.0
    %1893 = vmatprep.subr.mxu0 0.0
    %1894 = vmatpush1.msra.mxu0 0.0
    %1895 = vmatprep.subr.mxu0 0.0
    %1896 = vmatpush1.msra.mxu0 0.0
    %1897 = vmatprep.subr.mxu0 0.0
    %1898 = vmatpush1.msra.mxu0 0.0
    %1899 = vmatprep.subr.mxu0 0.0
    %1900 = vmatpush1.msra.mxu0 0.0
    %1901 = vmatprep.subr.mxu0 0.0
    %1902 = vmatpush1.msra.mxu0 0.0
    %1903 = vmatprep.subr.mxu0 0.0
    %1904 = vmatpush1.msra.mxu0 0.0
    %1905 = vmatprep.subr.mxu0 0.0
    %1906 = vmatpush1.msra.mxu0 0.0
    %1907 = vmatprep.subr.mxu0 0.0
    %1908 = vmatpush1.msra.mxu0 0.0
    %1909 = vmatprep.subr.mxu0 0.0
    %1910 = vmatpush1.msra.mxu0 0.0
    %1911 = vmatprep.subr.mxu0 0.0
    %1912 = vmatpush1.msra.mxu0 0.0
    %1913 = vmatprep.subr.mxu0 0.0
    %1914 = vmatpush1.msra.mxu0 0.0
    %1915 = vmatprep.subr.mxu0 0.0
    %1916 = vmatpush1.msra.mxu0 0.0
    %1917 = vmatprep.subr.mxu0 0.0
    %1918 = vmatpush1.msra.mxu0 0.0
    %1919 = vmatprep.subr.mxu0 0.0
    %1920 = vmatpush1.msra.mxu0 0.0
    %1921 = vmatprep.subr.mxu0 0.0
    %1922 = vmatpush1.msra.mxu0 0.0
    %1923 = vmatprep.subr.mxu0 0.0
    %1924 = vmatpush1.msra.mxu0 0.0
    %1925 = vmatprep.subr.mxu0 0.0
    %1926 = vmatpush1.msra.mxu0 0.0
    %1927 = vmatprep.subr.mxu0 0.0
    %1928 = vmatpush1.msra.mxu0 0.0
    %1929 = vmatprep.subr.mxu0 0.0
    %1930 = vmatpush1.msra.mxu0 0.0
    %1931 = vmatprep.subr.mxu0 0.0
    %1932 = vmatpush1.msra.mxu0 0.0
    %1933 = vmatprep.subr.mxu0 0.0
    %1934 = vmatpush1.msra.mxu0 0.0
    %1935 = vmatprep.subr.mxu0 0.0
    %1936 = vmatpush1.msra.mxu0 0.0
    %1937 = vmatprep.subr.mxu0 0.0
    %1938 = vmatpush1.msra.mxu0 0.0
    %1939 = vmatprep.subr.mxu0 0.0
    %1940 = vmatpush1.msra.mxu0 0.0
    %1941 = vmatprep.subr.mxu0 0.0
    %1942 = vmatpush1.msra.mxu0 0.0
    %1943 = vmatprep.subr.mxu0 0.0
    %1944 = vmatpush1.msra.mxu0 0.0
    %1945 = vmatprep.subr.mxu0 0.0
    %1946 = vmatpush1.msra.mxu0 0.0
    %1947 = vmatprep.mubr.f32.mxu0 0.0
    %1948 = vmatmul.mubr.f32.gmra.mrb[0].mxu0 %v1881
    %v1949 = vpop.f32.mrb[0].mxu0
    %v1950 = vadd.f32 0.0, %v1949
    %v1951 = vpop.f32.mrb[0].mxu0
    %1952 = vdwg.mxu0
    %v1954 = vrot.slane %v1950, 5
    %v1955 = vrot.slane %v1950, 6
    %v1958 = vadd.f32 %v1441, %v1954
    %v1959 = vadd.f32 %v1446, %v1955
    %v1960 = vxor.u32 %v1958, 2147483648
    %v1961 = vxor.u32 %v1959, 2147483648
    %v1962 = vmul.f32 %v1960, 1.442695
    %v1963 = vpow.pop %v1962
    %v1964 = vmul.f32 %v1961, 1.442695
    %v1965 = vpow.pop %v1964
    %v1966 = vadd.f32 %v1963, 1.0
    %v1967 = vadd.f32 %v1965, 1.0
    %v1968 = vrcp.pop %v1966
    %v1969 = vmul.f32 1.0, %v1968
    %v1970 = vrcp.pop %v1967
    %v1971 = vmul.f32 1.0, %v1970
    %v1972 = vtanh.pop %v1958
    %v1973 = vtanh.pop %v1959
    %v1976 = vrot.slane %v1852, 7
    %v1977 = vrot.slane %v1853, 7
    %v1980 = vmul.f32 %v1969, %v1976
    %v1981 = vmul.f32 %v1971, %v1977
    %1984 = vrot.lane.b32.xlu0 %v1972, 64
    %v1985 = vpop.permute.xlu0 %1984
    %1986 = vrot.lane.b32.xlu0 %v1973, 64
    %v1987 = vpop.permute.xlu0 %1986
    %v1990 = vmul.f32 %v1969, %v1985
    %v1991 = vmul.f32 %v1971, %v1987
    %1994 = vrot.lane.b32.xlu0 %v1990, 32
    %v1995 = vpop.permute.xlu0 %1994
    %1996 = vrot.lane.b32.xlu0 %v1991, 32
    %v1997 = vpop.permute.xlu0 %1996
    %v2000 = vadd.f32 %v1980, %v1995
    %v2001 = vadd.f32 %v1981, %v1997
    %v2002 = vtanh.pop %v2000
    %v2003 = vtanh.pop %v2001
    %2006 = vrot.lane.b32.xlu0 %v2002, 64
    %v2007 = vpop.permute.xlu0 %2006
    %2008 = vrot.lane.b32.xlu0 %v2003, 64
    %v2009 = vpop.permute.xlu0 %2008
    %v2012 = vmul.f32 %v1969, %v2007
    %v2013 = vmul.f32 %v1971, %v2009
    %2016 = vrot.lane.b32.xlu0 %v2012, 32
    %v2017 = vpop.permute.xlu0 %2016
    %2018 = vrot.lane.b32.xlu0 %v2013, 32
    %v2019 = vpop.permute.xlu0 %2018
    %2022 = vst.msk [vmem:[#allocation3] sm:$0x8] %vm752, %v2017
    %2023 = vst.msk [vmem:[#allocation3 + $0x8] sm:$0x8] %vm752, %v2019
    %v2024 = vrot.slane %v2012, 3
    %v2025 = vrot.slane %v2013, 2
    %v2026 = vsel %vm311, %v2025, %v2024
    %2027 = vrot.lane.b32.xlu0 %v2026, 32
    %v2028 = vpop.permute.xlu0 %2027
    %v2029 = vsel %vm171, %v2028, 0
    %2031 = vmatprep.subr.mxu0 0.0
    %2032 = vmatpush1.msra.mxu0 %v1357
    %2033 = vmatprep.subr.mxu0 0.0
    %2034 = vmatpush1.msra.mxu0 %v1358
    %2035 = vmatprep.subr.mxu0 0.0
    %2036 = vmatpush1.msra.mxu0 %v1359
    %2037 = vmatprep.subr.mxu0 0.0
    %2038 = vmatpush1.msra.mxu0 %v1360
    %2039 = vmatprep.subr.mxu0 0.0
    %2040 = vmatpush1.msra.mxu0 0.0
    %2041 = vmatprep.subr.mxu0 0.0
    %2042 = vmatpush1.msra.mxu0 0.0
    %2043 = vmatprep.subr.mxu0 0.0
    %2044 = vmatpush1.msra.mxu0 0.0
    %2045 = vmatprep.subr.mxu0 0.0
    %2046 = vmatpush1.msra.mxu0 0.0
    %2047 = vmatprep.subr.mxu0 0.0
    %2048 = vmatpush1.msra.mxu0 0.0
    %2049 = vmatprep.subr.mxu0 0.0
    %2050 = vmatpush1.msra.mxu0 0.0
    %2051 = vmatprep.subr.mxu0 0.0
    %2052 = vmatpush1.msra.mxu0 0.0
    %2053 = vmatprep.subr.mxu0 0.0
    %2054 = vmatpush1.msra.mxu0 0.0
    %2055 = vmatprep.subr.mxu0 0.0
    %2056 = vmatpush1.msra.mxu0 0.0
    %2057 = vmatprep.subr.mxu0 0.0
    %2058 = vmatpush1.msra.mxu0 0.0
    %2059 = vmatprep.subr.mxu0 0.0
    %2060 = vmatpush1.msra.mxu0 0.0
    %2061 = vmatprep.subr.mxu0 0.0
    %2062 = vmatpush1.msra.mxu0 0.0
    %2063 = vmatprep.subr.mxu0 0.0
    %2064 = vmatpush1.msra.mxu0 0.0
    %2065 = vmatprep.subr.mxu0 0.0
    %2066 = vmatpush1.msra.mxu0 0.0
    %2067 = vmatprep.subr.mxu0 0.0
    %2068 = vmatpush1.msra.mxu0 0.0
    %2069 = vmatprep.subr.mxu0 0.0
    %2070 = vmatpush1.msra.mxu0 0.0
    %2071 = vmatprep.subr.mxu0 0.0
    %2072 = vmatpush1.msra.mxu0 0.0
    %2073 = vmatprep.subr.mxu0 0.0
    %2074 = vmatpush1.msra.mxu0 0.0
    %2075 = vmatprep.subr.mxu0 0.0
    %2076 = vmatpush1.msra.mxu0 0.0
    %2077 = vmatprep.subr.mxu0 0.0
    %2078 = vmatpush1.msra.mxu0 0.0
    %2079 = vmatprep.subr.mxu0 0.0
    %2080 = vmatpush1.msra.mxu0 0.0
    %2081 = vmatprep.subr.mxu0 0.0
    %2082 = vmatpush1.msra.mxu0 0.0
    %2083 = vmatprep.subr.mxu0 0.0
    %2084 = vmatpush1.msra.mxu0 0.0
    %2085 = vmatprep.subr.mxu0 0.0
    %2086 = vmatpush1.msra.mxu0 0.0
    %2087 = vmatprep.subr.mxu0 0.0
    %2088 = vmatpush1.msra.mxu0 0.0
    %2089 = vmatprep.subr.mxu0 0.0
    %2090 = vmatpush1.msra.mxu0 0.0
    %2091 = vmatprep.subr.mxu0 0.0
    %2092 = vmatpush1.msra.mxu0 0.0
    %2093 = vmatprep.subr.mxu0 0.0
    %2094 = vmatpush1.msra.mxu0 0.0
    %2095 = vmatprep.mubr.f32.mxu0 0.0
    %2096 = vmatmul.mubr.f32.gmra.mrb[0].mxu0 %v2029
    %v2097 = vpop.f32.mrb[0].mxu0
    %v2098 = vadd.f32 0.0, %v2097
    %v2099 = vpop.f32.mrb[0].mxu0
    %2100 = vdwg.mxu0
    %v2102 = vrot.slane %v2098, 4
    %v2103 = vrot.slane %v2098, 5
    %v2106 = vadd.f32 %v1441, %v2102
    %v2107 = vadd.f32 %v1446, %v2103
    %v2108 = vxor.u32 %v2106, 2147483648
    %v2109 = vxor.u32 %v2107, 2147483648
    %v2110 = vmul.f32 %v2108, 1.442695
    %v2111 = vpow.pop %v2110
    %v2112 = vmul.f32 %v2109, 1.442695
    %v2113 = vpow.pop %v2112
    %v2114 = vadd.f32 %v2111, 1.0
    %v2115 = vadd.f32 %v2113, 1.0
    %v2116 = vrcp.pop %v2114
    %v2117 = vmul.f32 1.0, %v2116
    %v2118 = vrcp.pop %v2115
    %v2119 = vmul.f32 1.0, %v2118
    %v2120 = vtanh.pop %v2106
    %v2121 = vtanh.pop %v2107
    %v2124 = vrot.slane %v2000, 7
    %v2125 = vrot.slane %v2001, 7
    %v2128 = vmul.f32 %v2117, %v2124
    %v2129 = vmul.f32 %v2119, %v2125
    %2132 = vrot.lane.b32.xlu0 %v2120, 64
    %v2133 = vpop.permute.xlu0 %2132
    %2134 = vrot.lane.b32.xlu0 %v2121, 64
    %v2135 = vpop.permute.xlu0 %2134
    %v2138 = vmul.f32 %v2117, %v2133
    %v2139 = vmul.f32 %v2119, %v2135
    %2142 = vrot.lane.b32.xlu0 %v2138, 32
    %v2143 = vpop.permute.xlu0 %2142
    %2144 = vrot.lane.b32.xlu0 %v2139, 32
    %v2145 = vpop.permute.xlu0 %2144
    %v2148 = vadd.f32 %v2128, %v2143
    %v2149 = vadd.f32 %v2129, %v2145
    %v2150 = vtanh.pop %v2148
    %v2151 = vtanh.pop %v2149
    %2154 = vrot.lane.b32.xlu0 %v2150, 64
    %v2155 = vpop.permute.xlu0 %2154
    %2156 = vrot.lane.b32.xlu0 %v2151, 64
    %v2157 = vpop.permute.xlu0 %2156
    %v2160 = vmul.f32 %v2117, %v2155
    %v2161 = vmul.f32 %v2119, %v2157
    %2164 = vrot.lane.b32.xlu0 %v2160, 32
    %v2165 = vpop.permute.xlu0 %2164
    %2166 = vrot.lane.b32.xlu0 %v2161, 32
    %v2167 = vpop.permute.xlu0 %2166
    %2170 = vst.msk [vmem:[#allocation3] sm:$0x10] %vm901, %v2165
    %2171 = vst.msk [vmem:[#allocation3 + $0x8] sm:$0x10] %vm901, %v2167
    %v2172 = vrot.slane %v2160, 4
    %v2173 = vrot.slane %v2161, 3
    %v2174 = vsel %vm311, %v2173, %v2172
    %2175 = vrot.lane.b32.xlu0 %v2174, 32
    %v2176 = vpop.permute.xlu0 %2175
    %v2177 = vsel %vm171, %v2176, 0
    %2179 = vmatprep.subr.mxu0 0.0
    %2180 = vmatpush1.msra.mxu0 %v1357
    %2181 = vmatprep.subr.mxu0 0.0
    %2182 = vmatpush1.msra.mxu0 %v1358
    %2183 = vmatprep.subr.mxu0 0.0
    %2184 = vmatpush1.msra.mxu0 %v1359
    %2185 = vmatprep.subr.mxu0 0.0
    %2186 = vmatpush1.msra.mxu0 %v1360
    %2187 = vmatprep.subr.mxu0 0.0
    %2188 = vmatpush1.msra.mxu0 0.0
    %2189 = vmatprep.subr.mxu0 0.0
    %2190 = vmatpush1.msra.mxu0 0.0
    %2191 = vmatprep.subr.mxu0 0.0
    %2192 = vmatpush1.msra.mxu0 0.0
    %2193 = vmatprep.subr.mxu0 0.0
    %2194 = vmatpush1.msra.mxu0 0.0
    %2195 = vmatprep.subr.mxu0 0.0
    %2196 = vmatpush1.msra.mxu0 0.0
    %2197 = vmatprep.subr.mxu0 0.0
    %2198 = vmatpush1.msra.mxu0 0.0
    %2199 = vmatprep.subr.mxu0 0.0
    %2200 = vmatpush1.msra.mxu0 0.0
    %2201 = vmatprep.subr.mxu0 0.0
    %2202 = vmatpush1.msra.mxu0 0.0
    %2203 = vmatprep.subr.mxu0 0.0
    %2204 = vmatpush1.msra.mxu0 0.0
    %2205 = vmatprep.subr.mxu0 0.0
    %2206 = vmatpush1.msra.mxu0 0.0
    %2207 = vmatprep.subr.mxu0 0.0
    %2208 = vmatpush1.msra.mxu0 0.0
    %2209 = vmatprep.subr.mxu0 0.0
    %2210 = vmatpush1.msra.mxu0 0.0
    %2211 = vmatprep.subr.mxu0 0.0
    %2212 = vmatpush1.msra.mxu0 0.0
    %2213 = vmatprep.subr.mxu0 0.0
    %2214 = vmatpush1.msra.mxu0 0.0
    %2215 = vmatprep.subr.mxu0 0.0
    %2216 = vmatpush1.msra.mxu0 0.0
    %2217 = vmatprep.subr.mxu0 0.0
    %2218 = vmatpush1.msra.mxu0 0.0
    %2219 = vmatprep.subr.mxu0 0.0
    %2220 = vmatpush1.msra.mxu0 0.0
    %2221 = vmatprep.subr.mxu0 0.0
    %2222 = vmatpush1.msra.mxu0 0.0
    %2223 = vmatprep.subr.mxu0 0.0
    %2224 = vmatpush1.msra.mxu0 0.0
    %2225 = vmatprep.subr.mxu0 0.0
    %2226 = vmatpush1.msra.mxu0 0.0
    %2227 = vmatprep.subr.mxu0 0.0
    %2228 = vmatpush1.msra.mxu0 0.0
    %2229 = vmatprep.subr.mxu0 0.0
    %2230 = vmatpush1.msra.mxu0 0.0
    %2231 = vmatprep.subr.mxu0 0.0
    %2232 = vmatpush1.msra.mxu0 0.0
    %2233 = vmatprep.subr.mxu0 0.0
    %2234 = vmatpush1.msra.mxu0 0.0
    %2235 = vmatprep.subr.mxu0 0.0
    %2236 = vmatpush1.msra.mxu0 0.0
    %2237 = vmatprep.subr.mxu0 0.0
    %2238 = vmatpush1.msra.mxu0 0.0
    %2239 = vmatprep.subr.mxu0 0.0
    %2240 = vmatpush1.msra.mxu0 0.0
    %2241 = vmatprep.subr.mxu0 0.0
    %2242 = vmatpush1.msra.mxu0 0.0
    %2243 = vmatprep.mubr.f32.mxu0 0.0
    %2244 = vmatmul.mubr.f32.gmra.mrb[0].mxu0 %v2177
    %v2245 = vpop.f32.mrb[0].mxu0
    %v2246 = vadd.f32 0.0, %v2245
    %v2247 = vpop.f32.mrb[0].mxu0
    %2248 = vdwg.mxu0
    %v2250 = vrot.slane %v2246, 3
    %v2251 = vrot.slane %v2246, 4
    %v2254 = vadd.f32 %v1441, %v2250
    %v2255 = vadd.f32 %v1446, %v2251
    %v2256 = vxor.u32 %v2254, 2147483648
    %v2257 = vxor.u32 %v2255, 2147483648
    %v2258 = vmul.f32 %v2256, 1.442695
    %v2259 = vpow.pop %v2258
    %v2260 = vmul.f32 %v2257, 1.442695
    %v2261 = vpow.pop %v2260
    %v2262 = vadd.f32 %v2259, 1.0
    %v2263 = vadd.f32 %v2261, 1.0
    %v2264 = vrcp.pop %v2262
    %v2265 = vmul.f32 1.0, %v2264
    %v2266 = vrcp.pop %v2263
    %v2267 = vmul.f32 1.0, %v2266
    %v2268 = vtanh.pop %v2254
    %v2269 = vtanh.pop %v2255
    %v2272 = vrot.slane %v2148, 7
    %v2273 = vrot.slane %v2149, 7
    %v2276 = vmul.f32 %v2265, %v2272
    %v2277 = vmul.f32 %v2267, %v2273
    %2280 = vrot.lane.b32.xlu0 %v2268, 64
    %v2281 = vpop.permute.xlu0 %2280
    %2282 = vrot.lane.b32.xlu0 %v2269, 64
    %v2283 = vpop.permute.xlu0 %2282
    %v2286 = vmul.f32 %v2265, %v2281
    %v2287 = vmul.f32 %v2267, %v2283
    %2290 = vrot.lane.b32.xlu0 %v2286, 32
    %v2291 = vpop.permute.xlu0 %2290
    %2292 = vrot.lane.b32.xlu0 %v2287, 32
    %v2293 = vpop.permute.xlu0 %2292
    %v2296 = vadd.f32 %v2276, %v2291
    %v2297 = vadd.f32 %v2277, %v2293
    %v2298 = vtanh.pop %v2296
    %v2299 = vtanh.pop %v2297
    %2302 = vrot.lane.b32.xlu0 %v2298, 64
    %v2303 = vpop.permute.xlu0 %2302
    %2304 = vrot.lane.b32.xlu0 %v2299, 64
    %v2305 = vpop.permute.xlu0 %2304
    %v2308 = vmul.f32 %v2265, %v2303
    %v2309 = vmul.f32 %v2267, %v2305
    %2312 = vrot.lane.b32.xlu0 %v2308, 32
    %v2313 = vpop.permute.xlu0 %2312
    %2314 = vrot.lane.b32.xlu0 %v2309, 32
    %v2315 = vpop.permute.xlu0 %2314
    %2318 = vst.msk [vmem:[#allocation3] sm:$0x20] %vm1050, %v2313
    %2319 = vst.msk [vmem:[#allocation3 + $0x8] sm:$0x20] %vm1050, %v2315
    %v2320 = vrot.slane %v2308, 5
    %v2321 = vrot.slane %v2309, 4
    %v2322 = vsel %vm311, %v2321, %v2320
    %2323 = vrot.lane.b32.xlu0 %v2322, 32
    %v2324 = vpop.permute.xlu0 %2323
    %v2325 = vsel %vm171, %v2324, 0
    %2327 = vmatprep.subr.mxu0 0.0
    %2328 = vmatpush1.msra.mxu0 %v1357
    %2329 = vmatprep.subr.mxu0 0.0
    %2330 = vmatpush1.msra.mxu0 %v1358
    %2331 = vmatprep.subr.mxu0 0.0
    %2332 = vmatpush1.msra.mxu0 %v1359
    %2333 = vmatprep.subr.mxu0 0.0
    %2334 = vmatpush1.msra.mxu0 %v1360
    %2335 = vmatprep.subr.mxu0 0.0
    %2336 = vmatpush1.msra.mxu0 0.0
    %2337 = vmatprep.subr.mxu0 0.0
    %2338 = vmatpush1.msra.mxu0 0.0
    %2339 = vmatprep.subr.mxu0 0.0
    %2340 = vmatpush1.msra.mxu0 0.0
    %2341 = vmatprep.subr.mxu0 0.0
    %2342 = vmatpush1.msra.mxu0 0.0
    %2343 = vmatprep.subr.mxu0 0.0
    %2344 = vmatpush1.msra.mxu0 0.0
    %2345 = vmatprep.subr.mxu0 0.0
    %2346 = vmatpush1.msra.mxu0 0.0
    %2347 = vmatprep.subr.mxu0 0.0
    %2348 = vmatpush1.msra.mxu0 0.0
    %2349 = vmatprep.subr.mxu0 0.0
    %2350 = vmatpush1.msra.mxu0 0.0
    %2351 = vmatprep.subr.mxu0 0.0
    %2352 = vmatpush1.msra.mxu0 0.0
    %2353 = vmatprep.subr.mxu0 0.0
    %2354 = vmatpush1.msra.mxu0 0.0
    %2355 = vmatprep.subr.mxu0 0.0
    %2356 = vmatpush1.msra.mxu0 0.0
    %2357 = vmatprep.subr.mxu0 0.0
    %2358 = vmatpush1.msra.mxu0 0.0
    %2359 = vmatprep.subr.mxu0 0.0
    %2360 = vmatpush1.msra.mxu0 0.0
    %2361 = vmatprep.subr.mxu0 0.0
    %2362 = vmatpush1.msra.mxu0 0.0
    %2363 = vmatprep.subr.mxu0 0.0
    %2364 = vmatpush1.msra.mxu0 0.0
    %2365 = vmatprep.subr.mxu0 0.0
    %2366 = vmatpush1.msra.mxu0 0.0
    %2367 = vmatprep.subr.mxu0 0.0
    %2368 = vmatpush1.msra.mxu0 0.0
    %2369 = vmatprep.subr.mxu0 0.0
    %2370 = vmatpush1.msra.mxu0 0.0
    %2371 = vmatprep.subr.mxu0 0.0
    %2372 = vmatpush1.msra.mxu0 0.0
    %2373 = vmatprep.subr.mxu0 0.0
    %2374 = vmatpush1.msra.mxu0 0.0
    %2375 = vmatprep.subr.mxu0 0.0
    %2376 = vmatpush1.msra.mxu0 0.0
    %2377 = vmatprep.subr.mxu0 0.0
    %2378 = vmatpush1.msra.mxu0 0.0
    %2379 = vmatprep.subr.mxu0 0.0
    %2380 = vmatpush1.msra.mxu0 0.0
    %2381 = vmatprep.subr.mxu0 0.0
    %2382 = vmatpush1.msra.mxu0 0.0
    %2383 = vmatprep.subr.mxu0 0.0
    %2384 = vmatpush1.msra.mxu0 0.0
    %2385 = vmatprep.subr.mxu0 0.0
    %2386 = vmatpush1.msra.mxu0 0.0
    %2387 = vmatprep.subr.mxu0 0.0
    %2388 = vmatpush1.msra.mxu0 0.0
    %2389 = vmatprep.subr.mxu0 0.0
    %2390 = vmatpush1.msra.mxu0 0.0
    %2391 = vmatprep.mubr.f32.mxu0 0.0
    %2392 = vmatmul.mubr.f32.gmra.mrb[0].mxu0 %v2325
    %v2393 = vpop.f32.mrb[0].mxu0
    %v2394 = vadd.f32 0.0, %v2393
    %v2395 = vpop.f32.mrb[0].mxu0
    %2396 = vdwg.mxu0
    %v2398 = vrot.slane %v2394, 2
    %v2399 = vrot.slane %v2394, 3
    %v2402 = vadd.f32 %v1441, %v2398
    %v2403 = vadd.f32 %v1446, %v2399
    %v2404 = vxor.u32 %v2402, 2147483648
    %v2405 = vxor.u32 %v2403, 2147483648
    %v2406 = vmul.f32 %v2404, 1.442695
    %v2407 = vpow.pop %v2406
    %v2408 = vmul.f32 %v2405, 1.442695
    %v2409 = vpow.pop %v2408
    %v2410 = vadd.f32 %v2407, 1.0
    %v2411 = vadd.f32 %v2409, 1.0
    %v2412 = vrcp.pop %v2410
    %v2413 = vmul.f32 1.0, %v2412
    %v2414 = vrcp.pop %v2411
    %v2415 = vmul.f32 1.0, %v2414
    %v2416 = vtanh.pop %v2402
    %v2417 = vtanh.pop %v2403
    %v2420 = vrot.slane %v2296, 7
    %v2421 = vrot.slane %v2297, 7
    %v2424 = vmul.f32 %v2413, %v2420
    %v2425 = vmul.f32 %v2415, %v2421
    %2428 = vrot.lane.b32.xlu0 %v2416, 64
    %v2429 = vpop.permute.xlu0 %2428
    %2430 = vrot.lane.b32.xlu0 %v2417, 64
    %v2431 = vpop.permute.xlu0 %2430
    %v2434 = vmul.f32 %v2413, %v2429
    %v2435 = vmul.f32 %v2415, %v2431
    %2438 = vrot.lane.b32.xlu0 %v2434, 32
    %v2439 = vpop.permute.xlu0 %2438
    %2440 = vrot.lane.b32.xlu0 %v2435, 32
    %v2441 = vpop.permute.xlu0 %2440
    %v2444 = vadd.f32 %v2424, %v2439
    %v2445 = vadd.f32 %v2425, %v2441
    %v2446 = vtanh.pop %v2444
    %v2447 = vtanh.pop %v2445
    %2450 = vrot.lane.b32.xlu0 %v2446, 64
    %v2451 = vpop.permute.xlu0 %2450
    %2452 = vrot.lane.b32.xlu0 %v2447, 64
    %v2453 = vpop.permute.xlu0 %2452
    %v2456 = vmul.f32 %v2413, %v2451
    %v2457 = vmul.f32 %v2415, %v2453
    %2460 = vrot.lane.b32.xlu0 %v2456, 32
    %v2461 = vpop.permute.xlu0 %2460
    %2462 = vrot.lane.b32.xlu0 %v2457, 32
    %v2463 = vpop.permute.xlu0 %2462
    %2466 = vst.msk [vmem:[#allocation3] sm:$0x40] %vm1199, %v2461
    %2467 = vst.msk [vmem:[#allocation3 + $0x8] sm:$0x40] %vm1199, %v2463
    %v2468 = vrot.slane %v2456, 6
    %v2469 = vrot.slane %v2457, 5
    %v2470 = vsel %vm311, %v2469, %v2468
    %2471 = vrot.lane.b32.xlu0 %v2470, 32
    %v2472 = vpop.permute.xlu0 %2471
    %v2473 = vsel %vm171, %v2472, 0
    %2475 = vmatprep.subr.mxu0 0.0
    %2476 = vmatpush1.msra.mxu0 %v1357
    %2477 = vmatprep.subr.mxu0 0.0
    %2478 = vmatpush1.msra.mxu0 %v1358
    %2479 = vmatprep.subr.mxu0 0.0
    %2480 = vmatpush1.msra.mxu0 %v1359
    %2481 = vmatprep.subr.mxu0 0.0
    %2482 = vmatpush1.msra.mxu0 %v1360
    %2483 = vmatprep.subr.mxu0 0.0
    %2484 = vmatpush1.msra.mxu0 0.0
    %2485 = vmatprep.subr.mxu0 0.0
    %2486 = vmatpush1.msra.mxu0 0.0
    %2487 = vmatprep.subr.mxu0 0.0
    %2488 = vmatpush1.msra.mxu0 0.0
    %2489 = vmatprep.subr.mxu0 0.0
    %2490 = vmatpush1.msra.mxu0 0.0
    %2491 = vmatprep.subr.mxu0 0.0
    %2492 = vmatpush1.msra.mxu0 0.0
    %2493 = vmatprep.subr.mxu0 0.0
    %2494 = vmatpush1.msra.mxu0 0.0
    %2495 = vmatprep.subr.mxu0 0.0
    %2496 = vmatpush1.msra.mxu0 0.0
    %2497 = vmatprep.subr.mxu0 0.0
    %2498 = vmatpush1.msra.mxu0 0.0
    %2499 = vmatprep.subr.mxu0 0.0
    %2500 = vmatpush1.msra.mxu0 0.0
    %2501 = vmatprep.subr.mxu0 0.0
    %2502 = vmatpush1.msra.mxu0 0.0
    %2503 = vmatprep.subr.mxu0 0.0
    %2504 = vmatpush1.msra.mxu0 0.0
    %2505 = vmatprep.subr.mxu0 0.0
    %2506 = vmatpush1.msra.mxu0 0.0
    %2507 = vmatprep.subr.mxu0 0.0
    %2508 = vmatpush1.msra.mxu0 0.0
    %2509 = vmatprep.subr.mxu0 0.0
    %2510 = vmatpush1.msra.mxu0 0.0
    %2511 = vmatprep.subr.mxu0 0.0
    %2512 = vmatpush1.msra.mxu0 0.0
    %2513 = vmatprep.subr.mxu0 0.0
    %2514 = vmatpush1.msra.mxu0 0.0
    %2515 = vmatprep.subr.mxu0 0.0
    %2516 = vmatpush1.msra.mxu0 0.0
    %2517 = vmatprep.subr.mxu0 0.0
    %2518 = vmatpush1.msra.mxu0 0.0
    %2519 = vmatprep.subr.mxu0 0.0
    %2520 = vmatpush1.msra.mxu0 0.0
    %2521 = vmatprep.subr.mxu0 0.0
    %2522 = vmatpush1.msra.mxu0 0.0
    %2523 = vmatprep.subr.mxu0 0.0
    %2524 = vmatpush1.msra.mxu0 0.0
    %2525 = vmatprep.subr.mxu0 0.0
    %2526 = vmatpush1.msra.mxu0 0.0
    %2527 = vmatprep.subr.mxu0 0.0
    %2528 = vmatpush1.msra.mxu0 0.0
    %2529 = vmatprep.subr.mxu0 0.0
    %2530 = vmatpush1.msra.mxu0 0.0
    %2531 = vmatprep.subr.mxu0 0.0
    %2532 = vmatpush1.msra.mxu0 0.0
    %2533 = vmatprep.subr.mxu0 0.0
    %2534 = vmatpush1.msra.mxu0 0.0
    %2535 = vmatprep.subr.mxu0 0.0
    %2536 = vmatpush1.msra.mxu0 0.0
    %2537 = vmatprep.subr.mxu0 0.0
    %2538 = vmatpush1.msra.mxu0 0.0
    %2539 = vmatprep.mubr.f32.mxu0 0.0
    %2540 = vmatmul.mubr.f32.gmra.mrb[0].mxu0 %v2473
    %v2541 = vpop.f32.mrb[0].mxu0
    %v2542 = vadd.f32 0.0, %v2541
    %v2543 = vpop.f32.mrb[0].mxu0
    %2544 = vdwg.mxu0
    %v2546 = vrot.slane %v2542, 1
    %v2547 = vrot.slane %v2542, 2
    %v2550 = vadd.f32 %v1441, %v2546
    %v2551 = vadd.f32 %v1446, %v2547
    %v2552 = vxor.u32 %v2550, 2147483648
    %v2553 = vxor.u32 %v2551, 2147483648
    %v2554 = vmul.f32 %v2552, 1.442695
    %v2555 = vpow.pop %v2554
    %v2556 = vmul.f32 %v2553, 1.442695
    %v2557 = vpow.pop %v2556
    %v2558 = vadd.f32 %v2555, 1.0
    %v2559 = vadd.f32 %v2557, 1.0
    %v2560 = vrcp.pop %v2558
    %v2561 = vmul.f32 1.0, %v2560
    %v2562 = vrcp.pop %v2559
    %v2563 = vmul.f32 1.0, %v2562
    %v2564 = vtanh.pop %v2550
    %v2565 = vtanh.pop %v2551
    %v2568 = vrot.slane %v2444, 7
    %v2569 = vrot.slane %v2445, 7
    %v2572 = vmul.f32 %v2561, %v2568
    %v2573 = vmul.f32 %v2563, %v2569
    %2576 = vrot.lane.b32.xlu0 %v2564, 64
    %v2577 = vpop.permute.xlu0 %2576
    %2578 = vrot.lane.b32.xlu0 %v2565, 64
    %v2579 = vpop.permute.xlu0 %2578
    %v2582 = vmul.f32 %v2561, %v2577
    %v2583 = vmul.f32 %v2563, %v2579
    %2586 = vrot.lane.b32.xlu0 %v2582, 32
    %v2587 = vpop.permute.xlu0 %2586
    %2588 = vrot.lane.b32.xlu0 %v2583, 32
    %v2589 = vpop.permute.xlu0 %2588
    %v2592 = vadd.f32 %v2572, %v2587
    %v2593 = vadd.f32 %v2573, %v2589
    %v2594 = vtanh.pop %v2592
    %v2595 = vtanh.pop %v2593
    %2598 = vrot.lane.b32.xlu0 %v2594, 64
    %v2599 = vpop.permute.xlu0 %2598
    %2600 = vrot.lane.b32.xlu0 %v2595, 64
    %v2601 = vpop.permute.xlu0 %2600
    %v2604 = vmul.f32 %v2561, %v2599
    %v2605 = vmul.f32 %v2563, %v2601
    %2608 = vrot.lane.b32.xlu0 %v2604, 32
    %v2609 = vpop.permute.xlu0 %2608
    %2610 = vrot.lane.b32.xlu0 %v2605, 32
    %v2611 = vpop.permute.xlu0 %2610
    %2614 = vst.msk [vmem:[#allocation3] sm:$0x80] %vm1348, %v2609
    %2615 = vst.msk [vmem:[#allocation3 + $0x8] sm:$0x80] %vm1348, %v2611
    %v2616 = vld [vmem:[#allocation3] sm:$0xff]
    %v2617 = vld [vmem:[#allocation3 + $0x8] sm:$0xff]
    %v2618 = vld [vmem:[%s7] sm:$0xff]
    %v2619 = vld [vmem:[%s7 + $0x8] sm:$0xff]
    %v2620 = vld [vmem:[%s7 + $0x10] sm:$0xff]
    %v2621 = vld [vmem:[%s7 + $0x18] sm:$0xff]
    %v2622 = vld [vmem:[%s8] sm:$0x1]
    %v2624 = vlaneseq
    %v2625 = vshrl.u32 %v2624, 7
    %v2626 = vsub.s32 0, %v2625
    %v2627 = vrot.slane %v2622, %v2626
    %v2630 = vsel %vm171, %v2616, 0
    %v2633 = vsel %vm171, %v2617, 0
    %2635 = vmatprep.subr.mxu0 0.0
    %2636 = vmatpush1.msra.mxu0 %v2618
    %2637 = vmatprep.subr.mxu0 0.0
    %2638 = vmatpush1.msra.mxu0 %v2619
    %2639 = vmatprep.subr.mxu0 0.0
    %2640 = vmatpush1.msra.mxu0 %v2620
    %2641 = vmatprep.subr.mxu0 0.0
    %2642 = vmatpush1.msra.mxu0 %v2621
    %2643 = vmatprep.subr.mxu0 0.0
    %2644 = vmatpush1.msra.mxu0 0.0
    %2645 = vmatprep.subr.mxu0 0.0
    %2646 = vmatpush1.msra.mxu0 0.0
    %2647 = vmatprep.subr.mxu0 0.0
    %2648 = vmatpush1.msra.mxu0 0.0
    %2649 = vmatprep.subr.mxu0 0.0
    %2650 = vmatpush1.msra.mxu0 0.0
    %2651 = vmatprep.subr.mxu0 0.0
    %2652 = vmatpush1.msra.mxu0 0.0
    %2653 = vmatprep.subr.mxu0 0.0
    %2654 = vmatpush1.msra.mxu0 0.0
    %2655 = vmatprep.subr.mxu0 0.0
    %2656 = vmatpush1.msra.mxu0 0.0
    %2657 = vmatprep.subr.mxu0 0.0
    %2658 = vmatpush1.msra.mxu0 0.0
    %2659 = vmatprep.subr.mxu0 0.0
    %2660 = vmatpush1.msra.mxu0 0.0
    %2661 = vmatprep.subr.mxu0 0.0
    %2662 = vmatpush1.msra.mxu0 0.0
    %2663 = vmatprep.subr.mxu0 0.0
    %2664 = vmatpush1.msra.mxu0 0.0
    %2665 = vmatprep.subr.mxu0 0.0
    %2666 = vmatpush1.msra.mxu0 0.0
    %2667 = vmatprep.subr.mxu0 0.0
    %2668 = vmatpush1.msra.mxu0 0.0
    %2669 = vmatprep.subr.mxu0 0.0
    %2670 = vmatpush1.msra.mxu0 0.0
    %2671 = vmatprep.subr.mxu0 0.0
    %2672 = vmatpush1.msra.mxu0 0.0
    %2673 = vmatprep.subr.mxu0 0.0
    %2674 = vmatpush1.msra.mxu0 0.0
    %2675 = vmatprep.subr.mxu0 0.0
    %2676 = vmatpush1.msra.mxu0 0.0
    %2677 = vmatprep.subr.mxu0 0.0
    %2678 = vmatpush1.msra.mxu0 0.0
    %2679 = vmatprep.subr.mxu0 0.0
    %2680 = vmatpush1.msra.mxu0 0.0
    %2681 = vmatprep.subr.mxu0 0.0
    %2682 = vmatpush1.msra.mxu0 0.0
    %2683 = vmatprep.subr.mxu0 0.0
    %2684 = vmatpush1.msra.mxu0 0.0
    %2685 = vmatprep.subr.mxu0 0.0
    %2686 = vmatpush1.msra.mxu0 0.0
    %2687 = vmatprep.subr.mxu0 0.0
    %2688 = vmatpush1.msra.mxu0 0.0
    %2689 = vmatprep.subr.mxu0 0.0
    %2690 = vmatpush1.msra.mxu0 0.0
    %2691 = vmatprep.subr.mxu0 0.0
    %2692 = vmatpush1.msra.mxu0 0.0
    %2693 = vmatprep.subr.mxu0 0.0
    %2694 = vmatpush1.msra.mxu0 0.0
    %2695 = vmatprep.subr.mxu0 0.0
    %2696 = vmatpush1.msra.mxu0 0.0
    %2697 = vmatprep.subr.mxu0 0.0
    %2698 = vmatpush1.msra.mxu0 0.0
    %2699 = vmatprep.mubr.f32.mxu0 0.0
    %2700 = vmatmul.mubr.f32.gmra.mrb[0].mxu0 %v2630
    %v2701 = vpop.f32.mrb[0].mxu0
    %v2702 = vadd.f32 %v2627, %v2701
    %v2703 = vpop.f32.mrb[0].mxu0
    %2704 = vmatprep.mubr.f32.mxu0 0.0
    %2705 = vmatmul.mubr.f32.gmra.mrb[0].mxu0 %v2633
    %v2706 = vpop.f32.mrb[0].mxu0
    %v2707 = vadd.f32 %v2627, %v2706
    %v2708 = vpop.f32.mrb[0].mxu0
    %2709 = vdwg.mxu0
    %2710 = vst.msk [vmem:[#allocation10] sm:$0xff] %vm89, %v2702
    %2711 = vst.msk [vmem:[#allocation10 + $0x8] sm:$0xff] %vm89, %v2707
    // Predicated region
    $region50: #{tpu_custom_call.1} parent=1 // pred_check
      _
    $region51: #{tpu_custom_call.1} parent=1 // pred_check_branch
      %2713 = sbr.rel (0) target = $region53
    $region52: #{tpu_custom_call.1} parent=1 // pred_region
      %s2715 = ssub.s32 256, 256
      %2716 = vsyncadd [#allocation6], %s2715
      %s2717 = sshll.u32 [#allocation10], 4
      %s2718 = int_to_ptr.vmem [resolvable:$true] %s2717
      %2723 = dma.vmem_to_hbm [thread:$0]  %s2718, 256, %s9, [#allocation6], 128, 128, 8
    $region53: #{tpu_custom_call.1} parent=1 // pred_fallthru
      _
    // Predicated region
    $region54: #{tpu_custom_call.1} parent=1 // pred_check
      _
    $region55: #{tpu_custom_call.1} parent=1 // pred_check_branch
      %2725 = sbr.rel (0) target = $region57
    $region56: #{tpu_custom_call.1} parent=1 // pred_region
      %2726 = dma.done [#allocation6], 256
    $region57: #{tpu_custom_call.1} parent=1 // pred_fallthru
      _
    %2727 = vsyncpa [#allocation5], 1
    %2728 = vsyncpa [#allocation8], 1
    %2729 = vsyncpa [#allocation6], 1

</llo_original>
